<compile_context>
chip_gen: v7x
topology: tpu7x:2x2x1
jax: 0.10.0
libtpu: 0.0.40
codegen_flags: <defaults>
</compile_context>

<pallas_src>
import math
import functools

import jax
import jax.numpy as jnp
from jax.experimental import pallas as pl
from jax.experimental.pallas import tpu as pltpu

DIM = 2        # hid_dim / embed_dim   (module default dim=2)
HEADS = 1      # module default headers=1
FEED_DIM = 10  # module default feed_dim=10
EPS = 1e-5     # PyTorch LayerNorm default eps

_PARAM_ORDER = ('ln1_g', 'ln1_b', 'in_proj_w', 'in_proj_b', 'out_proj_w',
                'out_proj_b', 'ln2_g', 'ln2_b', 'feed_w1', 'feed_b1',
                'feed_ln_g', 'feed_ln_b', 'feed_w2', 'feed_b2')


# ----------------------------------------------------------------------------
# Kernel: one (F, S, TN) tile of sequences per grid step, N on lanes.
# ----------------------------------------------------------------------------
def att_decoder_kernel(p_ref, x_ref, o_ref, *, f, fd, n_heads, offs):
    s = x_ref.shape[1]
    hd = f // n_heads
    scale = 1.0 / math.sqrt(hd)

    def P(i):                     # scalar parameter from the packed SMEM slab
        return p_ref[i]

    def layer_norm(planes, g_off, b_off):
        d = len(planes)
        mu = planes[0]
        for t in planes[1:]:
            mu = mu + t
        mu = mu * (1.0 / d)
        diffs = [t - mu for t in planes]
        var = diffs[0] * diffs[0]
        for t in diffs[1:]:
            var = var + t * t
        inv = jax.lax.rsqrt(var * (1.0 / d) + EPS)
        return [diffs[i] * inv * P(g_off + i) + P(b_off + i) for i in range(d)]

    def linear(planes, w_off, b_off, n_out, n_in):
        # y[o] = sum_i W[o, i] * x[i] + b[o]   (W row-major in the SMEM slab)
        outs = []
        for o in range(n_out):
            acc = planes[0] * P(w_off + o * n_in)
            for i in range(1, n_in):
                acc = acc + planes[i] * P(w_off + o * n_in + i)
            outs.append(acc + P(b_off + o))
        return outs

    # ---- load input planes ------------------------------------------------
    x = [x_ref[i] for i in range(f)]                 # f planes of (s, tn)

    # ---- LayerNorm1 ---------------------------------------------------------
    xn = layer_norm(x, offs['ln1_g'], offs['ln1_b'])

    # ---- QKV projection (VPU FMA chains, no MXU) ----------------------------
    q = linear(xn, offs['w_q'], offs['b_q'], f, f)
    k = linear(xn, offs['w_k'], offs['b_k'], f, f)
    v = linear(xn, offs['w_v'], offs['b_v'], f, f)

    # ---- scaled dot-product attention: softmax over keys (sublane axis) ----
    attn_rows = [[] for _ in range(f)]               # attn[d]: list of (1, tn)
    for h in range(n_heads):
        qh = [q[h * hd + d] * scale for d in range(hd)]
        kh = [k[h * hd + d] for d in range(hd)]
        vh = [v[h * hd + d] for d in range(hd)]
        for i in range(s):                           # one softmax row / query
            sc = qh[0][i:i + 1, :] * kh[0]           # (s, tn)
            for d in range(1, hd):
                sc = sc + qh[d][i:i + 1, :] * kh[d]
            m = jnp.max(sc, axis=0, keepdims=True)   # (1, tn)
            p = jnp.exp(sc - m)
            denom = jnp.sum(p, axis=0, keepdims=True)
            # exact reciprocal; approx=True would be amplified by the dim=2
            # LayerNorm past the verification tolerance.
            p = p * pl.reciprocal(denom, approx=False)
            for d in range(hd):
                attn_rows[h * hd + d].append(
                    jnp.sum(p * vh[d], axis=0, keepdims=True))
    attn = [jnp.concatenate(rows, axis=0) for rows in attn_rows]  # (s, tn)

    # ---- output projection --------------------------------------------------
    attn = linear(attn, offs['out_proj_w'], offs['out_proj_b'], f, f)

    # ---- residual 1 + LayerNorm2 --------------------------------------------
    x1 = [xn[i] + attn[i] for i in range(f)]
    x2 = layer_norm(x1, offs['ln2_g'], offs['ln2_b'])

    # ---- feed forward: Linear -> ReLU -> LayerNorm -> Linear -> ReLU --------
    h1 = linear(x2, offs['feed_w1'], offs['feed_b1'], fd, f)
    h1 = [jnp.maximum(t, 0.0) for t in h1]
    h1 = layer_norm(h1, offs['feed_ln_g'], offs['feed_ln_b'])
    ff = linear(h1, offs['feed_w2'], offs['feed_b2'], f, fd)
    ff = [jnp.maximum(t, 0.0) for t in ff]

    # ---- residual 2, lane-dense store ---------------------------------------
    for i in range(f):
        o_ref[i] = (x2[i] + ff[i]).astype(o_ref.dtype)


# ----------------------------------------------------------------------------
# Wrapper
# ----------------------------------------------------------------------------
def _pack_params(params, f):
    """Concatenate all parameters into one flat f32 vector + offset table."""
    flat, offs, off = [], {}, 0
    for name in _PARAM_ORDER:
        a = jnp.asarray(params[name], dtype=jnp.float32).reshape(-1)
        offs[name] = off
        off += a.shape[0]
        flat.append(a)
    # q/k/v splits of in_proj (PyTorch packs them row-wise: q, k, v)
    offs['w_q'] = offs['in_proj_w']
    offs['w_k'] = offs['in_proj_w'] + f * f
    offs['w_v'] = offs['in_proj_w'] + 2 * f * f
    offs['b_q'] = offs['in_proj_b']
    offs['b_k'] = offs['in_proj_b'] + f
    offs['b_v'] = offs['in_proj_b'] + 2 * f
    return jnp.concatenate(flat), offs


def att_decoder_b(x, params, *, n_heads=HEADS, tn=512):
    b, kk, s, f = x.shape
    n = b * kk
    fd = params['feed_w1'].shape[0]

    pvec, offs = _pack_params(params, f)

    # lane tile over sequences: multiple of 128, no larger than needed
    tn = max(128, (tn // 128) * 128)
    tn = min(tn, max(128, pl.cdiv(n, 128) * 128))
    n_pad = pl.cdiv(n, tn) * tn

    # (B, K, S, F) -> (F, S, N): put the batch on the 128-lane axis.
    xt = x.reshape(n, s, f).astype(jnp.float32).transpose(2, 1, 0)
    if n_pad != n:
        xt = jnp.pad(xt, ((0, 0), (0, 0), (0, n_pad - n)))

    kernel = functools.partial(att_decoder_kernel, f=f, fd=fd,
                               n_heads=n_heads, offs=offs)

    out = pl.pallas_call(
        kernel,
        out_shape=jax.ShapeDtypeStruct((f, s, n_pad), jnp.float32),
        grid=(n_pad // tn,),
        in_specs=[
            pl.BlockSpec(memory_space=pltpu.MemorySpace.SMEM),   # packed params
            pl.BlockSpec((f, s, tn), lambda i: (0, 0, i)),       # x tile
        ],
        out_specs=pl.BlockSpec((f, s, tn), lambda i: (0, 0, i)),
        compiler_params=pltpu.CompilerParams(
            dimension_semantics=("parallel",)),
    )(pvec, xt)

    out = out[:, :, :n].transpose(2, 1, 0)                       # (N, S, F)
    return out.reshape(b, kk, s, f)


# ----------------------------------------------------------------------------
# Pure-JAX reference (mirror of the PyTorch forward) for verification.
# ----------------------------------------------------------------------------
def reference(x, params, *, n_heads=HEADS):
    b, kk, s, f = x.shape
    hd = f // n_heads
    scale = 1.0 / math.sqrt(hd)
    with jax.default_matmul_precision("highest"):
        xv = x.reshape(-1, s, f).astype(jnp.float32)

        def ln(v, g, bb):
            mu = jnp.mean(v, axis=-1, keepdims=True)
            var = jnp.mean((v - mu) ** 2, axis=-1, keepdims=True)
            return (v - mu) * jax.lax.rsqrt(var + EPS) * g + bb

        xv = ln(xv, params['ln1_g'], params['ln1_b'])
        w, bqkv = params['in_proj_w'], params['in_proj_b']
        q = xv @ w[:f].T + bqkv[:f]
        k = xv @ w[f:2 * f].T + bqkv[f:2 * f]
        v = xv @ w[2 * f:].T + bqkv[2 * f:]
        n = q.shape[0]
        qh = q.reshape(n, s, n_heads, hd).transpose(0, 2, 1, 3) * scale
        kh = k.reshape(n, s, n_heads, hd).transpose(0, 2, 1, 3)
        vh = v.reshape(n, s, n_heads, hd).transpose(0, 2, 1, 3)
        sc = jnp.einsum('nhqd,nhkd->nhqk', qh, kh)
        p = jax.nn.softmax(sc, axis=-1)
        att = jnp.einsum('nhqk,nhkd->nhqd', p, vh)
        att = att.transpose(0, 2, 1, 3).reshape(n, s, f)
        att = att @ params['out_proj_w'].T + params['out_proj_b']
        xv = xv + att
        xv = ln(xv, params['ln2_g'], params['ln2_b'])
        h = jnp.maximum(xv @ params['feed_w1'].T + params['feed_b1'], 0.0)
        h = ln(h, params['feed_ln_g'], params['feed_ln_b'])
        ff = jnp.maximum(h @ params['feed_w2'].T + params['feed_b2'], 0.0)
        return (xv + ff).reshape(b, kk, s, f)


def make_params(key, dim=DIM, feed_dim=FEED_DIM):
    ks = jax.random.split(key, 14)
    nrm = lambda k, shape, sc=0.3: sc * jax.random.normal(k, shape, dtype=jnp.float32)
    return {
        'ln1_g': 1.0 + 0.1 * nrm(ks[0], (dim,)),
        'ln1_b': nrm(ks[1], (dim,)),
        'in_proj_w': nrm(ks[2], (3 * dim, dim)),
        'in_proj_b': nrm(ks[3], (3 * dim,)),
        'out_proj_w': nrm(ks[4], (dim, dim)),
        'out_proj_b': nrm(ks[5], (dim,)),
        'ln2_g': 1.0 + 0.1 * nrm(ks[6], (dim,)),
        'ln2_b': nrm(ks[7], (dim,)),
        'feed_w1': nrm(ks[8], (feed_dim, dim)),
        'feed_b1': nrm(ks[9], (feed_dim,)),
        'feed_ln_g': 1.0 + 0.1 * nrm(ks[10], (feed_dim,)),
        'feed_ln_b': nrm(ks[11], (feed_dim,)),
        'feed_w2': nrm(ks[12], (dim, feed_dim)),
        'feed_b2': nrm(ks[13], (dim,)),
    }


if __name__ == "__main__":
    key = jax.random.PRNGKey(0)
    kx, kp = jax.random.split(key)

    # N = B*K = 1024 sequences -> two parallel grid steps of 512 lanes each.
    B, K, S, F = 4, 256, 8, DIM
    x = jax.random.normal(kx, (B, K, S, F), dtype=jnp.float32)
    params = make_params(kp)

    out = jax.block_until_ready(att_decoder_b(x, params, tn=512))
    ref = reference(x, params)

    assert out.shape == (B, K, S, F)
    max_err = float(jnp.max(jnp.abs(out - ref)))
    # LayerNorm over dim=2 can amplify float re-association differences by up
    # to ~1/sqrt(eps); 1e-3 is a comfortable bound for genuinely matching math.
    assert jnp.allclose(out, ref, atol=1e-3, rtol=1e-3), \
        f"mismatch vs pure-JAX reference (max abs err {max_err:.3e})"

    print("KERNEL_OK")
</pallas_src>

<mosaic_0001>
module attributes {stable_mosaic.version = 11 : i64} {
  func.func @att_decoder_kernel(%arg0: i32, %arg1: memref<104xf32, #tpu.memory_space<smem>>, %arg2: memref<2x8x512xf32, #tpu.memory_space<vmem>>, %arg3: memref<2x8x512xf32, #tpu.memory_space<vmem>>) attributes {dimension_semantics = [#tpu.dimension_semantics<parallel>], iteration_bounds = array<i64: 2>, scalar_prefetch = 0 : i64, scratch_operands = 0 : i64, tpu.core_type = #tpu.core_type<tc>, window_params = [{transform_indices = @transform_0, window_bounds = array<i64: 104>}, {transform_indices = @transform_1, window_bounds = array<i64: 2, 8, 512>}, {transform_indices = @transform_2, window_bounds = array<i64: 2, 8, 512>}]} {
    %c0 = arith.constant 0 : index
    %c0_0 = arith.constant 0 : index
    %c0_1 = arith.constant 0 : index
    %0 = vector.load %arg2[%c0, %c0_0, %c0_1] : memref<2x8x512xf32, #tpu.memory_space<vmem>>, vector<1x8x512xf32>
    %1 = vector.shape_cast %0 : vector<1x8x512xf32> to vector<8x512xf32>
    %c1 = arith.constant 1 : index
    %c0_2 = arith.constant 0 : index
    %c0_3 = arith.constant 0 : index
    %2 = vector.load %arg2[%c1, %c0_2, %c0_3] : memref<2x8x512xf32, #tpu.memory_space<vmem>>, vector<1x8x512xf32>
    %3 = vector.shape_cast %2 : vector<1x8x512xf32> to vector<8x512xf32>
    %4 = arith.addf %1, %3 : vector<8x512xf32>
    %cst = arith.constant 5.000000e-01 : f32
    %5 = vector.broadcast %cst : f32 to vector<8x512xf32>
    %6 = arith.mulf %4, %5 : vector<8x512xf32>
    %7 = arith.subf %1, %6 : vector<8x512xf32>
    %8 = arith.subf %3, %6 : vector<8x512xf32>
    %9 = arith.mulf %7, %7 : vector<8x512xf32>
    %10 = arith.mulf %8, %8 : vector<8x512xf32>
    %11 = arith.addf %9, %10 : vector<8x512xf32>
    %cst_4 = arith.constant 5.000000e-01 : f32
    %12 = vector.broadcast %cst_4 : f32 to vector<8x512xf32>
    %13 = arith.mulf %11, %12 : vector<8x512xf32>
    %cst_5 = arith.constant 9.99999974E-6 : f32
    %14 = vector.broadcast %cst_5 : f32 to vector<8x512xf32>
    %15 = arith.addf %13, %14 : vector<8x512xf32>
    %16 = math.rsqrt %15 : vector<8x512xf32>
    %17 = arith.mulf %7, %16 : vector<8x512xf32>
    %c0_6 = arith.constant 0 : index
    %18 = memref.load %arg1[%c0_6] : memref<104xf32, #tpu.memory_space<smem>>
    %19 = vector.broadcast %18 : f32 to vector<8x512xf32>
    %20 = arith.mulf %17, %19 : vector<8x512xf32>
    %c2 = arith.constant 2 : index
    %21 = memref.load %arg1[%c2] : memref<104xf32, #tpu.memory_space<smem>>
    %22 = vector.broadcast %21 : f32 to vector<8x512xf32>
    %23 = arith.addf %20, %22 : vector<8x512xf32>
    %24 = arith.mulf %8, %16 : vector<8x512xf32>
    %c1_7 = arith.constant 1 : index
    %25 = memref.load %arg1[%c1_7] : memref<104xf32, #tpu.memory_space<smem>>
    %26 = vector.broadcast %25 : f32 to vector<8x512xf32>
    %27 = arith.mulf %24, %26 : vector<8x512xf32>
    %c3 = arith.constant 3 : index
    %28 = memref.load %arg1[%c3] : memref<104xf32, #tpu.memory_space<smem>>
    %29 = vector.broadcast %28 : f32 to vector<8x512xf32>
    %30 = arith.addf %27, %29 : vector<8x512xf32>
    %c4 = arith.constant 4 : index
    %31 = memref.load %arg1[%c4] : memref<104xf32, #tpu.memory_space<smem>>
    %32 = vector.broadcast %31 : f32 to vector<8x512xf32>
    %33 = arith.mulf %23, %32 : vector<8x512xf32>
    %c5 = arith.constant 5 : index
    %34 = memref.load %arg1[%c5] : memref<104xf32, #tpu.memory_space<smem>>
    %35 = vector.broadcast %34 : f32 to vector<8x512xf32>
    %36 = arith.mulf %30, %35 : vector<8x512xf32>
    %37 = arith.addf %33, %36 : vector<8x512xf32>
    %c16 = arith.constant 16 : index
    %38 = memref.load %arg1[%c16] : memref<104xf32, #tpu.memory_space<smem>>
    %39 = vector.broadcast %38 : f32 to vector<8x512xf32>
    %40 = arith.addf %37, %39 : vector<8x512xf32>
    %c6 = arith.constant 6 : index
    %41 = memref.load %arg1[%c6] : memref<104xf32, #tpu.memory_space<smem>>
    %42 = vector.broadcast %41 : f32 to vector<8x512xf32>
    %43 = arith.mulf %23, %42 : vector<8x512xf32>
    %c7 = arith.constant 7 : index
    %44 = memref.load %arg1[%c7] : memref<104xf32, #tpu.memory_space<smem>>
    %45 = vector.broadcast %44 : f32 to vector<8x512xf32>
    %46 = arith.mulf %30, %45 : vector<8x512xf32>
    %47 = arith.addf %43, %46 : vector<8x512xf32>
    %c17 = arith.constant 17 : index
    %48 = memref.load %arg1[%c17] : memref<104xf32, #tpu.memory_space<smem>>
    %49 = vector.broadcast %48 : f32 to vector<8x512xf32>
    %50 = arith.addf %47, %49 : vector<8x512xf32>
    %c8 = arith.constant 8 : index
    %51 = memref.load %arg1[%c8] : memref<104xf32, #tpu.memory_space<smem>>
    %52 = vector.broadcast %51 : f32 to vector<8x512xf32>
    %53 = arith.mulf %23, %52 : vector<8x512xf32>
    %c9 = arith.constant 9 : index
    %54 = memref.load %arg1[%c9] : memref<104xf32, #tpu.memory_space<smem>>
    %55 = vector.broadcast %54 : f32 to vector<8x512xf32>
    %56 = arith.mulf %30, %55 : vector<8x512xf32>
    %57 = arith.addf %53, %56 : vector<8x512xf32>
    %c18 = arith.constant 18 : index
    %58 = memref.load %arg1[%c18] : memref<104xf32, #tpu.memory_space<smem>>
    %59 = vector.broadcast %58 : f32 to vector<8x512xf32>
    %60 = arith.addf %57, %59 : vector<8x512xf32>
    %c10 = arith.constant 10 : index
    %61 = memref.load %arg1[%c10] : memref<104xf32, #tpu.memory_space<smem>>
    %62 = vector.broadcast %61 : f32 to vector<8x512xf32>
    %63 = arith.mulf %23, %62 : vector<8x512xf32>
    %c11 = arith.constant 11 : index
    %64 = memref.load %arg1[%c11] : memref<104xf32, #tpu.memory_space<smem>>
    %65 = vector.broadcast %64 : f32 to vector<8x512xf32>
    %66 = arith.mulf %30, %65 : vector<8x512xf32>
    %67 = arith.addf %63, %66 : vector<8x512xf32>
    %c19 = arith.constant 19 : index
    %68 = memref.load %arg1[%c19] : memref<104xf32, #tpu.memory_space<smem>>
    %69 = vector.broadcast %68 : f32 to vector<8x512xf32>
    %70 = arith.addf %67, %69 : vector<8x512xf32>
    %c12 = arith.constant 12 : index
    %71 = memref.load %arg1[%c12] : memref<104xf32, #tpu.memory_space<smem>>
    %72 = vector.broadcast %71 : f32 to vector<8x512xf32>
    %73 = arith.mulf %23, %72 : vector<8x512xf32>
    %c13 = arith.constant 13 : index
    %74 = memref.load %arg1[%c13] : memref<104xf32, #tpu.memory_space<smem>>
    %75 = vector.broadcast %74 : f32 to vector<8x512xf32>
    %76 = arith.mulf %30, %75 : vector<8x512xf32>
    %77 = arith.addf %73, %76 : vector<8x512xf32>
    %c20 = arith.constant 20 : index
    %78 = memref.load %arg1[%c20] : memref<104xf32, #tpu.memory_space<smem>>
    %79 = vector.broadcast %78 : f32 to vector<8x512xf32>
    %80 = arith.addf %77, %79 : vector<8x512xf32>
    %c14 = arith.constant 14 : index
    %81 = memref.load %arg1[%c14] : memref<104xf32, #tpu.memory_space<smem>>
    %82 = vector.broadcast %81 : f32 to vector<8x512xf32>
    %83 = arith.mulf %23, %82 : vector<8x512xf32>
    %c15 = arith.constant 15 : index
    %84 = memref.load %arg1[%c15] : memref<104xf32, #tpu.memory_space<smem>>
    %85 = vector.broadcast %84 : f32 to vector<8x512xf32>
    %86 = arith.mulf %30, %85 : vector<8x512xf32>
    %87 = arith.addf %83, %86 : vector<8x512xf32>
    %c21 = arith.constant 21 : index
    %88 = memref.load %arg1[%c21] : memref<104xf32, #tpu.memory_space<smem>>
    %89 = vector.broadcast %88 : f32 to vector<8x512xf32>
    %90 = arith.addf %87, %89 : vector<8x512xf32>
    %cst_8 = arith.constant 0.707106769 : f32
    %91 = vector.broadcast %cst_8 : f32 to vector<8x512xf32>
    %92 = arith.mulf %40, %91 : vector<8x512xf32>
    %cst_9 = arith.constant 0.707106769 : f32
    %93 = vector.broadcast %cst_9 : f32 to vector<8x512xf32>
    %94 = arith.mulf %50, %93 : vector<8x512xf32>
    %95 = vector.extract_strided_slice %92 {offsets = [0, 0], sizes = [1, 512], strides = [1, 1]} : vector<8x512xf32> to vector<1x512xf32>
    %96 = vector.broadcast %95 : vector<1x512xf32> to vector<8x512xf32>
    %97 = arith.mulf %96, %60 : vector<8x512xf32>
    %98 = vector.extract_strided_slice %94 {offsets = [0, 0], sizes = [1, 512], strides = [1, 1]} : vector<8x512xf32> to vector<1x512xf32>
    %99 = vector.broadcast %98 : vector<1x512xf32> to vector<8x512xf32>
    %100 = arith.mulf %99, %70 : vector<8x512xf32>
    %101 = arith.addf %97, %100 : vector<8x512xf32>
    %cst_10 = arith.constant dense<0xFF800000> : vector<512xf32>
    %102 = vector.multi_reduction <maximumf>, %101, %cst_10 [0] : vector<8x512xf32> to vector<512xf32>
    %103 = vector.shape_cast %102 : vector<512xf32> to vector<1x512xf32>
    %104 = vector.broadcast %103 : vector<1x512xf32> to vector<8x512xf32>
    %105 = arith.subf %101, %104 : vector<8x512xf32>
    %106 = math.exp %105 : vector<8x512xf32>
    %cst_11 = arith.constant dense<0.000000e+00> : vector<512xf32>
    %107 = vector.multi_reduction <add>, %106, %cst_11 [0] : vector<8x512xf32> to vector<512xf32>
    %108 = vector.shape_cast %107 : vector<512xf32> to vector<1x512xf32>
    %109 = tpu.reciprocal %108 : vector<1x512xf32> -> vector<1x512xf32>
    %110 = vector.broadcast %109 : vector<1x512xf32> to vector<8x512xf32>
    %111 = arith.mulf %106, %110 : vector<8x512xf32>
    %112 = arith.mulf %111, %80 : vector<8x512xf32>
    %cst_12 = arith.constant dense<0.000000e+00> : vector<512xf32>
    %113 = vector.multi_reduction <add>, %112, %cst_12 [0] : vector<8x512xf32> to vector<512xf32>
    %114 = vector.shape_cast %113 : vector<512xf32> to vector<1x512xf32>
    %115 = arith.mulf %111, %90 : vector<8x512xf32>
    %cst_13 = arith.constant dense<0.000000e+00> : vector<512xf32>
    %116 = vector.multi_reduction <add>, %115, %cst_13 [0] : vector<8x512xf32> to vector<512xf32>
    %117 = vector.shape_cast %116 : vector<512xf32> to vector<1x512xf32>
    %118 = vector.extract_strided_slice %92 {offsets = [1, 0], sizes = [1, 512], strides = [1, 1]} : vector<8x512xf32> to vector<1x512xf32>
    %119 = vector.broadcast %118 : vector<1x512xf32> to vector<8x512xf32>
    %120 = arith.mulf %119, %60 : vector<8x512xf32>
    %121 = vector.extract_strided_slice %94 {offsets = [1, 0], sizes = [1, 512], strides = [1, 1]} : vector<8x512xf32> to vector<1x512xf32>
    %122 = vector.broadcast %121 : vector<1x512xf32> to vector<8x512xf32>
    %123 = arith.mulf %122, %70 : vector<8x512xf32>
    %124 = arith.addf %120, %123 : vector<8x512xf32>
    %cst_14 = arith.constant dense<0xFF800000> : vector<512xf32>
    %125 = vector.multi_reduction <maximumf>, %124, %cst_14 [0] : vector<8x512xf32> to vector<512xf32>
    %126 = vector.shape_cast %125 : vector<512xf32> to vector<1x512xf32>
    %127 = vector.broadcast %126 : vector<1x512xf32> to vector<8x512xf32>
    %128 = arith.subf %124, %127 : vector<8x512xf32>
    %129 = math.exp %128 : vector<8x512xf32>
    %cst_15 = arith.constant dense<0.000000e+00> : vector<512xf32>
    %130 = vector.multi_reduction <add>, %129, %cst_15 [0] : vector<8x512xf32> to vector<512xf32>
    %131 = vector.shape_cast %130 : vector<512xf32> to vector<1x512xf32>
    %132 = tpu.reciprocal %131 : vector<1x512xf32> -> vector<1x512xf32>
    %133 = vector.broadcast %132 : vector<1x512xf32> to vector<8x512xf32>
    %134 = arith.mulf %129, %133 : vector<8x512xf32>
    %135 = arith.mulf %134, %80 : vector<8x512xf32>
    %cst_16 = arith.constant dense<0.000000e+00> : vector<512xf32>
    %136 = vector.multi_reduction <add>, %135, %cst_16 [0] : vector<8x512xf32> to vector<512xf32>
    %137 = vector.shape_cast %136 : vector<512xf32> to vector<1x512xf32>
    %138 = arith.mulf %134, %90 : vector<8x512xf32>
    %cst_17 = arith.constant dense<0.000000e+00> : vector<512xf32>
    %139 = vector.multi_reduction <add>, %138, %cst_17 [0] : vector<8x512xf32> to vector<512xf32>
    %140 = vector.shape_cast %139 : vector<512xf32> to vector<1x512xf32>
    %141 = vector.extract_strided_slice %92 {offsets = [2, 0], sizes = [1, 512], strides = [1, 1]} : vector<8x512xf32> to vector<1x512xf32>
    %142 = vector.broadcast %141 : vector<1x512xf32> to vector<8x512xf32>
    %143 = arith.mulf %142, %60 : vector<8x512xf32>
    %144 = vector.extract_strided_slice %94 {offsets = [2, 0], sizes = [1, 512], strides = [1, 1]} : vector<8x512xf32> to vector<1x512xf32>
    %145 = vector.broadcast %144 : vector<1x512xf32> to vector<8x512xf32>
    %146 = arith.mulf %145, %70 : vector<8x512xf32>
    %147 = arith.addf %143, %146 : vector<8x512xf32>
    %cst_18 = arith.constant dense<0xFF800000> : vector<512xf32>
    %148 = vector.multi_reduction <maximumf>, %147, %cst_18 [0] : vector<8x512xf32> to vector<512xf32>
    %149 = vector.shape_cast %148 : vector<512xf32> to vector<1x512xf32>
    %150 = vector.broadcast %149 : vector<1x512xf32> to vector<8x512xf32>
    %151 = arith.subf %147, %150 : vector<8x512xf32>
    %152 = math.exp %151 : vector<8x512xf32>
    %cst_19 = arith.constant dense<0.000000e+00> : vector<512xf32>
    %153 = vector.multi_reduction <add>, %152, %cst_19 [0] : vector<8x512xf32> to vector<512xf32>
    %154 = vector.shape_cast %153 : vector<512xf32> to vector<1x512xf32>
    %155 = tpu.reciprocal %154 : vector<1x512xf32> -> vector<1x512xf32>
    %156 = vector.broadcast %155 : vector<1x512xf32> to vector<8x512xf32>
    %157 = arith.mulf %152, %156 : vector<8x512xf32>
    %158 = arith.mulf %157, %80 : vector<8x512xf32>
    %cst_20 = arith.constant dense<0.000000e+00> : vector<512xf32>
    %159 = vector.multi_reduction <add>, %158, %cst_20 [0] : vector<8x512xf32> to vector<512xf32>
    %160 = vector.shape_cast %159 : vector<512xf32> to vector<1x512xf32>
    %161 = arith.mulf %157, %90 : vector<8x512xf32>
    %cst_21 = arith.constant dense<0.000000e+00> : vector<512xf32>
    %162 = vector.multi_reduction <add>, %161, %cst_21 [0] : vector<8x512xf32> to vector<512xf32>
    %163 = vector.shape_cast %162 : vector<512xf32> to vector<1x512xf32>
    %164 = vector.extract_strided_slice %92 {offsets = [3, 0], sizes = [1, 512], strides = [1, 1]} : vector<8x512xf32> to vector<1x512xf32>
    %165 = vector.broadcast %164 : vector<1x512xf32> to vector<8x512xf32>
    %166 = arith.mulf %165, %60 : vector<8x512xf32>
    %167 = vector.extract_strided_slice %94 {offsets = [3, 0], sizes = [1, 512], strides = [1, 1]} : vector<8x512xf32> to vector<1x512xf32>
    %168 = vector.broadcast %167 : vector<1x512xf32> to vector<8x512xf32>
    %169 = arith.mulf %168, %70 : vector<8x512xf32>
    %170 = arith.addf %166, %169 : vector<8x512xf32>
    %cst_22 = arith.constant dense<0xFF800000> : vector<512xf32>
    %171 = vector.multi_reduction <maximumf>, %170, %cst_22 [0] : vector<8x512xf32> to vector<512xf32>
    %172 = vector.shape_cast %171 : vector<512xf32> to vector<1x512xf32>
    %173 = vector.broadcast %172 : vector<1x512xf32> to vector<8x512xf32>
    %174 = arith.subf %170, %173 : vector<8x512xf32>
    %175 = math.exp %174 : vector<8x512xf32>
    %cst_23 = arith.constant dense<0.000000e+00> : vector<512xf32>
    %176 = vector.multi_reduction <add>, %175, %cst_23 [0] : vector<8x512xf32> to vector<512xf32>
    %177 = vector.shape_cast %176 : vector<512xf32> to vector<1x512xf32>
    %178 = tpu.reciprocal %177 : vector<1x512xf32> -> vector<1x512xf32>
    %179 = vector.broadcast %178 : vector<1x512xf32> to vector<8x512xf32>
    %180 = arith.mulf %175, %179 : vector<8x512xf32>
    %181 = arith.mulf %180, %80 : vector<8x512xf32>
    %cst_24 = arith.constant dense<0.000000e+00> : vector<512xf32>
    %182 = vector.multi_reduction <add>, %181, %cst_24 [0] : vector<8x512xf32> to vector<512xf32>
    %183 = vector.shape_cast %182 : vector<512xf32> to vector<1x512xf32>
    %184 = arith.mulf %180, %90 : vector<8x512xf32>
    %cst_25 = arith.constant dense<0.000000e+00> : vector<512xf32>
    %185 = vector.multi_reduction <add>, %184, %cst_25 [0] : vector<8x512xf32> to vector<512xf32>
    %186 = vector.shape_cast %185 : vector<512xf32> to vector<1x512xf32>
    %187 = vector.extract_strided_slice %92 {offsets = [4, 0], sizes = [1, 512], strides = [1, 1]} : vector<8x512xf32> to vector<1x512xf32>
    %188 = vector.broadcast %187 : vector<1x512xf32> to vector<8x512xf32>
    %189 = arith.mulf %188, %60 : vector<8x512xf32>
    %190 = vector.extract_strided_slice %94 {offsets = [4, 0], sizes = [1, 512], strides = [1, 1]} : vector<8x512xf32> to vector<1x512xf32>
    %191 = vector.broadcast %190 : vector<1x512xf32> to vector<8x512xf32>
    %192 = arith.mulf %191, %70 : vector<8x512xf32>
    %193 = arith.addf %189, %192 : vector<8x512xf32>
    %cst_26 = arith.constant dense<0xFF800000> : vector<512xf32>
    %194 = vector.multi_reduction <maximumf>, %193, %cst_26 [0] : vector<8x512xf32> to vector<512xf32>
    %195 = vector.shape_cast %194 : vector<512xf32> to vector<1x512xf32>
    %196 = vector.broadcast %195 : vector<1x512xf32> to vector<8x512xf32>
    %197 = arith.subf %193, %196 : vector<8x512xf32>
    %198 = math.exp %197 : vector<8x512xf32>
    %cst_27 = arith.constant dense<0.000000e+00> : vector<512xf32>
    %199 = vector.multi_reduction <add>, %198, %cst_27 [0] : vector<8x512xf32> to vector<512xf32>
    %200 = vector.shape_cast %199 : vector<512xf32> to vector<1x512xf32>
    %201 = tpu.reciprocal %200 : vector<1x512xf32> -> vector<1x512xf32>
    %202 = vector.broadcast %201 : vector<1x512xf32> to vector<8x512xf32>
    %203 = arith.mulf %198, %202 : vector<8x512xf32>
    %204 = arith.mulf %203, %80 : vector<8x512xf32>
    %cst_28 = arith.constant dense<0.000000e+00> : vector<512xf32>
    %205 = vector.multi_reduction <add>, %204, %cst_28 [0] : vector<8x512xf32> to vector<512xf32>
    %206 = vector.shape_cast %205 : vector<512xf32> to vector<1x512xf32>
    %207 = arith.mulf %203, %90 : vector<8x512xf32>
    %cst_29 = arith.constant dense<0.000000e+00> : vector<512xf32>
    %208 = vector.multi_reduction <add>, %207, %cst_29 [0] : vector<8x512xf32> to vector<512xf32>
    %209 = vector.shape_cast %208 : vector<512xf32> to vector<1x512xf32>
    %210 = vector.extract_strided_slice %92 {offsets = [5, 0], sizes = [1, 512], strides = [1, 1]} : vector<8x512xf32> to vector<1x512xf32>
    %211 = vector.broadcast %210 : vector<1x512xf32> to vector<8x512xf32>
    %212 = arith.mulf %211, %60 : vector<8x512xf32>
    %213 = vector.extract_strided_slice %94 {offsets = [5, 0], sizes = [1, 512], strides = [1, 1]} : vector<8x512xf32> to vector<1x512xf32>
    %214 = vector.broadcast %213 : vector<1x512xf32> to vector<8x512xf32>
    %215 = arith.mulf %214, %70 : vector<8x512xf32>
    %216 = arith.addf %212, %215 : vector<8x512xf32>
    %cst_30 = arith.constant dense<0xFF800000> : vector<512xf32>
    %217 = vector.multi_reduction <maximumf>, %216, %cst_30 [0] : vector<8x512xf32> to vector<512xf32>
    %218 = vector.shape_cast %217 : vector<512xf32> to vector<1x512xf32>
    %219 = vector.broadcast %218 : vector<1x512xf32> to vector<8x512xf32>
    %220 = arith.subf %216, %219 : vector<8x512xf32>
    %221 = math.exp %220 : vector<8x512xf32>
    %cst_31 = arith.constant dense<0.000000e+00> : vector<512xf32>
    %222 = vector.multi_reduction <add>, %221, %cst_31 [0] : vector<8x512xf32> to vector<512xf32>
    %223 = vector.shape_cast %222 : vector<512xf32> to vector<1x512xf32>
    %224 = tpu.reciprocal %223 : vector<1x512xf32> -> vector<1x512xf32>
    %225 = vector.broadcast %224 : vector<1x512xf32> to vector<8x512xf32>
    %226 = arith.mulf %221, %225 : vector<8x512xf32>
    %227 = arith.mulf %226, %80 : vector<8x512xf32>
    %cst_32 = arith.constant dense<0.000000e+00> : vector<512xf32>
    %228 = vector.multi_reduction <add>, %227, %cst_32 [0] : vector<8x512xf32> to vector<512xf32>
    %229 = vector.shape_cast %228 : vector<512xf32> to vector<1x512xf32>
    %230 = arith.mulf %226, %90 : vector<8x512xf32>
    %cst_33 = arith.constant dense<0.000000e+00> : vector<512xf32>
    %231 = vector.multi_reduction <add>, %230, %cst_33 [0] : vector<8x512xf32> to vector<512xf32>
    %232 = vector.shape_cast %231 : vector<512xf32> to vector<1x512xf32>
    %233 = vector.extract_strided_slice %92 {offsets = [6, 0], sizes = [1, 512], strides = [1, 1]} : vector<8x512xf32> to vector<1x512xf32>
    %234 = vector.broadcast %233 : vector<1x512xf32> to vector<8x512xf32>
    %235 = arith.mulf %234, %60 : vector<8x512xf32>
    %236 = vector.extract_strided_slice %94 {offsets = [6, 0], sizes = [1, 512], strides = [1, 1]} : vector<8x512xf32> to vector<1x512xf32>
    %237 = vector.broadcast %236 : vector<1x512xf32> to vector<8x512xf32>
    %238 = arith.mulf %237, %70 : vector<8x512xf32>
    %239 = arith.addf %235, %238 : vector<8x512xf32>
    %cst_34 = arith.constant dense<0xFF800000> : vector<512xf32>
    %240 = vector.multi_reduction <maximumf>, %239, %cst_34 [0] : vector<8x512xf32> to vector<512xf32>
    %241 = vector.shape_cast %240 : vector<512xf32> to vector<1x512xf32>
    %242 = vector.broadcast %241 : vector<1x512xf32> to vector<8x512xf32>
    %243 = arith.subf %239, %242 : vector<8x512xf32>
    %244 = math.exp %243 : vector<8x512xf32>
    %cst_35 = arith.constant dense<0.000000e+00> : vector<512xf32>
    %245 = vector.multi_reduction <add>, %244, %cst_35 [0] : vector<8x512xf32> to vector<512xf32>
    %246 = vector.shape_cast %245 : vector<512xf32> to vector<1x512xf32>
    %247 = tpu.reciprocal %246 : vector<1x512xf32> -> vector<1x512xf32>
    %248 = vector.broadcast %247 : vector<1x512xf32> to vector<8x512xf32>
    %249 = arith.mulf %244, %248 : vector<8x512xf32>
    %250 = arith.mulf %249, %80 : vector<8x512xf32>
    %cst_36 = arith.constant dense<0.000000e+00> : vector<512xf32>
    %251 = vector.multi_reduction <add>, %250, %cst_36 [0] : vector<8x512xf32> to vector<512xf32>
    %252 = vector.shape_cast %251 : vector<512xf32> to vector<1x512xf32>
    %253 = arith.mulf %249, %90 : vector<8x512xf32>
    %cst_37 = arith.constant dense<0.000000e+00> : vector<512xf32>
    %254 = vector.multi_reduction <add>, %253, %cst_37 [0] : vector<8x512xf32> to vector<512xf32>
    %255 = vector.shape_cast %254 : vector<512xf32> to vector<1x512xf32>
    %256 = vector.extract_strided_slice %92 {offsets = [7, 0], sizes = [1, 512], strides = [1, 1]} : vector<8x512xf32> to vector<1x512xf32>
    %257 = vector.broadcast %256 : vector<1x512xf32> to vector<8x512xf32>
    %258 = arith.mulf %257, %60 : vector<8x512xf32>
    %259 = vector.extract_strided_slice %94 {offsets = [7, 0], sizes = [1, 512], strides = [1, 1]} : vector<8x512xf32> to vector<1x512xf32>
    %260 = vector.broadcast %259 : vector<1x512xf32> to vector<8x512xf32>
    %261 = arith.mulf %260, %70 : vector<8x512xf32>
    %262 = arith.addf %258, %261 : vector<8x512xf32>
    %cst_38 = arith.constant dense<0xFF800000> : vector<512xf32>
    %263 = vector.multi_reduction <maximumf>, %262, %cst_38 [0] : vector<8x512xf32> to vector<512xf32>
    %264 = vector.shape_cast %263 : vector<512xf32> to vector<1x512xf32>
    %265 = vector.broadcast %264 : vector<1x512xf32> to vector<8x512xf32>
    %266 = arith.subf %262, %265 : vector<8x512xf32>
    %267 = math.exp %266 : vector<8x512xf32>
    %cst_39 = arith.constant dense<0.000000e+00> : vector<512xf32>
    %268 = vector.multi_reduction <add>, %267, %cst_39 [0] : vector<8x512xf32> to vector<512xf32>
    %269 = vector.shape_cast %268 : vector<512xf32> to vector<1x512xf32>
    %270 = tpu.reciprocal %269 : vector<1x512xf32> -> vector<1x512xf32>
    %271 = vector.broadcast %270 : vector<1x512xf32> to vector<8x512xf32>
    %272 = arith.mulf %267, %271 : vector<8x512xf32>
    %273 = arith.mulf %272, %80 : vector<8x512xf32>
    %cst_40 = arith.constant dense<0.000000e+00> : vector<512xf32>
    %274 = vector.multi_reduction <add>, %273, %cst_40 [0] : vector<8x512xf32> to vector<512xf32>
    %275 = vector.shape_cast %274 : vector<512xf32> to vector<1x512xf32>
    %276 = arith.mulf %272, %90 : vector<8x512xf32>
    %cst_41 = arith.constant dense<0.000000e+00> : vector<512xf32>
    %277 = vector.multi_reduction <add>, %276, %cst_41 [0] : vector<8x512xf32> to vector<512xf32>
    %278 = vector.shape_cast %277 : vector<512xf32> to vector<1x512xf32>
    %279 = tpu.concatenate %114, %137, %160, %183, %206, %229, %252, %275 in 0 : vector<1x512xf32>, vector<1x512xf32>, vector<1x512xf32>, vector<1x512xf32>, vector<1x512xf32>, vector<1x512xf32>, vector<1x512xf32>, vector<1x512xf32> -> vector<8x512xf32>
    %280 = tpu.concatenate %117, %140, %163, %186, %209, %232, %255, %278 in 0 : vector<1x512xf32>, vector<1x512xf32>, vector<1x512xf32>, vector<1x512xf32>, vector<1x512xf32>, vector<1x512xf32>, vector<1x512xf32>, vector<1x512xf32> -> vector<8x512xf32>
    %c22 = arith.constant 22 : index
    %281 = memref.load %arg1[%c22] : memref<104xf32, #tpu.memory_space<smem>>
    %282 = vector.broadcast %281 : f32 to vector<8x512xf32>
    %283 = arith.mulf %279, %282 : vector<8x512xf32>
    %c23 = arith.constant 23 : index
    %284 = memref.load %arg1[%c23] : memref<104xf32, #tpu.memory_space<smem>>
    %285 = vector.broadcast %284 : f32 to vector<8x512xf32>
    %286 = arith.mulf %280, %285 : vector<8x512xf32>
    %287 = arith.addf %283, %286 : vector<8x512xf32>
    %c26 = arith.constant 26 : index
    %288 = memref.load %arg1[%c26] : memref<104xf32, #tpu.memory_space<smem>>
    %289 = vector.broadcast %288 : f32 to vector<8x512xf32>
    %290 = arith.addf %287, %289 : vector<8x512xf32>
    %c24 = arith.constant 24 : index
    %291 = memref.load %arg1[%c24] : memref<104xf32, #tpu.memory_space<smem>>
    %292 = vector.broadcast %291 : f32 to vector<8x512xf32>
    %293 = arith.mulf %279, %292 : vector<8x512xf32>
    %c25 = arith.constant 25 : index
    %294 = memref.load %arg1[%c25] : memref<104xf32, #tpu.memory_space<smem>>
    %295 = vector.broadcast %294 : f32 to vector<8x512xf32>
    %296 = arith.mulf %280, %295 : vector<8x512xf32>
    %297 = arith.addf %293, %296 : vector<8x512xf32>
    %c27 = arith.constant 27 : index
    %298 = memref.load %arg1[%c27] : memref<104xf32, #tpu.memory_space<smem>>
    %299 = vector.broadcast %298 : f32 to vector<8x512xf32>
    %300 = arith.addf %297, %299 : vector<8x512xf32>
    %301 = arith.addf %23, %290 : vector<8x512xf32>
    %302 = arith.addf %30, %300 : vector<8x512xf32>
    %303 = arith.addf %301, %302 : vector<8x512xf32>
    %cst_42 = arith.constant 5.000000e-01 : f32
    %304 = vector.broadcast %cst_42 : f32 to vector<8x512xf32>
    %305 = arith.mulf %303, %304 : vector<8x512xf32>
    %306 = arith.subf %301, %305 : vector<8x512xf32>
    %307 = arith.subf %302, %305 : vector<8x512xf32>
    %308 = arith.mulf %306, %306 : vector<8x512xf32>
    %309 = arith.mulf %307, %307 : vector<8x512xf32>
    %310 = arith.addf %308, %309 : vector<8x512xf32>
    %cst_43 = arith.constant 5.000000e-01 : f32
    %311 = vector.broadcast %cst_43 : f32 to vector<8x512xf32>
    %312 = arith.mulf %310, %311 : vector<8x512xf32>
    %cst_44 = arith.constant 9.99999974E-6 : f32
    %313 = vector.broadcast %cst_44 : f32 to vector<8x512xf32>
    %314 = arith.addf %312, %313 : vector<8x512xf32>
    %315 = math.rsqrt %314 : vector<8x512xf32>
    %316 = arith.mulf %306, %315 : vector<8x512xf32>
    %c28 = arith.constant 28 : index
    %317 = memref.load %arg1[%c28] : memref<104xf32, #tpu.memory_space<smem>>
    %318 = vector.broadcast %317 : f32 to vector<8x512xf32>
    %319 = arith.mulf %316, %318 : vector<8x512xf32>
    %c30 = arith.constant 30 : index
    %320 = memref.load %arg1[%c30] : memref<104xf32, #tpu.memory_space<smem>>
    %321 = vector.broadcast %320 : f32 to vector<8x512xf32>
    %322 = arith.addf %319, %321 : vector<8x512xf32>
    %323 = arith.mulf %307, %315 : vector<8x512xf32>
    %c29 = arith.constant 29 : index
    %324 = memref.load %arg1[%c29] : memref<104xf32, #tpu.memory_space<smem>>
    %325 = vector.broadcast %324 : f32 to vector<8x512xf32>
    %326 = arith.mulf %323, %325 : vector<8x512xf32>
    %c31 = arith.constant 31 : index
    %327 = memref.load %arg1[%c31] : memref<104xf32, #tpu.memory_space<smem>>
    %328 = vector.broadcast %327 : f32 to vector<8x512xf32>
    %329 = arith.addf %326, %328 : vector<8x512xf32>
    %c32 = arith.constant 32 : index
    %330 = memref.load %arg1[%c32] : memref<104xf32, #tpu.memory_space<smem>>
    %331 = vector.broadcast %330 : f32 to vector<8x512xf32>
    %332 = arith.mulf %322, %331 : vector<8x512xf32>
    %c33 = arith.constant 33 : index
    %333 = memref.load %arg1[%c33] : memref<104xf32, #tpu.memory_space<smem>>
    %334 = vector.broadcast %333 : f32 to vector<8x512xf32>
    %335 = arith.mulf %329, %334 : vector<8x512xf32>
    %336 = arith.addf %332, %335 : vector<8x512xf32>
    %c52 = arith.constant 52 : index
    %337 = memref.load %arg1[%c52] : memref<104xf32, #tpu.memory_space<smem>>
    %338 = vector.broadcast %337 : f32 to vector<8x512xf32>
    %339 = arith.addf %336, %338 : vector<8x512xf32>
    %c34 = arith.constant 34 : index
    %340 = memref.load %arg1[%c34] : memref<104xf32, #tpu.memory_space<smem>>
    %341 = vector.broadcast %340 : f32 to vector<8x512xf32>
    %342 = arith.mulf %322, %341 : vector<8x512xf32>
    %c35 = arith.constant 35 : index
    %343 = memref.load %arg1[%c35] : memref<104xf32, #tpu.memory_space<smem>>
    %344 = vector.broadcast %343 : f32 to vector<8x512xf32>
    %345 = arith.mulf %329, %344 : vector<8x512xf32>
    %346 = arith.addf %342, %345 : vector<8x512xf32>
    %c53 = arith.constant 53 : index
    %347 = memref.load %arg1[%c53] : memref<104xf32, #tpu.memory_space<smem>>
    %348 = vector.broadcast %347 : f32 to vector<8x512xf32>
    %349 = arith.addf %346, %348 : vector<8x512xf32>
    %c36 = arith.constant 36 : index
    %350 = memref.load %arg1[%c36] : memref<104xf32, #tpu.memory_space<smem>>
    %351 = vector.broadcast %350 : f32 to vector<8x512xf32>
    %352 = arith.mulf %322, %351 : vector<8x512xf32>
    %c37 = arith.constant 37 : index
    %353 = memref.load %arg1[%c37] : memref<104xf32, #tpu.memory_space<smem>>
    %354 = vector.broadcast %353 : f32 to vector<8x512xf32>
    %355 = arith.mulf %329, %354 : vector<8x512xf32>
    %356 = arith.addf %352, %355 : vector<8x512xf32>
    %c54 = arith.constant 54 : index
    %357 = memref.load %arg1[%c54] : memref<104xf32, #tpu.memory_space<smem>>
    %358 = vector.broadcast %357 : f32 to vector<8x512xf32>
    %359 = arith.addf %356, %358 : vector<8x512xf32>
    %c38 = arith.constant 38 : index
    %360 = memref.load %arg1[%c38] : memref<104xf32, #tpu.memory_space<smem>>
    %361 = vector.broadcast %360 : f32 to vector<8x512xf32>
    %362 = arith.mulf %322, %361 : vector<8x512xf32>
    %c39 = arith.constant 39 : index
    %363 = memref.load %arg1[%c39] : memref<104xf32, #tpu.memory_space<smem>>
    %364 = vector.broadcast %363 : f32 to vector<8x512xf32>
    %365 = arith.mulf %329, %364 : vector<8x512xf32>
    %366 = arith.addf %362, %365 : vector<8x512xf32>
    %c55 = arith.constant 55 : index
    %367 = memref.load %arg1[%c55] : memref<104xf32, #tpu.memory_space<smem>>
    %368 = vector.broadcast %367 : f32 to vector<8x512xf32>
    %369 = arith.addf %366, %368 : vector<8x512xf32>
    %c40 = arith.constant 40 : index
    %370 = memref.load %arg1[%c40] : memref<104xf32, #tpu.memory_space<smem>>
    %371 = vector.broadcast %370 : f32 to vector<8x512xf32>
    %372 = arith.mulf %322, %371 : vector<8x512xf32>
    %c41 = arith.constant 41 : index
    %373 = memref.load %arg1[%c41] : memref<104xf32, #tpu.memory_space<smem>>
    %374 = vector.broadcast %373 : f32 to vector<8x512xf32>
    %375 = arith.mulf %329, %374 : vector<8x512xf32>
    %376 = arith.addf %372, %375 : vector<8x512xf32>
    %c56 = arith.constant 56 : index
    %377 = memref.load %arg1[%c56] : memref<104xf32, #tpu.memory_space<smem>>
    %378 = vector.broadcast %377 : f32 to vector<8x512xf32>
    %379 = arith.addf %376, %378 : vector<8x512xf32>
    %c42 = arith.constant 42 : index
    %380 = memref.load %arg1[%c42] : memref<104xf32, #tpu.memory_space<smem>>
    %381 = vector.broadcast %380 : f32 to vector<8x512xf32>
    %382 = arith.mulf %322, %381 : vector<8x512xf32>
    %c43 = arith.constant 43 : index
    %383 = memref.load %arg1[%c43] : memref<104xf32, #tpu.memory_space<smem>>
    %384 = vector.broadcast %383 : f32 to vector<8x512xf32>
    %385 = arith.mulf %329, %384 : vector<8x512xf32>
    %386 = arith.addf %382, %385 : vector<8x512xf32>
    %c57 = arith.constant 57 : index
    %387 = memref.load %arg1[%c57] : memref<104xf32, #tpu.memory_space<smem>>
    %388 = vector.broadcast %387 : f32 to vector<8x512xf32>
    %389 = arith.addf %386, %388 : vector<8x512xf32>
    %c44 = arith.constant 44 : index
    %390 = memref.load %arg1[%c44] : memref<104xf32, #tpu.memory_space<smem>>
    %391 = vector.broadcast %390 : f32 to vector<8x512xf32>
    %392 = arith.mulf %322, %391 : vector<8x512xf32>
    %c45 = arith.constant 45 : index
    %393 = memref.load %arg1[%c45] : memref<104xf32, #tpu.memory_space<smem>>
    %394 = vector.broadcast %393 : f32 to vector<8x512xf32>
    %395 = arith.mulf %329, %394 : vector<8x512xf32>
    %396 = arith.addf %392, %395 : vector<8x512xf32>
    %c58 = arith.constant 58 : index
    %397 = memref.load %arg1[%c58] : memref<104xf32, #tpu.memory_space<smem>>
    %398 = vector.broadcast %397 : f32 to vector<8x512xf32>
    %399 = arith.addf %396, %398 : vector<8x512xf32>
    %c46 = arith.constant 46 : index
    %400 = memref.load %arg1[%c46] : memref<104xf32, #tpu.memory_space<smem>>
    %401 = vector.broadcast %400 : f32 to vector<8x512xf32>
    %402 = arith.mulf %322, %401 : vector<8x512xf32>
    %c47 = arith.constant 47 : index
    %403 = memref.load %arg1[%c47] : memref<104xf32, #tpu.memory_space<smem>>
    %404 = vector.broadcast %403 : f32 to vector<8x512xf32>
    %405 = arith.mulf %329, %404 : vector<8x512xf32>
    %406 = arith.addf %402, %405 : vector<8x512xf32>
    %c59 = arith.constant 59 : index
    %407 = memref.load %arg1[%c59] : memref<104xf32, #tpu.memory_space<smem>>
    %408 = vector.broadcast %407 : f32 to vector<8x512xf32>
    %409 = arith.addf %406, %408 : vector<8x512xf32>
    %c48 = arith.constant 48 : index
    %410 = memref.load %arg1[%c48] : memref<104xf32, #tpu.memory_space<smem>>
    %411 = vector.broadcast %410 : f32 to vector<8x512xf32>
    %412 = arith.mulf %322, %411 : vector<8x512xf32>
    %c49 = arith.constant 49 : index
    %413 = memref.load %arg1[%c49] : memref<104xf32, #tpu.memory_space<smem>>
    %414 = vector.broadcast %413 : f32 to vector<8x512xf32>
    %415 = arith.mulf %329, %414 : vector<8x512xf32>
    %416 = arith.addf %412, %415 : vector<8x512xf32>
    %c60 = arith.constant 60 : index
    %417 = memref.load %arg1[%c60] : memref<104xf32, #tpu.memory_space<smem>>
    %418 = vector.broadcast %417 : f32 to vector<8x512xf32>
    %419 = arith.addf %416, %418 : vector<8x512xf32>
    %c50 = arith.constant 50 : index
    %420 = memref.load %arg1[%c50] : memref<104xf32, #tpu.memory_space<smem>>
    %421 = vector.broadcast %420 : f32 to vector<8x512xf32>
    %422 = arith.mulf %322, %421 : vector<8x512xf32>
    %c51 = arith.constant 51 : index
    %423 = memref.load %arg1[%c51] : memref<104xf32, #tpu.memory_space<smem>>
    %424 = vector.broadcast %423 : f32 to vector<8x512xf32>
    %425 = arith.mulf %329, %424 : vector<8x512xf32>
    %426 = arith.addf %422, %425 : vector<8x512xf32>
    %c61 = arith.constant 61 : index
    %427 = memref.load %arg1[%c61] : memref<104xf32, #tpu.memory_space<smem>>
    %428 = vector.broadcast %427 : f32 to vector<8x512xf32>
    %429 = arith.addf %426, %428 : vector<8x512xf32>
    %cst_45 = arith.constant 0.000000e+00 : f32
    %430 = vector.broadcast %cst_45 : f32 to vector<8x512xf32>
    %431 = arith.maximumf %339, %430 : vector<8x512xf32>
    %cst_46 = arith.constant 0.000000e+00 : f32
    %432 = vector.broadcast %cst_46 : f32 to vector<8x512xf32>
    %433 = arith.maximumf %349, %432 : vector<8x512xf32>
    %cst_47 = arith.constant 0.000000e+00 : f32
    %434 = vector.broadcast %cst_47 : f32 to vector<8x512xf32>
    %435 = arith.maximumf %359, %434 : vector<8x512xf32>
    %cst_48 = arith.constant 0.000000e+00 : f32
    %436 = vector.broadcast %cst_48 : f32 to vector<8x512xf32>
    %437 = arith.maximumf %369, %436 : vector<8x512xf32>
    %cst_49 = arith.constant 0.000000e+00 : f32
    %438 = vector.broadcast %cst_49 : f32 to vector<8x512xf32>
    %439 = arith.maximumf %379, %438 : vector<8x512xf32>
    %cst_50 = arith.constant 0.000000e+00 : f32
    %440 = vector.broadcast %cst_50 : f32 to vector<8x512xf32>
    %441 = arith.maximumf %389, %440 : vector<8x512xf32>
    %cst_51 = arith.constant 0.000000e+00 : f32
    %442 = vector.broadcast %cst_51 : f32 to vector<8x512xf32>
    %443 = arith.maximumf %399, %442 : vector<8x512xf32>
    %cst_52 = arith.constant 0.000000e+00 : f32
    %444 = vector.broadcast %cst_52 : f32 to vector<8x512xf32>
    %445 = arith.maximumf %409, %444 : vector<8x512xf32>
    %cst_53 = arith.constant 0.000000e+00 : f32
    %446 = vector.broadcast %cst_53 : f32 to vector<8x512xf32>
    %447 = arith.maximumf %419, %446 : vector<8x512xf32>
    %cst_54 = arith.constant 0.000000e+00 : f32
    %448 = vector.broadcast %cst_54 : f32 to vector<8x512xf32>
    %449 = arith.maximumf %429, %448 : vector<8x512xf32>
    %450 = arith.addf %431, %433 : vector<8x512xf32>
    %451 = arith.addf %450, %435 : vector<8x512xf32>
    %452 = arith.addf %451, %437 : vector<8x512xf32>
    %453 = arith.addf %452, %439 : vector<8x512xf32>
    %454 = arith.addf %453, %441 : vector<8x512xf32>
    %455 = arith.addf %454, %443 : vector<8x512xf32>
    %456 = arith.addf %455, %445 : vector<8x512xf32>
    %457 = arith.addf %456, %447 : vector<8x512xf32>
    %458 = arith.addf %457, %449 : vector<8x512xf32>
    %cst_55 = arith.constant 1.000000e-01 : f32
    %459 = vector.broadcast %cst_55 : f32 to vector<8x512xf32>
    %460 = arith.mulf %458, %459 : vector<8x512xf32>
    %461 = arith.subf %431, %460 : vector<8x512xf32>
    %462 = arith.subf %433, %460 : vector<8x512xf32>
    %463 = arith.subf %435, %460 : vector<8x512xf32>
    %464 = arith.subf %437, %460 : vector<8x512xf32>
    %465 = arith.subf %439, %460 : vector<8x512xf32>
    %466 = arith.subf %441, %460 : vector<8x512xf32>
    %467 = arith.subf %443, %460 : vector<8x512xf32>
    %468 = arith.subf %445, %460 : vector<8x512xf32>
    %469 = arith.subf %447, %460 : vector<8x512xf32>
    %470 = arith.subf %449, %460 : vector<8x512xf32>
    %471 = arith.mulf %461, %461 : vector<8x512xf32>
    %472 = arith.mulf %462, %462 : vector<8x512xf32>
    %473 = arith.addf %471, %472 : vector<8x512xf32>
    %474 = arith.mulf %463, %463 : vector<8x512xf32>
    %475 = arith.addf %473, %474 : vector<8x512xf32>
    %476 = arith.mulf %464, %464 : vector<8x512xf32>
    %477 = arith.addf %475, %476 : vector<8x512xf32>
    %478 = arith.mulf %465, %465 : vector<8x512xf32>
    %479 = arith.addf %477, %478 : vector<8x512xf32>
    %480 = arith.mulf %466, %466 : vector<8x512xf32>
    %481 = arith.addf %479, %480 : vector<8x512xf32>
    %482 = arith.mulf %467, %467 : vector<8x512xf32>
    %483 = arith.addf %481, %482 : vector<8x512xf32>
    %484 = arith.mulf %468, %468 : vector<8x512xf32>
    %485 = arith.addf %483, %484 : vector<8x512xf32>
    %486 = arith.mulf %469, %469 : vector<8x512xf32>
    %487 = arith.addf %485, %486 : vector<8x512xf32>
    %488 = arith.mulf %470, %470 : vector<8x512xf32>
    %489 = arith.addf %487, %488 : vector<8x512xf32>
    %cst_56 = arith.constant 1.000000e-01 : f32
    %490 = vector.broadcast %cst_56 : f32 to vector<8x512xf32>
    %491 = arith.mulf %489, %490 : vector<8x512xf32>
    %cst_57 = arith.constant 9.99999974E-6 : f32
    %492 = vector.broadcast %cst_57 : f32 to vector<8x512xf32>
    %493 = arith.addf %491, %492 : vector<8x512xf32>
    %494 = math.rsqrt %493 : vector<8x512xf32>
    %495 = arith.mulf %461, %494 : vector<8x512xf32>
    %c62 = arith.constant 62 : index
    %496 = memref.load %arg1[%c62] : memref<104xf32, #tpu.memory_space<smem>>
    %497 = vector.broadcast %496 : f32 to vector<8x512xf32>
    %498 = arith.mulf %495, %497 : vector<8x512xf32>
    %c72 = arith.constant 72 : index
    %499 = memref.load %arg1[%c72] : memref<104xf32, #tpu.memory_space<smem>>
    %500 = vector.broadcast %499 : f32 to vector<8x512xf32>
    %501 = arith.addf %498, %500 : vector<8x512xf32>
    %502 = arith.mulf %462, %494 : vector<8x512xf32>
    %c63 = arith.constant 63 : index
    %503 = memref.load %arg1[%c63] : memref<104xf32, #tpu.memory_space<smem>>
    %504 = vector.broadcast %503 : f32 to vector<8x512xf32>
    %505 = arith.mulf %502, %504 : vector<8x512xf32>
    %c73 = arith.constant 73 : index
    %506 = memref.load %arg1[%c73] : memref<104xf32, #tpu.memory_space<smem>>
    %507 = vector.broadcast %506 : f32 to vector<8x512xf32>
    %508 = arith.addf %505, %507 : vector<8x512xf32>
    %509 = arith.mulf %463, %494 : vector<8x512xf32>
    %c64 = arith.constant 64 : index
    %510 = memref.load %arg1[%c64] : memref<104xf32, #tpu.memory_space<smem>>
    %511 = vector.broadcast %510 : f32 to vector<8x512xf32>
    %512 = arith.mulf %509, %511 : vector<8x512xf32>
    %c74 = arith.constant 74 : index
    %513 = memref.load %arg1[%c74] : memref<104xf32, #tpu.memory_space<smem>>
    %514 = vector.broadcast %513 : f32 to vector<8x512xf32>
    %515 = arith.addf %512, %514 : vector<8x512xf32>
    %516 = arith.mulf %464, %494 : vector<8x512xf32>
    %c65 = arith.constant 65 : index
    %517 = memref.load %arg1[%c65] : memref<104xf32, #tpu.memory_space<smem>>
    %518 = vector.broadcast %517 : f32 to vector<8x512xf32>
    %519 = arith.mulf %516, %518 : vector<8x512xf32>
    %c75 = arith.constant 75 : index
    %520 = memref.load %arg1[%c75] : memref<104xf32, #tpu.memory_space<smem>>
    %521 = vector.broadcast %520 : f32 to vector<8x512xf32>
    %522 = arith.addf %519, %521 : vector<8x512xf32>
    %523 = arith.mulf %465, %494 : vector<8x512xf32>
    %c66 = arith.constant 66 : index
    %524 = memref.load %arg1[%c66] : memref<104xf32, #tpu.memory_space<smem>>
    %525 = vector.broadcast %524 : f32 to vector<8x512xf32>
    %526 = arith.mulf %523, %525 : vector<8x512xf32>
    %c76 = arith.constant 76 : index
    %527 = memref.load %arg1[%c76] : memref<104xf32, #tpu.memory_space<smem>>
    %528 = vector.broadcast %527 : f32 to vector<8x512xf32>
    %529 = arith.addf %526, %528 : vector<8x512xf32>
    %530 = arith.mulf %466, %494 : vector<8x512xf32>
    %c67 = arith.constant 67 : index
    %531 = memref.load %arg1[%c67] : memref<104xf32, #tpu.memory_space<smem>>
    %532 = vector.broadcast %531 : f32 to vector<8x512xf32>
    %533 = arith.mulf %530, %532 : vector<8x512xf32>
    %c77 = arith.constant 77 : index
    %534 = memref.load %arg1[%c77] : memref<104xf32, #tpu.memory_space<smem>>
    %535 = vector.broadcast %534 : f32 to vector<8x512xf32>
    %536 = arith.addf %533, %535 : vector<8x512xf32>
    %537 = arith.mulf %467, %494 : vector<8x512xf32>
    %c68 = arith.constant 68 : index
    %538 = memref.load %arg1[%c68] : memref<104xf32, #tpu.memory_space<smem>>
    %539 = vector.broadcast %538 : f32 to vector<8x512xf32>
    %540 = arith.mulf %537, %539 : vector<8x512xf32>
    %c78 = arith.constant 78 : index
    %541 = memref.load %arg1[%c78] : memref<104xf32, #tpu.memory_space<smem>>
    %542 = vector.broadcast %541 : f32 to vector<8x512xf32>
    %543 = arith.addf %540, %542 : vector<8x512xf32>
    %544 = arith.mulf %468, %494 : vector<8x512xf32>
    %c69 = arith.constant 69 : index
    %545 = memref.load %arg1[%c69] : memref<104xf32, #tpu.memory_space<smem>>
    %546 = vector.broadcast %545 : f32 to vector<8x512xf32>
    %547 = arith.mulf %544, %546 : vector<8x512xf32>
    %c79 = arith.constant 79 : index
    %548 = memref.load %arg1[%c79] : memref<104xf32, #tpu.memory_space<smem>>
    %549 = vector.broadcast %548 : f32 to vector<8x512xf32>
    %550 = arith.addf %547, %549 : vector<8x512xf32>
    %551 = arith.mulf %469, %494 : vector<8x512xf32>
    %c70 = arith.constant 70 : index
    %552 = memref.load %arg1[%c70] : memref<104xf32, #tpu.memory_space<smem>>
    %553 = vector.broadcast %552 : f32 to vector<8x512xf32>
    %554 = arith.mulf %551, %553 : vector<8x512xf32>
    %c80 = arith.constant 80 : index
    %555 = memref.load %arg1[%c80] : memref<104xf32, #tpu.memory_space<smem>>
    %556 = vector.broadcast %555 : f32 to vector<8x512xf32>
    %557 = arith.addf %554, %556 : vector<8x512xf32>
    %558 = arith.mulf %470, %494 : vector<8x512xf32>
    %c71 = arith.constant 71 : index
    %559 = memref.load %arg1[%c71] : memref<104xf32, #tpu.memory_space<smem>>
    %560 = vector.broadcast %559 : f32 to vector<8x512xf32>
    %561 = arith.mulf %558, %560 : vector<8x512xf32>
    %c81 = arith.constant 81 : index
    %562 = memref.load %arg1[%c81] : memref<104xf32, #tpu.memory_space<smem>>
    %563 = vector.broadcast %562 : f32 to vector<8x512xf32>
    %564 = arith.addf %561, %563 : vector<8x512xf32>
    %c82 = arith.constant 82 : index
    %565 = memref.load %arg1[%c82] : memref<104xf32, #tpu.memory_space<smem>>
    %566 = vector.broadcast %565 : f32 to vector<8x512xf32>
    %567 = arith.mulf %501, %566 : vector<8x512xf32>
    %c83 = arith.constant 83 : index
    %568 = memref.load %arg1[%c83] : memref<104xf32, #tpu.memory_space<smem>>
    %569 = vector.broadcast %568 : f32 to vector<8x512xf32>
    %570 = arith.mulf %508, %569 : vector<8x512xf32>
    %571 = arith.addf %567, %570 : vector<8x512xf32>
    %c84 = arith.constant 84 : index
    %572 = memref.load %arg1[%c84] : memref<104xf32, #tpu.memory_space<smem>>
    %573 = vector.broadcast %572 : f32 to vector<8x512xf32>
    %574 = arith.mulf %515, %573 : vector<8x512xf32>
    %575 = arith.addf %571, %574 : vector<8x512xf32>
    %c85 = arith.constant 85 : index
    %576 = memref.load %arg1[%c85] : memref<104xf32, #tpu.memory_space<smem>>
    %577 = vector.broadcast %576 : f32 to vector<8x512xf32>
    %578 = arith.mulf %522, %577 : vector<8x512xf32>
    %579 = arith.addf %575, %578 : vector<8x512xf32>
    %c86 = arith.constant 86 : index
    %580 = memref.load %arg1[%c86] : memref<104xf32, #tpu.memory_space<smem>>
    %581 = vector.broadcast %580 : f32 to vector<8x512xf32>
    %582 = arith.mulf %529, %581 : vector<8x512xf32>
    %583 = arith.addf %579, %582 : vector<8x512xf32>
    %c87 = arith.constant 87 : index
    %584 = memref.load %arg1[%c87] : memref<104xf32, #tpu.memory_space<smem>>
    %585 = vector.broadcast %584 : f32 to vector<8x512xf32>
    %586 = arith.mulf %536, %585 : vector<8x512xf32>
    %587 = arith.addf %583, %586 : vector<8x512xf32>
    %c88 = arith.constant 88 : index
    %588 = memref.load %arg1[%c88] : memref<104xf32, #tpu.memory_space<smem>>
    %589 = vector.broadcast %588 : f32 to vector<8x512xf32>
    %590 = arith.mulf %543, %589 : vector<8x512xf32>
    %591 = arith.addf %587, %590 : vector<8x512xf32>
    %c89 = arith.constant 89 : index
    %592 = memref.load %arg1[%c89] : memref<104xf32, #tpu.memory_space<smem>>
    %593 = vector.broadcast %592 : f32 to vector<8x512xf32>
    %594 = arith.mulf %550, %593 : vector<8x512xf32>
    %595 = arith.addf %591, %594 : vector<8x512xf32>
    %c90 = arith.constant 90 : index
    %596 = memref.load %arg1[%c90] : memref<104xf32, #tpu.memory_space<smem>>
    %597 = vector.broadcast %596 : f32 to vector<8x512xf32>
    %598 = arith.mulf %557, %597 : vector<8x512xf32>
    %599 = arith.addf %595, %598 : vector<8x512xf32>
    %c91 = arith.constant 91 : index
    %600 = memref.load %arg1[%c91] : memref<104xf32, #tpu.memory_space<smem>>
    %601 = vector.broadcast %600 : f32 to vector<8x512xf32>
    %602 = arith.mulf %564, %601 : vector<8x512xf32>
    %603 = arith.addf %599, %602 : vector<8x512xf32>
    %c102 = arith.constant 102 : index
    %604 = memref.load %arg1[%c102] : memref<104xf32, #tpu.memory_space<smem>>
    %605 = vector.broadcast %604 : f32 to vector<8x512xf32>
    %606 = arith.addf %603, %605 : vector<8x512xf32>
    %c92 = arith.constant 92 : index
    %607 = memref.load %arg1[%c92] : memref<104xf32, #tpu.memory_space<smem>>
    %608 = vector.broadcast %607 : f32 to vector<8x512xf32>
    %609 = arith.mulf %501, %608 : vector<8x512xf32>
    %c93 = arith.constant 93 : index
    %610 = memref.load %arg1[%c93] : memref<104xf32, #tpu.memory_space<smem>>
    %611 = vector.broadcast %610 : f32 to vector<8x512xf32>
    %612 = arith.mulf %508, %611 : vector<8x512xf32>
    %613 = arith.addf %609, %612 : vector<8x512xf32>
    %c94 = arith.constant 94 : index
    %614 = memref.load %arg1[%c94] : memref<104xf32, #tpu.memory_space<smem>>
    %615 = vector.broadcast %614 : f32 to vector<8x512xf32>
    %616 = arith.mulf %515, %615 : vector<8x512xf32>
    %617 = arith.addf %613, %616 : vector<8x512xf32>
    %c95 = arith.constant 95 : index
    %618 = memref.load %arg1[%c95] : memref<104xf32, #tpu.memory_space<smem>>
    %619 = vector.broadcast %618 : f32 to vector<8x512xf32>
    %620 = arith.mulf %522, %619 : vector<8x512xf32>
    %621 = arith.addf %617, %620 : vector<8x512xf32>
    %c96 = arith.constant 96 : index
    %622 = memref.load %arg1[%c96] : memref<104xf32, #tpu.memory_space<smem>>
    %623 = vector.broadcast %622 : f32 to vector<8x512xf32>
    %624 = arith.mulf %529, %623 : vector<8x512xf32>
    %625 = arith.addf %621, %624 : vector<8x512xf32>
    %c97 = arith.constant 97 : index
    %626 = memref.load %arg1[%c97] : memref<104xf32, #tpu.memory_space<smem>>
    %627 = vector.broadcast %626 : f32 to vector<8x512xf32>
    %628 = arith.mulf %536, %627 : vector<8x512xf32>
    %629 = arith.addf %625, %628 : vector<8x512xf32>
    %c98 = arith.constant 98 : index
    %630 = memref.load %arg1[%c98] : memref<104xf32, #tpu.memory_space<smem>>
    %631 = vector.broadcast %630 : f32 to vector<8x512xf32>
    %632 = arith.mulf %543, %631 : vector<8x512xf32>
    %633 = arith.addf %629, %632 : vector<8x512xf32>
    %c99 = arith.constant 99 : index
    %634 = memref.load %arg1[%c99] : memref<104xf32, #tpu.memory_space<smem>>
    %635 = vector.broadcast %634 : f32 to vector<8x512xf32>
    %636 = arith.mulf %550, %635 : vector<8x512xf32>
    %637 = arith.addf %633, %636 : vector<8x512xf32>
    %c100 = arith.constant 100 : index
    %638 = memref.load %arg1[%c100] : memref<104xf32, #tpu.memory_space<smem>>
    %639 = vector.broadcast %638 : f32 to vector<8x512xf32>
    %640 = arith.mulf %557, %639 : vector<8x512xf32>
    %641 = arith.addf %637, %640 : vector<8x512xf32>
    %c101 = arith.constant 101 : index
    %642 = memref.load %arg1[%c101] : memref<104xf32, #tpu.memory_space<smem>>
    %643 = vector.broadcast %642 : f32 to vector<8x512xf32>
    %644 = arith.mulf %564, %643 : vector<8x512xf32>
    %645 = arith.addf %641, %644 : vector<8x512xf32>
    %c103 = arith.constant 103 : index
    %646 = memref.load %arg1[%c103] : memref<104xf32, #tpu.memory_space<smem>>
    %647 = vector.broadcast %646 : f32 to vector<8x512xf32>
    %648 = arith.addf %645, %647 : vector<8x512xf32>
    %cst_58 = arith.constant 0.000000e+00 : f32
    %649 = vector.broadcast %cst_58 : f32 to vector<8x512xf32>
    %650 = arith.maximumf %606, %649 : vector<8x512xf32>
    %cst_59 = arith.constant 0.000000e+00 : f32
    %651 = vector.broadcast %cst_59 : f32 to vector<8x512xf32>
    %652 = arith.maximumf %648, %651 : vector<8x512xf32>
    %653 = arith.addf %322, %650 : vector<8x512xf32>
    %c0_60 = arith.constant 0 : index
    %c0_61 = arith.constant 0 : index
    %c0_62 = arith.constant 0 : index
    %654 = vector.load %arg3[%c0_60, %c0_61, %c0_62] : memref<2x8x512xf32, #tpu.memory_space<vmem>>, vector<1x8x512xf32>
    %655 = vector.shape_cast %654 : vector<1x8x512xf32> to vector<8x512xf32>
    %656 = vector.shape_cast %653 : vector<8x512xf32> to vector<1x8x512xf32>
    tpu.vector_store %arg3[%c0_60, %c0_61, %c0_62], %656 {strides = array<i32>} : memref<2x8x512xf32, #tpu.memory_space<vmem>>, vector<1x8x512xf32>,
    %657 = arith.addf %329, %652 : vector<8x512xf32>
    %c1_63 = arith.constant 1 : index
    %c0_64 = arith.constant 0 : index
    %c0_65 = arith.constant 0 : index
    %658 = vector.load %arg3[%c1_63, %c0_64, %c0_65] : memref<2x8x512xf32, #tpu.memory_space<vmem>>, vector<1x8x512xf32>
    %659 = vector.shape_cast %658 : vector<1x8x512xf32> to vector<8x512xf32>
    %660 = vector.shape_cast %657 : vector<8x512xf32> to vector<1x8x512xf32>
    tpu.vector_store %arg3[%c1_63, %c0_64, %c0_65], %660 {strides = array<i32>} : memref<2x8x512xf32, #tpu.memory_space<vmem>>, vector<1x8x512xf32>,
    return
  }
  func.func @transform_0(%arg0: i32) -> i32 {
    %c0_i32 = arith.constant 0 : i32
    %c0_i32_0 = arith.constant 0 : i32
    return %c0_i32 : i32
  }
  func.func @transform_1(%arg0: i32) -> (i32, i32, i32) {
    %c0_i32 = arith.constant 0 : i32
    %c0_i32_0 = arith.constant 0 : i32
    %c0_i32_1 = arith.constant 0 : i32
    return %c0_i32, %c0_i32_0, %arg0 : i32, i32, i32
  }
  func.func @transform_2(%arg0: i32) -> (i32, i32, i32) {
    %c0_i32 = arith.constant 0 : i32
    %c0_i32_0 = arith.constant 0 : i32
    %c0_i32_1 = arith.constant 0 : i32
    return %c0_i32, %c0_i32_0, %arg0 : i32, i32, i32
  }
}

</mosaic_0001>

<llo_original>
// kernel: tpu_custom_call.1
$region0: #{tpu_custom_call.1}
  #allocation0 [shape = 'u32[]', space=smem, size = 0x4, offset = 0x4, fixed_abs, tag = 'smem constant byte address 0x4 - core index']
  #allocation1 [shape = 'u32[144,128]{1,0:T(1,128)}', space=vmem, size = 0x12000, scoped, tag = 'internal scratch']
  %s0 = inlined_call_operand.hbm [shape: f32[104], index: 0, kind: input, shape index: {}]
  %s1 = inlined_call_operand.hbm [shape: f32[2,8,1024], index: 1, kind: input, shape index: {}]
  %s2 = inlined_call_operand.hbm [shape: f32[2,8,1024], index: 2, kind: output, shape index: {}]
  %s3 = sld [smem:[#allocation0]]
  $region49: #{tpu_custom_call.1} parent=0
    _
  %s5 = ssub.s32 1, %s3
  %s6 = scalar_select 0, %s5, %s3
  $region1: #{tpu_custom_call.1} parent=0
    #allocation2 [shape = 'u8[512]{0}', space=smem, size = 0x200, scoped, tag = 'input window, operand 0, single buffered']
    #allocation3 [shape = 's32[2]{0}', space=sflag, size = 0x8, scoped, tag = 'scoped memory for tpu_custom_call.1']
    #allocation4 [shape = 's32[2]{0}', space=sflag, size = 0x8, scoped, tag = 'scoped memory for tpu_custom_call.1']
    #allocation5 [shape = 's32[2]{0}', space=sflag, size = 0x8, scoped, tag = 'scoped memory for tpu_custom_call.1']
    #allocation6 [shape = 'u8[65536]{0}', space=vmem, size = 0x10000, scoped, tag = 'input window, operand 1']
    #allocation7 [shape = 'u8[65536]{0}', space=vmem, size = 0x10000, scoped, tag = 'output window, operand 0']
    %7 = vsyncpa [#allocation5], 0
    %8 = vsyncpa [#allocation3], 0
    %s9 = scalar_lea.sflag [#allocation3], 1
    %10 = vsyncpa %s9, 0
    %11 = vsyncpa [#allocation4], 0
    %s12 = scalar_lea.sflag [#allocation4], 1
    %13 = vsyncpa %s12, 0
    loop: start=0, step=1, limit=4
    $region2: #{tpu_custom_call.1} parent=1 // loop_pre_header
      _
    $region3: #{tpu_custom_call.1} parent=1 // loop_header
      %s15 = sphi 0, %s19
      %p16 = scmp.ge.s32.totalorder %s15, 4
      %s23 = sphi 0, %s23
      %s25 = sphi 0, %s23
      %s26 = sphi 0, %s25
      %s40 = sphi 0, %s26
      %s46 = sphi 0, %s48
      %s49 = sphi 0, %s46
      %s50 = sphi 0, %s49
      %s66 = sphi 0, %s50
      %s72 = sphi 0, %s74
      %s75 = sphi 0, %s72
      %s76 = sphi 0, %s75
      %s92 = sphi 0, %s76
    $region4: #{tpu_custom_call.1} parent=1 // loop_header_branch
      %18 = sbr.rel (%p16) target = $region8
    $region5: #{tpu_custom_call.1} parent=1 // loop_body
      %s20 = ssub.s32 %s15, 1
      %s21 = ssub.s32 %s15, 2
      %s22 = sadd.s32 %s15, 1
      %s24 = sadd.s32 %s23, 1
      %p27 = scmp.eq.s32.totalorder %s15, 1
      %p28 = scmp.ne.s32.totalorder %s23, %s25
      %p29 = scmp.eq.s32.totalorder %s15, 0
      %p30 = por %p28, %p29
      %p31 = scmp.ne.s32.totalorder %s23, %s25
      %p32 = scmp.eq.s32.totalorder %s20, 1
      %p33 = por %p31, %p32
      %p34 = scmp.ne.s32.totalorder %s25, %s26
      %p35 = scmp.eq.s32.totalorder %s20, 0
      %p36 = por %p34, %p35
      %p37 = scmp.ne.s32.totalorder %s25, %s26
      %p38 = scmp.eq.s32.totalorder %s21, 1
      %p39 = por %p37, %p38
      %p41 = scmp.ne.s32.totalorder %s26, %s40
      %p42 = scmp.eq.s32.totalorder %s21, 0
      %p43 = por %p41, %p42
      %s44 = ssub.s32 %s15, %s22
      %p45 = scmp.eq.s32.totalorder %s44, 0
      %s47 = sadd.s32 %s46, 1
      %s48 = scalar_select %p45, %s46, %s47
      %p51 = pneg %p45
      %p52 = scmp.eq.s32.totalorder %s15, 1
      %p53 = por %p51, %p52
      %p54 = scmp.ne.s32.totalorder %s46, %s49
      %p55 = scmp.eq.s32.totalorder %s15, 0
      %p56 = por %p54, %p55
      %p57 = scmp.ne.s32.totalorder %s46, %s49
      %p58 = scmp.eq.s32.totalorder %s20, 1
      %p59 = por %p57, %p58
      %p60 = scmp.ne.s32.totalorder %s49, %s50
      %p61 = scmp.eq.s32.totalorder %s20, 0
      %p62 = por %p60, %p61
      %p63 = scmp.ne.s32.totalorder %s49, %s50
      %p64 = scmp.eq.s32.totalorder %s21, 1
      %p65 = por %p63, %p64
      %p67 = scmp.ne.s32.totalorder %s50, %s66
      %p68 = scmp.eq.s32.totalorder %s21, 0
      %p69 = por %p67, %p68
      %s70 = ssub.s32 %s15, %s22
      %p71 = scmp.eq.s32.totalorder %s70, 0
      %s73 = sadd.s32 %s72, 1
      %s74 = scalar_select %p71, %s72, %s73
      %p77 = pneg %p71
      %p78 = scmp.eq.s32.totalorder %s15, 1
      %p79 = por %p77, %p78
      %p80 = scmp.ne.s32.totalorder %s72, %s75
      %p81 = scmp.eq.s32.totalorder %s15, 0
      %p82 = por %p80, %p81
      %p83 = scmp.ne.s32.totalorder %s72, %s75
      %p84 = scmp.eq.s32.totalorder %s20, 1
      %p85 = por %p83, %p84
      %p86 = scmp.ne.s32.totalorder %s75, %s76
      %p87 = scmp.eq.s32.totalorder %s20, 0
      %p88 = por %p86, %p87
      %p89 = scmp.ne.s32.totalorder %s75, %s76
      %p90 = scmp.eq.s32.totalorder %s21, 1
      %p91 = por %p89, %p90
      %p93 = scmp.ne.s32.totalorder %s76, %s92
      %p94 = scmp.eq.s32.totalorder %s21, 0
      %p95 = por %p93, %p94
      %p96 = scmp.le.s32.totalorder 1, %s15
      %p97 = scmp.lt.s32.totalorder %s15, 3
      %p98 = pnand %p96, %p97
      %p99 = pneg %p98
      // Predicated region
      $region9: #{tpu_custom_call.1} parent=5 // pred_check
        _
      $region10: #{tpu_custom_call.1} parent=5 // pred_check_branch
        %101 = sbr.rel (%p98) target = $region12
      $region11: #{tpu_custom_call.1} parent=5 // pred_region
        %s102 = ssub.s32 %s15, 1
        // Predicated region
        $region13: #{tpu_custom_call.1} parent=11 // pred_check
          %p103 = pneg %p36
        $region14: #{tpu_custom_call.1} parent=11 // pred_check_branch
          %105 = sbr.rel (%p103) target = $region16
        $region15: #{tpu_custom_call.1} parent=11 // pred_region
          %s107 = ssub.s32 16, 16
          %108 = vsyncadd [#allocation5], %s107
          %111 = dma.hbm_to_smem %s0, 16, [#allocation2], [#allocation5]
        $region16: #{tpu_custom_call.1} parent=11 // pred_fallthru
          _
      $region12: #{tpu_custom_call.1} parent=5 // pred_fallthru
        _
      %p112 = scmp.lt.s32.totalorder %s15, 2
      // Predicated region
      $region17: #{tpu_custom_call.1} parent=5 // pred_check
        %p113 = pneg %p112
      $region18: #{tpu_custom_call.1} parent=5 // pred_check_branch
        %115 = sbr.rel (%p113) target = $region20
      $region19: #{tpu_custom_call.1} parent=5 // pred_region
        // Predicated region
        $region21: #{tpu_custom_call.1} parent=19 // pred_check
          %p116 = pneg %p56
        $region22: #{tpu_custom_call.1} parent=19 // pred_check_branch
          %118 = sbr.rel (%p116) target = $region24
        $region23: #{tpu_custom_call.1} parent=19 // pred_region
          %s119 = sand.u32 %s46, 1
          %s120 = scalar_lea.sflag [#allocation3], %s119
          %s121 = sand.u32 %s46, 1
          %s122 = smul.addr %s121, 64
          %s123 = scalar_lea.vmem [#allocation6], %s122
          %s124 = smul.u32 4, %s15
          %s126 = ssub.s32 1024, 1024
          %127 = vsyncadd %s120, %s126
          %s128 = smul.addr %s124, 128
          %s129 = scalar_lea.hbm %s1, %s128
          %s130 = sshll.u32 %s123, 4
          %s131 = int_to_ptr.vmem [resolvable:$true] %s130
          %136 = dma.hbm_to_vmem [thread:$0]  %s129, 1024, %s131, %s120, 1024, 512, 32
        $region24: #{tpu_custom_call.1} parent=19 // pred_fallthru
          _
      $region20: #{tpu_custom_call.1} parent=5 // pred_fallthru
        _
      %p137 = scmp.le.s32.totalorder 1, %s15
      %p138 = scmp.lt.s32.totalorder %s15, 3
      %p139 = pnand %p137, %p138
      %p140 = pneg %p139
      // Predicated region
      $region25: #{tpu_custom_call.1} parent=5 // pred_check
        _
      $region26: #{tpu_custom_call.1} parent=5 // pred_check_branch
        %142 = sbr.rel (%p139) target = $region28
      $region27: #{tpu_custom_call.1} parent=5 // pred_region
        %s143 = ssub.s32 %s15, 1
        // Predicated region
        $region29: #{tpu_custom_call.1} parent=27 // pred_check
          %p144 = pneg %p36
        $region30: #{tpu_custom_call.1} parent=27 // pred_check_branch
          %146 = sbr.rel (%p144) target = $region32
        $region31: #{tpu_custom_call.1} parent=27 // pred_region
          %147 = dma.done [#allocation5], 16
        $region32: #{tpu_custom_call.1} parent=27 // pred_fallthru
          _
        %s148 = sand.u32 %s49, 1
        %s149 = scalar_lea.sflag [#allocation3], %s148
        %s150 = sand.u32 %s49, 1
        %s151 = smul.addr %s150, 64
        %s152 = scalar_lea.vmem [#allocation6], %s151
        // Predicated region
        $region33: #{tpu_custom_call.1} parent=27 // pred_check
          %p153 = pneg %p62
        $region34: #{tpu_custom_call.1} parent=27 // pred_check_branch
          %155 = sbr.rel (%p153) target = $region36
        $region35: #{tpu_custom_call.1} parent=27 // pred_region
          %156 = dma.done %s149, 1024
        $region36: #{tpu_custom_call.1} parent=27 // pred_fallthru
          _
        %157 = sfence
        %p158 = pneg %p36
        %p159 = pneg %p33
        %s160 = sand.u32 %s49, 1
        %s161 = scalar_lea.sflag [#allocation3], %s160
        %s162 = sand.u32 %s49, 1
        %s163 = smul.addr %s162, 64
        %s164 = scalar_lea.vmem [#allocation6], %s163
        %p165 = pneg %p62
        %p166 = pneg %p59
        %p167 = pneg %p88
        %p168 = pneg %p85
        %s169 = sand.u32 %s75, 1
        %s170 = scalar_lea.sflag [#allocation4], %s169
        %s171 = sand.u32 %s75, 1
        %s172 = smul.addr %s171, 64
        %s173 = scalar_lea.vmem [#allocation7], %s172
        %s174 = smul.u32 4, %s20
        %s175 = smul.u32 4, %s20
        %v176 = vld [vmem:[%s152] sm:$0xff]
        %v177 = vld [vmem:[%s152 + $0x8] sm:$0xff]
        %v178 = vld [vmem:[%s152 + $0x10] sm:$0xff]
        %v179 = vld [vmem:[%s152 + $0x18] sm:$0xff]
        %s180 = scalar_lea.vmem %s152, 32 [#allocation6]
        %v181 = vld [vmem:[%s180] sm:$0xff]
        %v182 = vld [vmem:[%s180 + $0x8] sm:$0xff]
        %v183 = vld [vmem:[%s180 + $0x10] sm:$0xff]
        %v184 = vld [vmem:[%s180 + $0x18] sm:$0xff]
        %v185 = vadd.f32 %v176, %v181
        %v186 = vadd.f32 %v177, %v182
        %v187 = vadd.f32 %v178, %v183
        %v188 = vadd.f32 %v179, %v184
        %v189 = vmul.f32 %v185, 0.5
        %v190 = vmul.f32 %v186, 0.5
        %v191 = vmul.f32 %v187, 0.5
        %v192 = vmul.f32 %v188, 0.5
        %v193 = vsub.f32 %v176, %v189
        %v194 = vsub.f32 %v177, %v190
        %v195 = vsub.f32 %v178, %v191
        %v196 = vsub.f32 %v179, %v192
        %v197 = vsub.f32 %v181, %v189
        %v198 = vsub.f32 %v182, %v190
        %v199 = vsub.f32 %v183, %v191
        %v200 = vsub.f32 %v184, %v192
        %v201 = vmul.f32 %v193, %v193
        %v202 = vmul.f32 %v194, %v194
        %v203 = vmul.f32 %v195, %v195
        %v204 = vmul.f32 %v196, %v196
        %v205 = vmul.f32 %v197, %v197
        %v206 = vmul.f32 %v198, %v198
        %v207 = vmul.f32 %v199, %v199
        %v208 = vmul.f32 %v200, %v200
        %v209 = vadd.f32 %v201, %v205
        %v210 = vadd.f32 %v202, %v206
        %v211 = vadd.f32 %v203, %v207
        %v212 = vadd.f32 %v204, %v208
        %v213 = vmul.f32 %v209, 0.5
        %v214 = vmul.f32 %v210, 0.5
        %v215 = vmul.f32 %v211, 0.5
        %v216 = vmul.f32 %v212, 0.5
        %v217 = vadd.f32 %v213, 1e-05
        %v218 = vadd.f32 %v214, 1e-05
        %v219 = vadd.f32 %v215, 1e-05
        %v220 = vadd.f32 %v216, 1e-05
        %v221 = vrsqrt.pop %v217
        %v222 = vrsqrt.pop %v218
        %v223 = vrsqrt.pop %v219
        %v224 = vrsqrt.pop %v220
        %v225 = vmul.f32 %v193, %v221
        %v226 = vmul.f32 %v194, %v222
        %v227 = vmul.f32 %v195, %v223
        %v228 = vmul.f32 %v196, %v224
        %s229 = sld [smem:[#allocation2]]
        %v230 = vstv %s229
        %v231 = vmul.f32 %v225, %v230
        %v232 = vmul.f32 %v226, %v230
        %v233 = vmul.f32 %v227, %v230
        %v234 = vmul.f32 %v228, %v230
        %s235 = sld [smem:[#allocation2 + $0x2]]
        %v236 = vstv %s235
        %v237 = vadd.f32 %v231, %v236
        %v238 = vadd.f32 %v232, %v236
        %v239 = vadd.f32 %v233, %v236
        %v240 = vadd.f32 %v234, %v236
        %v241 = vmul.f32 %v197, %v221
        %v242 = vmul.f32 %v198, %v222
        %v243 = vmul.f32 %v199, %v223
        %v244 = vmul.f32 %v200, %v224
        %s245 = sld [smem:[#allocation2 + $0x1]]
        %v246 = vstv %s245
        %v247 = vmul.f32 %v241, %v246
        %v248 = vmul.f32 %v242, %v246
        %v249 = vmul.f32 %v243, %v246
        %v250 = vmul.f32 %v244, %v246
        %s251 = sld [smem:[#allocation2 + $0x3]]
        %v252 = vstv %s251
        %v253 = vadd.f32 %v247, %v252
        %v254 = vadd.f32 %v248, %v252
        %v255 = vadd.f32 %v249, %v252
        %v256 = vadd.f32 %v250, %v252
        %s257 = sld [smem:[#allocation2 + $0x4]]
        %v258 = vstv %s257
        %v259 = vmul.f32 %v237, %v258
        %v260 = vmul.f32 %v238, %v258
        %v261 = vmul.f32 %v239, %v258
        %v262 = vmul.f32 %v240, %v258
        %s263 = sld [smem:[#allocation2 + $0x5]]
        %v264 = vstv %s263
        %v265 = vmul.f32 %v253, %v264
        %v266 = vmul.f32 %v254, %v264
        %v267 = vmul.f32 %v255, %v264
        %v268 = vmul.f32 %v256, %v264
        %v269 = vadd.f32 %v259, %v265
        %v270 = vadd.f32 %v260, %v266
        %v271 = vadd.f32 %v261, %v267
        %v272 = vadd.f32 %v262, %v268
        %s273 = sld [smem:[#allocation2 + $0x10]]
        %v274 = vstv %s273
        %v275 = vadd.f32 %v269, %v274
        %v276 = vadd.f32 %v270, %v274
        %v277 = vadd.f32 %v271, %v274
        %v278 = vadd.f32 %v272, %v274
        %s279 = sld [smem:[#allocation2 + $0x6]]
        %v280 = vstv %s279
        %v281 = vmul.f32 %v237, %v280
        %v282 = vmul.f32 %v238, %v280
        %v283 = vmul.f32 %v239, %v280
        %v284 = vmul.f32 %v240, %v280
        %s285 = sld [smem:[#allocation2 + $0x7]]
        %v286 = vstv %s285
        %v287 = vmul.f32 %v253, %v286
        %v288 = vmul.f32 %v254, %v286
        %v289 = vmul.f32 %v255, %v286
        %v290 = vmul.f32 %v256, %v286
        %v291 = vadd.f32 %v281, %v287
        %v292 = vadd.f32 %v282, %v288
        %v293 = vadd.f32 %v283, %v289
        %v294 = vadd.f32 %v284, %v290
        %s295 = sld [smem:[#allocation2 + $0x11]]
        %v296 = vstv %s295
        %v297 = vadd.f32 %v291, %v296
        %v298 = vadd.f32 %v292, %v296
        %v299 = vadd.f32 %v293, %v296
        %v300 = vadd.f32 %v294, %v296
        %s301 = sld [smem:[#allocation2 + $0x8]]
        %v302 = vstv %s301
        %v303 = vmul.f32 %v237, %v302
        %v304 = vmul.f32 %v238, %v302
        %v305 = vmul.f32 %v239, %v302
        %v306 = vmul.f32 %v240, %v302
        %s307 = sld [smem:[#allocation2 + $0x9]]
        %v308 = vstv %s307
        %v309 = vmul.f32 %v253, %v308
        %v310 = vmul.f32 %v254, %v308
        %v311 = vmul.f32 %v255, %v308
        %v312 = vmul.f32 %v256, %v308
        %v313 = vadd.f32 %v303, %v309
        %v314 = vadd.f32 %v304, %v310
        %v315 = vadd.f32 %v305, %v311
        %v316 = vadd.f32 %v306, %v312
        %s317 = sld [smem:[#allocation2 + $0x12]]
        %v318 = vstv %s317
        %v319 = vadd.f32 %v313, %v318
        %v320 = vadd.f32 %v314, %v318
        %v321 = vadd.f32 %v315, %v318
        %v322 = vadd.f32 %v316, %v318
        %s323 = sld [smem:[#allocation2 + $0xa]]
        %v324 = vstv %s323
        %v325 = vmul.f32 %v237, %v324
        %v326 = vmul.f32 %v238, %v324
        %v327 = vmul.f32 %v239, %v324
        %v328 = vmul.f32 %v240, %v324
        %s329 = sld [smem:[#allocation2 + $0xb]]
        %v330 = vstv %s329
        %v331 = vmul.f32 %v253, %v330
        %v332 = vmul.f32 %v254, %v330
        %v333 = vmul.f32 %v255, %v330
        %v334 = vmul.f32 %v256, %v330
        %v335 = vadd.f32 %v325, %v331
        %v336 = vadd.f32 %v326, %v332
        %v337 = vadd.f32 %v327, %v333
        %v338 = vadd.f32 %v328, %v334
        %s339 = sld [smem:[#allocation2 + $0x13]]
        %v340 = vstv %s339
        %v341 = vadd.f32 %v335, %v340
        %v342 = vadd.f32 %v336, %v340
        %v343 = vadd.f32 %v337, %v340
        %v344 = vadd.f32 %v338, %v340
        %s345 = sld [smem:[#allocation2 + $0xc]]
        %v346 = vstv %s345
        %v347 = vmul.f32 %v237, %v346
        %v348 = vmul.f32 %v238, %v346
        %v349 = vmul.f32 %v239, %v346
        %v350 = vmul.f32 %v240, %v346
        %s351 = sld [smem:[#allocation2 + $0xd]]
        %v352 = vstv %s351
        %v353 = vmul.f32 %v253, %v352
        %v354 = vmul.f32 %v254, %v352
        %v355 = vmul.f32 %v255, %v352
        %v356 = vmul.f32 %v256, %v352
        %v357 = vadd.f32 %v347, %v353
        %v358 = vadd.f32 %v348, %v354
        %v359 = vadd.f32 %v349, %v355
        %v360 = vadd.f32 %v350, %v356
        %s361 = sld [smem:[#allocation2 + $0x14]]
        %v362 = vstv %s361
        %v363 = vadd.f32 %v357, %v362
        %v364 = vadd.f32 %v358, %v362
        %v365 = vadd.f32 %v359, %v362
        %v366 = vadd.f32 %v360, %v362
        %s367 = sld [smem:[#allocation2 + $0xe]]
        %v368 = vstv %s367
        %v369 = vmul.f32 %v237, %v368
        %v370 = vmul.f32 %v238, %v368
        %v371 = vmul.f32 %v239, %v368
        %v372 = vmul.f32 %v240, %v368
        %s373 = sld [smem:[#allocation2 + $0xf]]
        %v374 = vstv %s373
        %v375 = vmul.f32 %v253, %v374
        %v376 = vmul.f32 %v254, %v374
        %v377 = vmul.f32 %v255, %v374
        %v378 = vmul.f32 %v256, %v374
        %v379 = vadd.f32 %v369, %v375
        %v380 = vadd.f32 %v370, %v376
        %v381 = vadd.f32 %v371, %v377
        %v382 = vadd.f32 %v372, %v378
        %s383 = sld [smem:[#allocation2 + $0x15]]
        %v384 = vstv %s383
        %v385 = vadd.f32 %v379, %v384
        %v386 = vadd.f32 %v380, %v384
        %v387 = vadd.f32 %v381, %v384
        %v388 = vadd.f32 %v382, %v384
        %v389 = vmul.f32 %v275, 0.70710677
        %v390 = vmul.f32 %v276, 0.70710677
        %v391 = vmul.f32 %v277, 0.70710677
        %v392 = vmul.f32 %v278, 0.70710677
        %v393 = vmul.f32 %v297, 0.70710677
        %v394 = vmul.f32 %v298, 0.70710677
        %v395 = vmul.f32 %v299, 0.70710677
        %v396 = vmul.f32 %v300, 0.70710677
        %v397 = vlaneseq
        %v398 = vshrl.u32 %v397, 7
        %v399 = vsub.s32 0, %v398
        %v400 = vrot.slane %v389, %v399
        %v401 = vlaneseq
        %v402 = vshrl.u32 %v401, 7
        %v403 = vsub.s32 0, %v402
        %v404 = vrot.slane %v390, %v403
        %v405 = vlaneseq
        %v406 = vshrl.u32 %v405, 7
        %v407 = vsub.s32 0, %v406
        %v408 = vrot.slane %v391, %v407
        %v409 = vlaneseq
        %v410 = vshrl.u32 %v409, 7
        %v411 = vsub.s32 0, %v410
        %v412 = vrot.slane %v392, %v411
        %v413 = vmul.f32 %v400, %v319
        %v414 = vmul.f32 %v404, %v320
        %v415 = vmul.f32 %v408, %v321
        %v416 = vmul.f32 %v412, %v322
        %v417 = vlaneseq
        %v418 = vshrl.u32 %v417, 7
        %v419 = vsub.s32 0, %v418
        %v420 = vrot.slane %v393, %v419
        %v421 = vlaneseq
        %v422 = vshrl.u32 %v421, 7
        %v423 = vsub.s32 0, %v422
        %v424 = vrot.slane %v394, %v423
        %v425 = vlaneseq
        %v426 = vshrl.u32 %v425, 7
        %v427 = vsub.s32 0, %v426
        %v428 = vrot.slane %v395, %v427
        %v429 = vlaneseq
        %v430 = vshrl.u32 %v429, 7
        %v431 = vsub.s32 0, %v430
        %v432 = vrot.slane %v396, %v431
        %v433 = vmul.f32 %v420, %v341
        %v434 = vmul.f32 %v424, %v342
        %v435 = vmul.f32 %v428, %v343
        %v436 = vmul.f32 %v432, %v344
        %v437 = vadd.f32 %v413, %v433
        %v438 = vadd.f32 %v414, %v434
        %v439 = vadd.f32 %v415, %v435
        %v440 = vadd.f32 %v416, %v436
        %v441 = vrot.slane %v437, 4
        %v442 = vmax.f32 %v437, %v441
        %v443 = vrot.slane %v442, 2
        %v444 = vmax.f32 %v442, %v443
        %v445 = vrot.slane %v444, 1
        %v446 = vmax.f32 %v444, %v445
        %v447 = vrot.slane %v438, 4
        %v448 = vmax.f32 %v438, %v447
        %v449 = vrot.slane %v448, 2
        %v450 = vmax.f32 %v448, %v449
        %v451 = vrot.slane %v450, 1
        %v452 = vmax.f32 %v450, %v451
        %v453 = vrot.slane %v439, 4
        %v454 = vmax.f32 %v439, %v453
        %v455 = vrot.slane %v454, 2
        %v456 = vmax.f32 %v454, %v455
        %v457 = vrot.slane %v456, 1
        %v458 = vmax.f32 %v456, %v457
        %v459 = vrot.slane %v440, 4
        %v460 = vmax.f32 %v440, %v459
        %v461 = vrot.slane %v460, 2
        %v462 = vmax.f32 %v460, %v461
        %v463 = vrot.slane %v462, 1
        %v464 = vmax.f32 %v462, %v463
        %v465 = vsub.f32 %v437, %v446
        %v466 = vsub.f32 %v438, %v452
        %v467 = vsub.f32 %v439, %v458
        %v468 = vsub.f32 %v440, %v464
        %v469 = vmul.f32 %v465, 1.442695
        %v470 = vpow.pop %v469
        %v471 = vmul.f32 %v466, 1.442695
        %v472 = vpow.pop %v471
        %v473 = vmul.f32 %v467, 1.442695
        %v474 = vpow.pop %v473
        %v475 = vmul.f32 %v468, 1.442695
        %v476 = vpow.pop %v475
        %v477 = vrot.slane %v470, 4
        %v478 = vadd.f32 %v470, %v477
        %v479 = vrot.slane %v478, 2
        %v480 = vadd.f32 %v478, %v479
        %v481 = vrot.slane %v480, 1
        %v482 = vadd.f32 %v480, %v481
        %v483 = vrot.slane %v472, 4
        %v484 = vadd.f32 %v472, %v483
        %v485 = vrot.slane %v484, 2
        %v486 = vadd.f32 %v484, %v485
        %v487 = vrot.slane %v486, 1
        %v488 = vadd.f32 %v486, %v487
        %v489 = vrot.slane %v474, 4
        %v490 = vadd.f32 %v474, %v489
        %v491 = vrot.slane %v490, 2
        %v492 = vadd.f32 %v490, %v491
        %v493 = vrot.slane %v492, 1
        %v494 = vadd.f32 %v492, %v493
        %v495 = vrot.slane %v476, 4
        %v496 = vadd.f32 %v476, %v495
        %v497 = vrot.slane %v496, 2
        %v498 = vadd.f32 %v496, %v497
        %v499 = vrot.slane %v498, 1
        %v500 = vadd.f32 %v498, %v499
        %v501 = vrcp.pop %v482
        %v502 = vrcp.pop %v488
        %v503 = vrcp.pop %v494
        %v504 = vrcp.pop %v500
        %v505 = vmul.f32 %v470, %v501
        %v506 = vmul.f32 %v472, %v502
        %v507 = vmul.f32 %v474, %v503
        %v508 = vmul.f32 %v476, %v504
        %v509 = vmul.f32 %v505, %v363
        %v510 = vmul.f32 %v506, %v364
        %v511 = vmul.f32 %v507, %v365
        %v512 = vmul.f32 %v508, %v366
        %v513 = vrot.slane %v509, 4
        %v514 = vadd.f32 %v509, %v513
        %v515 = vrot.slane %v514, 2
        %v516 = vadd.f32 %v514, %v515
        %v517 = vrot.slane %v516, 1
        %v518 = vadd.f32 %v516, %v517
        %v519 = vrot.slane %v510, 4
        %v520 = vadd.f32 %v510, %v519
        %v521 = vrot.slane %v520, 2
        %v522 = vadd.f32 %v520, %v521
        %v523 = vrot.slane %v522, 1
        %v524 = vadd.f32 %v522, %v523
        %v525 = vrot.slane %v511, 4
        %v526 = vadd.f32 %v511, %v525
        %v527 = vrot.slane %v526, 2
        %v528 = vadd.f32 %v526, %v527
        %v529 = vrot.slane %v528, 1
        %v530 = vadd.f32 %v528, %v529
        %v531 = vrot.slane %v512, 4
        %v532 = vadd.f32 %v512, %v531
        %v533 = vrot.slane %v532, 2
        %v534 = vadd.f32 %v532, %v533
        %v535 = vrot.slane %v534, 1
        %v536 = vadd.f32 %v534, %v535
        %v537 = vmul.f32 %v505, %v385
        %v538 = vmul.f32 %v506, %v386
        %v539 = vmul.f32 %v507, %v387
        %v540 = vmul.f32 %v508, %v388
        %v541 = vrot.slane %v537, 4
        %v542 = vadd.f32 %v537, %v541
        %v543 = vrot.slane %v542, 2
        %v544 = vadd.f32 %v542, %v543
        %v545 = vrot.slane %v544, 1
        %v546 = vadd.f32 %v544, %v545
        %v547 = vrot.slane %v538, 4
        %v548 = vadd.f32 %v538, %v547
        %v549 = vrot.slane %v548, 2
        %v550 = vadd.f32 %v548, %v549
        %v551 = vrot.slane %v550, 1
        %v552 = vadd.f32 %v550, %v551
        %v553 = vrot.slane %v539, 4
        %v554 = vadd.f32 %v539, %v553
        %v555 = vrot.slane %v554, 2
        %v556 = vadd.f32 %v554, %v555
        %v557 = vrot.slane %v556, 1
        %v558 = vadd.f32 %v556, %v557
        %v559 = vrot.slane %v540, 4
        %v560 = vadd.f32 %v540, %v559
        %v561 = vrot.slane %v560, 2
        %v562 = vadd.f32 %v560, %v561
        %v563 = vrot.slane %v562, 1
        %v564 = vadd.f32 %v562, %v563
        %v565 = vlaneseq
        %v566 = vshrl.u32 %v565, 7
        %v567 = vsub.s32 1, %v566
        %v568 = vrot.slane %v389, %v567
        %v569 = vlaneseq
        %v570 = vshrl.u32 %v569, 7
        %v571 = vsub.s32 1, %v570
        %v572 = vrot.slane %v390, %v571
        %v573 = vlaneseq
        %v574 = vshrl.u32 %v573, 7
        %v575 = vsub.s32 1, %v574
        %v576 = vrot.slane %v391, %v575
        %v577 = vlaneseq
        %v578 = vshrl.u32 %v577, 7
        %v579 = vsub.s32 1, %v578
        %v580 = vrot.slane %v392, %v579
        %v581 = vmul.f32 %v568, %v319
        %v582 = vmul.f32 %v572, %v320
        %v583 = vmul.f32 %v576, %v321
        %v584 = vmul.f32 %v580, %v322
        %v585 = vlaneseq
        %v586 = vshrl.u32 %v585, 7
        %v587 = vsub.s32 1, %v586
        %v588 = vrot.slane %v393, %v587
        %v589 = vlaneseq
        %v590 = vshrl.u32 %v589, 7
        %v591 = vsub.s32 1, %v590
        %v592 = vrot.slane %v394, %v591
        %v593 = vlaneseq
        %v594 = vshrl.u32 %v593, 7
        %v595 = vsub.s32 1, %v594
        %v596 = vrot.slane %v395, %v595
        %v597 = vlaneseq
        %v598 = vshrl.u32 %v597, 7
        %v599 = vsub.s32 1, %v598
        %v600 = vrot.slane %v396, %v599
        %v601 = vmul.f32 %v588, %v341
        %v602 = vmul.f32 %v592, %v342
        %v603 = vmul.f32 %v596, %v343
        %v604 = vmul.f32 %v600, %v344
        %v605 = vadd.f32 %v581, %v601
        %v606 = vadd.f32 %v582, %v602
        %v607 = vadd.f32 %v583, %v603
        %v608 = vadd.f32 %v584, %v604
        %v609 = vrot.slane %v605, 4
        %v610 = vmax.f32 %v605, %v609
        %v611 = vrot.slane %v610, 2
        %v612 = vmax.f32 %v610, %v611
        %v613 = vrot.slane %v612, 1
        %v614 = vmax.f32 %v612, %v613
        %v615 = vrot.slane %v606, 4
        %v616 = vmax.f32 %v606, %v615
        %v617 = vrot.slane %v616, 2
        %v618 = vmax.f32 %v616, %v617
        %v619 = vrot.slane %v618, 1
        %v620 = vmax.f32 %v618, %v619
        %v621 = vrot.slane %v607, 4
        %v622 = vmax.f32 %v607, %v621
        %v623 = vrot.slane %v622, 2
        %v624 = vmax.f32 %v622, %v623
        %v625 = vrot.slane %v624, 1
        %v626 = vmax.f32 %v624, %v625
        %v627 = vrot.slane %v608, 4
        %v628 = vmax.f32 %v608, %v627
        %v629 = vrot.slane %v628, 2
        %v630 = vmax.f32 %v628, %v629
        %v631 = vrot.slane %v630, 1
        %v632 = vmax.f32 %v630, %v631
        %v633 = vsub.f32 %v605, %v614
        %v634 = vsub.f32 %v606, %v620
        %v635 = vsub.f32 %v607, %v626
        %v636 = vsub.f32 %v608, %v632
        %v637 = vmul.f32 %v633, 1.442695
        %v638 = vpow.pop %v637
        %v639 = vmul.f32 %v634, 1.442695
        %v640 = vpow.pop %v639
        %v641 = vmul.f32 %v635, 1.442695
        %v642 = vpow.pop %v641
        %v643 = vmul.f32 %v636, 1.442695
        %v644 = vpow.pop %v643
        %v645 = vrot.slane %v638, 4
        %v646 = vadd.f32 %v638, %v645
        %v647 = vrot.slane %v646, 2
        %v648 = vadd.f32 %v646, %v647
        %v649 = vrot.slane %v648, 1
        %v650 = vadd.f32 %v648, %v649
        %v651 = vrot.slane %v640, 4
        %v652 = vadd.f32 %v640, %v651
        %v653 = vrot.slane %v652, 2
        %v654 = vadd.f32 %v652, %v653
        %v655 = vrot.slane %v654, 1
        %v656 = vadd.f32 %v654, %v655
        %v657 = vrot.slane %v642, 4
        %v658 = vadd.f32 %v642, %v657
        %v659 = vrot.slane %v658, 2
        %v660 = vadd.f32 %v658, %v659
        %v661 = vrot.slane %v660, 1
        %v662 = vadd.f32 %v660, %v661
        %v663 = vrot.slane %v644, 4
        %v664 = vadd.f32 %v644, %v663
        %v665 = vrot.slane %v664, 2
        %v666 = vadd.f32 %v664, %v665
        %v667 = vrot.slane %v666, 1
        %v668 = vadd.f32 %v666, %v667
        %v669 = vrcp.pop %v650
        %v670 = vrcp.pop %v656
        %v671 = vrcp.pop %v662
        %v672 = vrcp.pop %v668
        %v673 = vmul.f32 %v638, %v669
        %v674 = vmul.f32 %v640, %v670
        %v675 = vmul.f32 %v642, %v671
        %v676 = vmul.f32 %v644, %v672
        %v677 = vmul.f32 %v673, %v363
        %v678 = vmul.f32 %v674, %v364
        %v679 = vmul.f32 %v675, %v365
        %v680 = vmul.f32 %v676, %v366
        %v681 = vrot.slane %v677, 4
        %v682 = vadd.f32 %v677, %v681
        %v683 = vrot.slane %v682, 2
        %v684 = vadd.f32 %v682, %v683
        %v685 = vrot.slane %v684, 1
        %v686 = vadd.f32 %v684, %v685
        %v687 = vrot.slane %v678, 4
        %v688 = vadd.f32 %v678, %v687
        %v689 = vrot.slane %v688, 2
        %v690 = vadd.f32 %v688, %v689
        %v691 = vrot.slane %v690, 1
        %v692 = vadd.f32 %v690, %v691
        %v693 = vrot.slane %v679, 4
        %v694 = vadd.f32 %v679, %v693
        %v695 = vrot.slane %v694, 2
        %v696 = vadd.f32 %v694, %v695
        %v697 = vrot.slane %v696, 1
        %v698 = vadd.f32 %v696, %v697
        %v699 = vrot.slane %v680, 4
        %v700 = vadd.f32 %v680, %v699
        %v701 = vrot.slane %v700, 2
        %v702 = vadd.f32 %v700, %v701
        %v703 = vrot.slane %v702, 1
        %v704 = vadd.f32 %v702, %v703
        %v705 = vmul.f32 %v673, %v385
        %v706 = vmul.f32 %v674, %v386
        %v707 = vmul.f32 %v675, %v387
        %v708 = vmul.f32 %v676, %v388
        %v709 = vrot.slane %v705, 4
        %v710 = vadd.f32 %v705, %v709
        %v711 = vrot.slane %v710, 2
        %v712 = vadd.f32 %v710, %v711
        %v713 = vrot.slane %v712, 1
        %v714 = vadd.f32 %v712, %v713
        %v715 = vrot.slane %v706, 4
        %v716 = vadd.f32 %v706, %v715
        %v717 = vrot.slane %v716, 2
        %v718 = vadd.f32 %v716, %v717
        %v719 = vrot.slane %v718, 1
        %v720 = vadd.f32 %v718, %v719
        %v721 = vrot.slane %v707, 4
        %v722 = vadd.f32 %v707, %v721
        %v723 = vrot.slane %v722, 2
        %v724 = vadd.f32 %v722, %v723
        %v725 = vrot.slane %v724, 1
        %v726 = vadd.f32 %v724, %v725
        %v727 = vrot.slane %v708, 4
        %v728 = vadd.f32 %v708, %v727
        %v729 = vrot.slane %v728, 2
        %v730 = vadd.f32 %v728, %v729
        %v731 = vrot.slane %v730, 1
        %v732 = vadd.f32 %v730, %v731
        %v733 = vlaneseq
        %v734 = vshrl.u32 %v733, 7
        %v735 = vsub.s32 2, %v734
        %v736 = vrot.slane %v389, %v735
        %v737 = vlaneseq
        %v738 = vshrl.u32 %v737, 7
        %v739 = vsub.s32 2, %v738
        %v740 = vrot.slane %v390, %v739
        %v741 = vlaneseq
        %v742 = vshrl.u32 %v741, 7
        %v743 = vsub.s32 2, %v742
        %v744 = vrot.slane %v391, %v743
        %v745 = vlaneseq
        %v746 = vshrl.u32 %v745, 7
        %v747 = vsub.s32 2, %v746
        %v748 = vrot.slane %v392, %v747
        %v749 = vmul.f32 %v736, %v319
        %v750 = vmul.f32 %v740, %v320
        %v751 = vmul.f32 %v744, %v321
        %v752 = vmul.f32 %v748, %v322
        %v753 = vlaneseq
        %v754 = vshrl.u32 %v753, 7
        %v755 = vsub.s32 2, %v754
        %v756 = vrot.slane %v393, %v755
        %v757 = vlaneseq
        %v758 = vshrl.u32 %v757, 7
        %v759 = vsub.s32 2, %v758
        %v760 = vrot.slane %v394, %v759
        %v761 = vlaneseq
        %v762 = vshrl.u32 %v761, 7
        %v763 = vsub.s32 2, %v762
        %v764 = vrot.slane %v395, %v763
        %v765 = vlaneseq
        %v766 = vshrl.u32 %v765, 7
        %v767 = vsub.s32 2, %v766
        %v768 = vrot.slane %v396, %v767
        %v769 = vmul.f32 %v756, %v341
        %v770 = vmul.f32 %v760, %v342
        %v771 = vmul.f32 %v764, %v343
        %v772 = vmul.f32 %v768, %v344
        %v773 = vadd.f32 %v749, %v769
        %v774 = vadd.f32 %v750, %v770
        %v775 = vadd.f32 %v751, %v771
        %v776 = vadd.f32 %v752, %v772
        %v777 = vrot.slane %v773, 4
        %v778 = vmax.f32 %v773, %v777
        %v779 = vrot.slane %v778, 2
        %v780 = vmax.f32 %v778, %v779
        %v781 = vrot.slane %v780, 1
        %v782 = vmax.f32 %v780, %v781
        %v783 = vrot.slane %v774, 4
        %v784 = vmax.f32 %v774, %v783
        %v785 = vrot.slane %v784, 2
        %v786 = vmax.f32 %v784, %v785
        %v787 = vrot.slane %v786, 1
        %v788 = vmax.f32 %v786, %v787
        %v789 = vrot.slane %v775, 4
        %v790 = vmax.f32 %v775, %v789
        %v791 = vrot.slane %v790, 2
        %v792 = vmax.f32 %v790, %v791
        %v793 = vrot.slane %v792, 1
        %v794 = vmax.f32 %v792, %v793
        %v795 = vrot.slane %v776, 4
        %v796 = vmax.f32 %v776, %v795
        %v797 = vrot.slane %v796, 2
        %v798 = vmax.f32 %v796, %v797
        %v799 = vrot.slane %v798, 1
        %v800 = vmax.f32 %v798, %v799
        %v801 = vsub.f32 %v773, %v782
        %v802 = vsub.f32 %v774, %v788
        %v803 = vsub.f32 %v775, %v794
        %v804 = vsub.f32 %v776, %v800
        %v805 = vmul.f32 %v801, 1.442695
        %v806 = vpow.pop %v805
        %v807 = vmul.f32 %v802, 1.442695
        %v808 = vpow.pop %v807
        %v809 = vmul.f32 %v803, 1.442695
        %v810 = vpow.pop %v809
        %v811 = vmul.f32 %v804, 1.442695
        %v812 = vpow.pop %v811
        %v813 = vrot.slane %v806, 4
        %v814 = vadd.f32 %v806, %v813
        %v815 = vrot.slane %v814, 2
        %v816 = vadd.f32 %v814, %v815
        %v817 = vrot.slane %v816, 1
        %v818 = vadd.f32 %v816, %v817
        %v819 = vrot.slane %v808, 4
        %v820 = vadd.f32 %v808, %v819
        %v821 = vrot.slane %v820, 2
        %v822 = vadd.f32 %v820, %v821
        %v823 = vrot.slane %v822, 1
        %v824 = vadd.f32 %v822, %v823
        %v825 = vrot.slane %v810, 4
        %v826 = vadd.f32 %v810, %v825
        %v827 = vrot.slane %v826, 2
        %v828 = vadd.f32 %v826, %v827
        %v829 = vrot.slane %v828, 1
        %v830 = vadd.f32 %v828, %v829
        %v831 = vrot.slane %v812, 4
        %v832 = vadd.f32 %v812, %v831
        %v833 = vrot.slane %v832, 2
        %v834 = vadd.f32 %v832, %v833
        %v835 = vrot.slane %v834, 1
        %v836 = vadd.f32 %v834, %v835
        %v837 = vrcp.pop %v818
        %v838 = vrcp.pop %v824
        %v839 = vrcp.pop %v830
        %v840 = vrcp.pop %v836
        %v841 = vmul.f32 %v806, %v837
        %v842 = vmul.f32 %v808, %v838
        %v843 = vmul.f32 %v810, %v839
        %v844 = vmul.f32 %v812, %v840
        %v845 = vmul.f32 %v841, %v363
        %v846 = vmul.f32 %v842, %v364
        %v847 = vmul.f32 %v843, %v365
        %v848 = vmul.f32 %v844, %v366
        %v849 = vrot.slane %v845, 4
        %v850 = vadd.f32 %v845, %v849
        %v851 = vrot.slane %v850, 2
        %v852 = vadd.f32 %v850, %v851
        %v853 = vrot.slane %v852, 1
        %v854 = vadd.f32 %v852, %v853
        %v855 = vrot.slane %v846, 4
        %v856 = vadd.f32 %v846, %v855
        %v857 = vrot.slane %v856, 2
        %v858 = vadd.f32 %v856, %v857
        %v859 = vrot.slane %v858, 1
        %v860 = vadd.f32 %v858, %v859
        %v861 = vrot.slane %v847, 4
        %v862 = vadd.f32 %v847, %v861
        %v863 = vrot.slane %v862, 2
        %v864 = vadd.f32 %v862, %v863
        %v865 = vrot.slane %v864, 1
        %v866 = vadd.f32 %v864, %v865
        %v867 = vrot.slane %v848, 4
        %v868 = vadd.f32 %v848, %v867
        %v869 = vrot.slane %v868, 2
        %v870 = vadd.f32 %v868, %v869
        %v871 = vrot.slane %v870, 1
        %v872 = vadd.f32 %v870, %v871
        %v873 = vmul.f32 %v841, %v385
        %v874 = vmul.f32 %v842, %v386
        %v875 = vmul.f32 %v843, %v387
        %v876 = vmul.f32 %v844, %v388
        %v877 = vrot.slane %v873, 4
        %v878 = vadd.f32 %v873, %v877
        %v879 = vrot.slane %v878, 2
        %v880 = vadd.f32 %v878, %v879
        %v881 = vrot.slane %v880, 1
        %v882 = vadd.f32 %v880, %v881
        %v883 = vrot.slane %v874, 4
        %v884 = vadd.f32 %v874, %v883
        %v885 = vrot.slane %v884, 2
        %v886 = vadd.f32 %v884, %v885
        %v887 = vrot.slane %v886, 1
        %v888 = vadd.f32 %v886, %v887
        %v889 = vrot.slane %v875, 4
        %v890 = vadd.f32 %v875, %v889
        %v891 = vrot.slane %v890, 2
        %v892 = vadd.f32 %v890, %v891
        %v893 = vrot.slane %v892, 1
        %v894 = vadd.f32 %v892, %v893
        %v895 = vrot.slane %v876, 4
        %v896 = vadd.f32 %v876, %v895
        %v897 = vrot.slane %v896, 2
        %v898 = vadd.f32 %v896, %v897
        %v899 = vrot.slane %v898, 1
        %v900 = vadd.f32 %v898, %v899
        %v901 = vlaneseq
        %v902 = vshrl.u32 %v901, 7
        %v903 = vsub.s32 3, %v902
        %v904 = vrot.slane %v389, %v903
        %v905 = vlaneseq
        %v906 = vshrl.u32 %v905, 7
        %v907 = vsub.s32 3, %v906
        %v908 = vrot.slane %v390, %v907
        %v909 = vlaneseq
        %v910 = vshrl.u32 %v909, 7
        %v911 = vsub.s32 3, %v910
        %v912 = vrot.slane %v391, %v911
        %v913 = vlaneseq
        %v914 = vshrl.u32 %v913, 7
        %v915 = vsub.s32 3, %v914
        %v916 = vrot.slane %v392, %v915
        %v917 = vmul.f32 %v904, %v319
        %v918 = vmul.f32 %v908, %v320
        %v919 = vmul.f32 %v912, %v321
        %v920 = vmul.f32 %v916, %v322
        %v921 = vlaneseq
        %v922 = vshrl.u32 %v921, 7
        %v923 = vsub.s32 3, %v922
        %v924 = vrot.slane %v393, %v923
        %v925 = vlaneseq
        %v926 = vshrl.u32 %v925, 7
        %v927 = vsub.s32 3, %v926
        %v928 = vrot.slane %v394, %v927
        %v929 = vlaneseq
        %v930 = vshrl.u32 %v929, 7
        %v931 = vsub.s32 3, %v930
        %v932 = vrot.slane %v395, %v931
        %v933 = vlaneseq
        %v934 = vshrl.u32 %v933, 7
        %v935 = vsub.s32 3, %v934
        %v936 = vrot.slane %v396, %v935
        %v937 = vmul.f32 %v924, %v341
        %v938 = vmul.f32 %v928, %v342
        %v939 = vmul.f32 %v932, %v343
        %v940 = vmul.f32 %v936, %v344
        %v941 = vadd.f32 %v917, %v937
        %v942 = vadd.f32 %v918, %v938
        %v943 = vadd.f32 %v919, %v939
        %v944 = vadd.f32 %v920, %v940
        %v945 = vrot.slane %v941, 4
        %v946 = vmax.f32 %v941, %v945
        %v947 = vrot.slane %v946, 2
        %v948 = vmax.f32 %v946, %v947
        %v949 = vrot.slane %v948, 1
        %v950 = vmax.f32 %v948, %v949
        %v951 = vrot.slane %v942, 4
        %v952 = vmax.f32 %v942, %v951
        %v953 = vrot.slane %v952, 2
        %v954 = vmax.f32 %v952, %v953
        %v955 = vrot.slane %v954, 1
        %v956 = vmax.f32 %v954, %v955
        %v957 = vrot.slane %v943, 4
        %v958 = vmax.f32 %v943, %v957
        %v959 = vrot.slane %v958, 2
        %v960 = vmax.f32 %v958, %v959
        %v961 = vrot.slane %v960, 1
        %v962 = vmax.f32 %v960, %v961
        %v963 = vrot.slane %v944, 4
        %v964 = vmax.f32 %v944, %v963
        %v965 = vrot.slane %v964, 2
        %v966 = vmax.f32 %v964, %v965
        %v967 = vrot.slane %v966, 1
        %v968 = vmax.f32 %v966, %v967
        %v969 = vsub.f32 %v941, %v950
        %v970 = vsub.f32 %v942, %v956
        %v971 = vsub.f32 %v943, %v962
        %v972 = vsub.f32 %v944, %v968
        %v973 = vmul.f32 %v969, 1.442695
        %v974 = vpow.pop %v973
        %v975 = vmul.f32 %v970, 1.442695
        %v976 = vpow.pop %v975
        %v977 = vmul.f32 %v971, 1.442695
        %v978 = vpow.pop %v977
        %v979 = vmul.f32 %v972, 1.442695
        %v980 = vpow.pop %v979
        %v981 = vrot.slane %v974, 4
        %v982 = vadd.f32 %v974, %v981
        %v983 = vrot.slane %v982, 2
        %v984 = vadd.f32 %v982, %v983
        %v985 = vrot.slane %v984, 1
        %v986 = vadd.f32 %v984, %v985
        %v987 = vrot.slane %v976, 4
        %v988 = vadd.f32 %v976, %v987
        %v989 = vrot.slane %v988, 2
        %v990 = vadd.f32 %v988, %v989
        %v991 = vrot.slane %v990, 1
        %v992 = vadd.f32 %v990, %v991
        %v993 = vrot.slane %v978, 4
        %v994 = vadd.f32 %v978, %v993
        %v995 = vrot.slane %v994, 2
        %v996 = vadd.f32 %v994, %v995
        %v997 = vrot.slane %v996, 1
        %v998 = vadd.f32 %v996, %v997
        %v999 = vrot.slane %v980, 4
        %v1000 = vadd.f32 %v980, %v999
        %v1001 = vrot.slane %v1000, 2
        %v1002 = vadd.f32 %v1000, %v1001
        %v1003 = vrot.slane %v1002, 1
        %v1004 = vadd.f32 %v1002, %v1003
        %v1005 = vrcp.pop %v986
        %v1006 = vrcp.pop %v992
        %v1007 = vrcp.pop %v998
        %v1008 = vrcp.pop %v1004
        %v1009 = vmul.f32 %v974, %v1005
        %v1010 = vmul.f32 %v976, %v1006
        %v1011 = vmul.f32 %v978, %v1007
        %v1012 = vmul.f32 %v980, %v1008
        %v1013 = vmul.f32 %v1009, %v363
        %v1014 = vmul.f32 %v1010, %v364
        %v1015 = vmul.f32 %v1011, %v365
        %v1016 = vmul.f32 %v1012, %v366
        %v1017 = vrot.slane %v1013, 4
        %v1018 = vadd.f32 %v1013, %v1017
        %v1019 = vrot.slane %v1018, 2
        %v1020 = vadd.f32 %v1018, %v1019
        %v1021 = vrot.slane %v1020, 1
        %v1022 = vadd.f32 %v1020, %v1021
        %v1023 = vrot.slane %v1014, 4
        %v1024 = vadd.f32 %v1014, %v1023
        %v1025 = vrot.slane %v1024, 2
        %v1026 = vadd.f32 %v1024, %v1025
        %v1027 = vrot.slane %v1026, 1
        %v1028 = vadd.f32 %v1026, %v1027
        %v1029 = vrot.slane %v1015, 4
        %v1030 = vadd.f32 %v1015, %v1029
        %v1031 = vrot.slane %v1030, 2
        %v1032 = vadd.f32 %v1030, %v1031
        %v1033 = vrot.slane %v1032, 1
        %v1034 = vadd.f32 %v1032, %v1033
        %v1035 = vrot.slane %v1016, 4
        %v1036 = vadd.f32 %v1016, %v1035
        %v1037 = vrot.slane %v1036, 2
        %v1038 = vadd.f32 %v1036, %v1037
        %v1039 = vrot.slane %v1038, 1
        %v1040 = vadd.f32 %v1038, %v1039
        %v1041 = vmul.f32 %v1009, %v385
        %v1042 = vmul.f32 %v1010, %v386
        %v1043 = vmul.f32 %v1011, %v387
        %v1044 = vmul.f32 %v1012, %v388
        %v1045 = vrot.slane %v1041, 4
        %v1046 = vadd.f32 %v1041, %v1045
        %v1047 = vrot.slane %v1046, 2
        %v1048 = vadd.f32 %v1046, %v1047
        %v1049 = vrot.slane %v1048, 1
        %v1050 = vadd.f32 %v1048, %v1049
        %v1051 = vrot.slane %v1042, 4
        %v1052 = vadd.f32 %v1042, %v1051
        %v1053 = vrot.slane %v1052, 2
        %v1054 = vadd.f32 %v1052, %v1053
        %v1055 = vrot.slane %v1054, 1
        %v1056 = vadd.f32 %v1054, %v1055
        %v1057 = vrot.slane %v1043, 4
        %v1058 = vadd.f32 %v1043, %v1057
        %v1059 = vrot.slane %v1058, 2
        %v1060 = vadd.f32 %v1058, %v1059
        %v1061 = vrot.slane %v1060, 1
        %v1062 = vadd.f32 %v1060, %v1061
        %v1063 = vrot.slane %v1044, 4
        %v1064 = vadd.f32 %v1044, %v1063
        %v1065 = vrot.slane %v1064, 2
        %v1066 = vadd.f32 %v1064, %v1065
        %v1067 = vrot.slane %v1066, 1
        %v1068 = vadd.f32 %v1066, %v1067
        %v1069 = vlaneseq
        %v1070 = vshrl.u32 %v1069, 7
        %v1071 = vsub.s32 4, %v1070
        %v1072 = vrot.slane %v389, %v1071
        %v1073 = vlaneseq
        %v1074 = vshrl.u32 %v1073, 7
        %v1075 = vsub.s32 4, %v1074
        %v1076 = vrot.slane %v390, %v1075
        %v1077 = vlaneseq
        %v1078 = vshrl.u32 %v1077, 7
        %v1079 = vsub.s32 4, %v1078
        %v1080 = vrot.slane %v391, %v1079
        %v1081 = vlaneseq
        %v1082 = vshrl.u32 %v1081, 7
        %v1083 = vsub.s32 4, %v1082
        %v1084 = vrot.slane %v392, %v1083
        %v1085 = vmul.f32 %v1072, %v319
        %v1086 = vmul.f32 %v1076, %v320
        %v1087 = vmul.f32 %v1080, %v321
        %v1088 = vmul.f32 %v1084, %v322
        %v1089 = vlaneseq
        %v1090 = vshrl.u32 %v1089, 7
        %v1091 = vsub.s32 4, %v1090
        %v1092 = vrot.slane %v393, %v1091
        %v1093 = vlaneseq
        %v1094 = vshrl.u32 %v1093, 7
        %v1095 = vsub.s32 4, %v1094
        %v1096 = vrot.slane %v394, %v1095
        %v1097 = vlaneseq
        %v1098 = vshrl.u32 %v1097, 7
        %v1099 = vsub.s32 4, %v1098
        %v1100 = vrot.slane %v395, %v1099
        %v1101 = vlaneseq
        %v1102 = vshrl.u32 %v1101, 7
        %v1103 = vsub.s32 4, %v1102
        %v1104 = vrot.slane %v396, %v1103
        %v1105 = vmul.f32 %v1092, %v341
        %v1106 = vmul.f32 %v1096, %v342
        %v1107 = vmul.f32 %v1100, %v343
        %v1108 = vmul.f32 %v1104, %v344
        %v1109 = vadd.f32 %v1085, %v1105
        %v1110 = vadd.f32 %v1086, %v1106
        %v1111 = vadd.f32 %v1087, %v1107
        %v1112 = vadd.f32 %v1088, %v1108
        %v1113 = vrot.slane %v1109, 4
        %v1114 = vmax.f32 %v1109, %v1113
        %v1115 = vrot.slane %v1114, 2
        %v1116 = vmax.f32 %v1114, %v1115
        %v1117 = vrot.slane %v1116, 1
        %v1118 = vmax.f32 %v1116, %v1117
        %v1119 = vrot.slane %v1110, 4
        %v1120 = vmax.f32 %v1110, %v1119
        %v1121 = vrot.slane %v1120, 2
        %v1122 = vmax.f32 %v1120, %v1121
        %v1123 = vrot.slane %v1122, 1
        %v1124 = vmax.f32 %v1122, %v1123
        %v1125 = vrot.slane %v1111, 4
        %v1126 = vmax.f32 %v1111, %v1125
        %v1127 = vrot.slane %v1126, 2
        %v1128 = vmax.f32 %v1126, %v1127
        %v1129 = vrot.slane %v1128, 1
        %v1130 = vmax.f32 %v1128, %v1129
        %v1131 = vrot.slane %v1112, 4
        %v1132 = vmax.f32 %v1112, %v1131
        %v1133 = vrot.slane %v1132, 2
        %v1134 = vmax.f32 %v1132, %v1133
        %v1135 = vrot.slane %v1134, 1
        %v1136 = vmax.f32 %v1134, %v1135
        %v1137 = vsub.f32 %v1109, %v1118
        %v1138 = vsub.f32 %v1110, %v1124
        %v1139 = vsub.f32 %v1111, %v1130
        %v1140 = vsub.f32 %v1112, %v1136
        %v1141 = vmul.f32 %v1137, 1.442695
        %v1142 = vpow.pop %v1141
        %v1143 = vmul.f32 %v1138, 1.442695
        %v1144 = vpow.pop %v1143
        %v1145 = vmul.f32 %v1139, 1.442695
        %v1146 = vpow.pop %v1145
        %v1147 = vmul.f32 %v1140, 1.442695
        %v1148 = vpow.pop %v1147
        %v1149 = vrot.slane %v1142, 4
        %v1150 = vadd.f32 %v1142, %v1149
        %v1151 = vrot.slane %v1150, 2
        %v1152 = vadd.f32 %v1150, %v1151
        %v1153 = vrot.slane %v1152, 1
        %v1154 = vadd.f32 %v1152, %v1153
        %v1155 = vrot.slane %v1144, 4
        %v1156 = vadd.f32 %v1144, %v1155
        %v1157 = vrot.slane %v1156, 2
        %v1158 = vadd.f32 %v1156, %v1157
        %v1159 = vrot.slane %v1158, 1
        %v1160 = vadd.f32 %v1158, %v1159
        %v1161 = vrot.slane %v1146, 4
        %v1162 = vadd.f32 %v1146, %v1161
        %v1163 = vrot.slane %v1162, 2
        %v1164 = vadd.f32 %v1162, %v1163
        %v1165 = vrot.slane %v1164, 1
        %v1166 = vadd.f32 %v1164, %v1165
        %v1167 = vrot.slane %v1148, 4
        %v1168 = vadd.f32 %v1148, %v1167
        %v1169 = vrot.slane %v1168, 2
        %v1170 = vadd.f32 %v1168, %v1169
        %v1171 = vrot.slane %v1170, 1
        %v1172 = vadd.f32 %v1170, %v1171
        %v1173 = vrcp.pop %v1154
        %v1174 = vrcp.pop %v1160
        %v1175 = vrcp.pop %v1166
        %v1176 = vrcp.pop %v1172
        %v1177 = vmul.f32 %v1142, %v1173
        %v1178 = vmul.f32 %v1144, %v1174
        %v1179 = vmul.f32 %v1146, %v1175
        %v1180 = vmul.f32 %v1148, %v1176
        %v1181 = vmul.f32 %v1177, %v363
        %v1182 = vmul.f32 %v1178, %v364
        %v1183 = vmul.f32 %v1179, %v365
        %v1184 = vmul.f32 %v1180, %v366
        %v1185 = vrot.slane %v1181, 4
        %v1186 = vadd.f32 %v1181, %v1185
        %v1187 = vrot.slane %v1186, 2
        %v1188 = vadd.f32 %v1186, %v1187
        %v1189 = vrot.slane %v1188, 1
        %v1190 = vadd.f32 %v1188, %v1189
        %v1191 = vrot.slane %v1182, 4
        %v1192 = vadd.f32 %v1182, %v1191
        %v1193 = vrot.slane %v1192, 2
        %v1194 = vadd.f32 %v1192, %v1193
        %v1195 = vrot.slane %v1194, 1
        %v1196 = vadd.f32 %v1194, %v1195
        %v1197 = vrot.slane %v1183, 4
        %v1198 = vadd.f32 %v1183, %v1197
        %v1199 = vrot.slane %v1198, 2
        %v1200 = vadd.f32 %v1198, %v1199
        %v1201 = vrot.slane %v1200, 1
        %v1202 = vadd.f32 %v1200, %v1201
        %v1203 = vrot.slane %v1184, 4
        %v1204 = vadd.f32 %v1184, %v1203
        %v1205 = vrot.slane %v1204, 2
        %v1206 = vadd.f32 %v1204, %v1205
        %v1207 = vrot.slane %v1206, 1
        %v1208 = vadd.f32 %v1206, %v1207
        %v1209 = vmul.f32 %v1177, %v385
        %v1210 = vmul.f32 %v1178, %v386
        %v1211 = vmul.f32 %v1179, %v387
        %v1212 = vmul.f32 %v1180, %v388
        %v1213 = vrot.slane %v1209, 4
        %v1214 = vadd.f32 %v1209, %v1213
        %v1215 = vrot.slane %v1214, 2
        %v1216 = vadd.f32 %v1214, %v1215
        %v1217 = vrot.slane %v1216, 1
        %v1218 = vadd.f32 %v1216, %v1217
        %v1219 = vrot.slane %v1210, 4
        %v1220 = vadd.f32 %v1210, %v1219
        %v1221 = vrot.slane %v1220, 2
        %v1222 = vadd.f32 %v1220, %v1221
        %v1223 = vrot.slane %v1222, 1
        %v1224 = vadd.f32 %v1222, %v1223
        %v1225 = vrot.slane %v1211, 4
        %v1226 = vadd.f32 %v1211, %v1225
        %v1227 = vrot.slane %v1226, 2
        %v1228 = vadd.f32 %v1226, %v1227
        %v1229 = vrot.slane %v1228, 1
        %v1230 = vadd.f32 %v1228, %v1229
        %v1231 = vrot.slane %v1212, 4
        %v1232 = vadd.f32 %v1212, %v1231
        %v1233 = vrot.slane %v1232, 2
        %v1234 = vadd.f32 %v1232, %v1233
        %v1235 = vrot.slane %v1234, 1
        %v1236 = vadd.f32 %v1234, %v1235
        %v1237 = vlaneseq
        %v1238 = vshrl.u32 %v1237, 7
        %v1239 = vsub.s32 5, %v1238
        %v1240 = vrot.slane %v389, %v1239
        %v1241 = vlaneseq
        %v1242 = vshrl.u32 %v1241, 7
        %v1243 = vsub.s32 5, %v1242
        %v1244 = vrot.slane %v390, %v1243
        %v1245 = vlaneseq
        %v1246 = vshrl.u32 %v1245, 7
        %v1247 = vsub.s32 5, %v1246
        %v1248 = vrot.slane %v391, %v1247
        %v1249 = vlaneseq
        %v1250 = vshrl.u32 %v1249, 7
        %v1251 = vsub.s32 5, %v1250
        %v1252 = vrot.slane %v392, %v1251
        %v1253 = vmul.f32 %v1240, %v319
        %v1254 = vmul.f32 %v1244, %v320
        %v1255 = vmul.f32 %v1248, %v321
        %v1256 = vmul.f32 %v1252, %v322
        %v1257 = vlaneseq
        %v1258 = vshrl.u32 %v1257, 7
        %v1259 = vsub.s32 5, %v1258
        %v1260 = vrot.slane %v393, %v1259
        %v1261 = vlaneseq
        %v1262 = vshrl.u32 %v1261, 7
        %v1263 = vsub.s32 5, %v1262
        %v1264 = vrot.slane %v394, %v1263
        %v1265 = vlaneseq
        %v1266 = vshrl.u32 %v1265, 7
        %v1267 = vsub.s32 5, %v1266
        %v1268 = vrot.slane %v395, %v1267
        %v1269 = vlaneseq
        %v1270 = vshrl.u32 %v1269, 7
        %v1271 = vsub.s32 5, %v1270
        %v1272 = vrot.slane %v396, %v1271
        %v1273 = vmul.f32 %v1260, %v341
        %v1274 = vmul.f32 %v1264, %v342
        %v1275 = vmul.f32 %v1268, %v343
        %v1276 = vmul.f32 %v1272, %v344
        %v1277 = vadd.f32 %v1253, %v1273
        %v1278 = vadd.f32 %v1254, %v1274
        %v1279 = vadd.f32 %v1255, %v1275
        %v1280 = vadd.f32 %v1256, %v1276
        %v1281 = vrot.slane %v1277, 4
        %v1282 = vmax.f32 %v1277, %v1281
        %v1283 = vrot.slane %v1282, 2
        %v1284 = vmax.f32 %v1282, %v1283
        %v1285 = vrot.slane %v1284, 1
        %v1286 = vmax.f32 %v1284, %v1285
        %v1287 = vrot.slane %v1278, 4
        %v1288 = vmax.f32 %v1278, %v1287
        %v1289 = vrot.slane %v1288, 2
        %v1290 = vmax.f32 %v1288, %v1289
        %v1291 = vrot.slane %v1290, 1
        %v1292 = vmax.f32 %v1290, %v1291
        %v1293 = vrot.slane %v1279, 4
        %v1294 = vmax.f32 %v1279, %v1293
        %v1295 = vrot.slane %v1294, 2
        %v1296 = vmax.f32 %v1294, %v1295
        %v1297 = vrot.slane %v1296, 1
        %v1298 = vmax.f32 %v1296, %v1297
        %v1299 = vrot.slane %v1280, 4
        %v1300 = vmax.f32 %v1280, %v1299
        %v1301 = vrot.slane %v1300, 2
        %v1302 = vmax.f32 %v1300, %v1301
        %v1303 = vrot.slane %v1302, 1
        %v1304 = vmax.f32 %v1302, %v1303
        %v1305 = vsub.f32 %v1277, %v1286
        %v1306 = vsub.f32 %v1278, %v1292
        %v1307 = vsub.f32 %v1279, %v1298
        %v1308 = vsub.f32 %v1280, %v1304
        %v1309 = vmul.f32 %v1305, 1.442695
        %v1310 = vpow.pop %v1309
        %v1311 = vmul.f32 %v1306, 1.442695
        %v1312 = vpow.pop %v1311
        %v1313 = vmul.f32 %v1307, 1.442695
        %v1314 = vpow.pop %v1313
        %v1315 = vmul.f32 %v1308, 1.442695
        %v1316 = vpow.pop %v1315
        %v1317 = vrot.slane %v1310, 4
        %v1318 = vadd.f32 %v1310, %v1317
        %v1319 = vrot.slane %v1318, 2
        %v1320 = vadd.f32 %v1318, %v1319
        %v1321 = vrot.slane %v1320, 1
        %v1322 = vadd.f32 %v1320, %v1321
        %v1323 = vrot.slane %v1312, 4
        %v1324 = vadd.f32 %v1312, %v1323
        %v1325 = vrot.slane %v1324, 2
        %v1326 = vadd.f32 %v1324, %v1325
        %v1327 = vrot.slane %v1326, 1
        %v1328 = vadd.f32 %v1326, %v1327
        %v1329 = vrot.slane %v1314, 4
        %v1330 = vadd.f32 %v1314, %v1329
        %v1331 = vrot.slane %v1330, 2
        %v1332 = vadd.f32 %v1330, %v1331
        %v1333 = vrot.slane %v1332, 1
        %v1334 = vadd.f32 %v1332, %v1333
        %v1335 = vrot.slane %v1316, 4
        %v1336 = vadd.f32 %v1316, %v1335
        %v1337 = vrot.slane %v1336, 2
        %v1338 = vadd.f32 %v1336, %v1337
        %v1339 = vrot.slane %v1338, 1
        %v1340 = vadd.f32 %v1338, %v1339
        %v1341 = vrcp.pop %v1322
        %v1342 = vrcp.pop %v1328
        %v1343 = vrcp.pop %v1334
        %v1344 = vrcp.pop %v1340
        %v1345 = vmul.f32 %v1310, %v1341
        %v1346 = vmul.f32 %v1312, %v1342
        %v1347 = vmul.f32 %v1314, %v1343
        %v1348 = vmul.f32 %v1316, %v1344
        %v1349 = vmul.f32 %v1345, %v363
        %v1350 = vmul.f32 %v1346, %v364
        %v1351 = vmul.f32 %v1347, %v365
        %v1352 = vmul.f32 %v1348, %v366
        %v1353 = vrot.slane %v1349, 4
        %v1354 = vadd.f32 %v1349, %v1353
        %v1355 = vrot.slane %v1354, 2
        %v1356 = vadd.f32 %v1354, %v1355
        %v1357 = vrot.slane %v1356, 1
        %v1358 = vadd.f32 %v1356, %v1357
        %v1359 = vrot.slane %v1350, 4
        %v1360 = vadd.f32 %v1350, %v1359
        %v1361 = vrot.slane %v1360, 2
        %v1362 = vadd.f32 %v1360, %v1361
        %v1363 = vrot.slane %v1362, 1
        %v1364 = vadd.f32 %v1362, %v1363
        %v1365 = vrot.slane %v1351, 4
        %v1366 = vadd.f32 %v1351, %v1365
        %v1367 = vrot.slane %v1366, 2
        %v1368 = vadd.f32 %v1366, %v1367
        %v1369 = vrot.slane %v1368, 1
        %v1370 = vadd.f32 %v1368, %v1369
        %v1371 = vrot.slane %v1352, 4
        %v1372 = vadd.f32 %v1352, %v1371
        %v1373 = vrot.slane %v1372, 2
        %v1374 = vadd.f32 %v1372, %v1373
        %v1375 = vrot.slane %v1374, 1
        %v1376 = vadd.f32 %v1374, %v1375
        %v1377 = vmul.f32 %v1345, %v385
        %v1378 = vmul.f32 %v1346, %v386
        %v1379 = vmul.f32 %v1347, %v387
        %v1380 = vmul.f32 %v1348, %v388
        %v1381 = vrot.slane %v1377, 4
        %v1382 = vadd.f32 %v1377, %v1381
        %v1383 = vrot.slane %v1382, 2
        %v1384 = vadd.f32 %v1382, %v1383
        %v1385 = vrot.slane %v1384, 1
        %v1386 = vadd.f32 %v1384, %v1385
        %v1387 = vrot.slane %v1378, 4
        %v1388 = vadd.f32 %v1378, %v1387
        %v1389 = vrot.slane %v1388, 2
        %v1390 = vadd.f32 %v1388, %v1389
        %v1391 = vrot.slane %v1390, 1
        %v1392 = vadd.f32 %v1390, %v1391
        %v1393 = vrot.slane %v1379, 4
        %v1394 = vadd.f32 %v1379, %v1393
        %v1395 = vrot.slane %v1394, 2
        %v1396 = vadd.f32 %v1394, %v1395
        %v1397 = vrot.slane %v1396, 1
        %v1398 = vadd.f32 %v1396, %v1397
        %v1399 = vrot.slane %v1380, 4
        %v1400 = vadd.f32 %v1380, %v1399
        %v1401 = vrot.slane %v1400, 2
        %v1402 = vadd.f32 %v1400, %v1401
        %v1403 = vrot.slane %v1402, 1
        %v1404 = vadd.f32 %v1402, %v1403
        %v1405 = vlaneseq
        %v1406 = vshrl.u32 %v1405, 7
        %v1407 = vsub.s32 6, %v1406
        %v1408 = vrot.slane %v389, %v1407
        %v1409 = vlaneseq
        %v1410 = vshrl.u32 %v1409, 7
        %v1411 = vsub.s32 6, %v1410
        %v1412 = vrot.slane %v390, %v1411
        %v1413 = vlaneseq
        %v1414 = vshrl.u32 %v1413, 7
        %v1415 = vsub.s32 6, %v1414
        %v1416 = vrot.slane %v391, %v1415
        %v1417 = vlaneseq
        %v1418 = vshrl.u32 %v1417, 7
        %v1419 = vsub.s32 6, %v1418
        %v1420 = vrot.slane %v392, %v1419
        %v1421 = vmul.f32 %v1408, %v319
        %v1422 = vmul.f32 %v1412, %v320
        %v1423 = vmul.f32 %v1416, %v321
        %v1424 = vmul.f32 %v1420, %v322
        %v1425 = vlaneseq
        %v1426 = vshrl.u32 %v1425, 7
        %v1427 = vsub.s32 6, %v1426
        %v1428 = vrot.slane %v393, %v1427
        %v1429 = vlaneseq
        %v1430 = vshrl.u32 %v1429, 7
        %v1431 = vsub.s32 6, %v1430
        %v1432 = vrot.slane %v394, %v1431
        %v1433 = vlaneseq
        %v1434 = vshrl.u32 %v1433, 7
        %v1435 = vsub.s32 6, %v1434
        %v1436 = vrot.slane %v395, %v1435
        %v1437 = vlaneseq
        %v1438 = vshrl.u32 %v1437, 7
        %v1439 = vsub.s32 6, %v1438
        %v1440 = vrot.slane %v396, %v1439
        %v1441 = vmul.f32 %v1428, %v341
        %v1442 = vmul.f32 %v1432, %v342
        %v1443 = vmul.f32 %v1436, %v343
        %v1444 = vmul.f32 %v1440, %v344
        %v1445 = vadd.f32 %v1421, %v1441
        %v1446 = vadd.f32 %v1422, %v1442
        %v1447 = vadd.f32 %v1423, %v1443
        %v1448 = vadd.f32 %v1424, %v1444
        %v1449 = vrot.slane %v1445, 4
        %v1450 = vmax.f32 %v1445, %v1449
        %v1451 = vrot.slane %v1450, 2
        %v1452 = vmax.f32 %v1450, %v1451
        %v1453 = vrot.slane %v1452, 1
        %v1454 = vmax.f32 %v1452, %v1453
        %v1455 = vrot.slane %v1446, 4
        %v1456 = vmax.f32 %v1446, %v1455
        %v1457 = vrot.slane %v1456, 2
        %v1458 = vmax.f32 %v1456, %v1457
        %v1459 = vrot.slane %v1458, 1
        %v1460 = vmax.f32 %v1458, %v1459
        %v1461 = vrot.slane %v1447, 4
        %v1462 = vmax.f32 %v1447, %v1461
        %v1463 = vrot.slane %v1462, 2
        %v1464 = vmax.f32 %v1462, %v1463
        %v1465 = vrot.slane %v1464, 1
        %v1466 = vmax.f32 %v1464, %v1465
        %v1467 = vrot.slane %v1448, 4
        %v1468 = vmax.f32 %v1448, %v1467
        %v1469 = vrot.slane %v1468, 2
        %v1470 = vmax.f32 %v1468, %v1469
        %v1471 = vrot.slane %v1470, 1
        %v1472 = vmax.f32 %v1470, %v1471
        %v1473 = vsub.f32 %v1445, %v1454
        %v1474 = vsub.f32 %v1446, %v1460
        %v1475 = vsub.f32 %v1447, %v1466
        %v1476 = vsub.f32 %v1448, %v1472
        %v1477 = vmul.f32 %v1473, 1.442695
        %v1478 = vpow.pop %v1477
        %v1479 = vmul.f32 %v1474, 1.442695
        %v1480 = vpow.pop %v1479
        %v1481 = vmul.f32 %v1475, 1.442695
        %v1482 = vpow.pop %v1481
        %v1483 = vmul.f32 %v1476, 1.442695
        %v1484 = vpow.pop %v1483
        %v1485 = vrot.slane %v1478, 4
        %v1486 = vadd.f32 %v1478, %v1485
        %v1487 = vrot.slane %v1486, 2
        %v1488 = vadd.f32 %v1486, %v1487
        %v1489 = vrot.slane %v1488, 1
        %v1490 = vadd.f32 %v1488, %v1489
        %v1491 = vrot.slane %v1480, 4
        %v1492 = vadd.f32 %v1480, %v1491
        %v1493 = vrot.slane %v1492, 2
        %v1494 = vadd.f32 %v1492, %v1493
        %v1495 = vrot.slane %v1494, 1
        %v1496 = vadd.f32 %v1494, %v1495
        %v1497 = vrot.slane %v1482, 4
        %v1498 = vadd.f32 %v1482, %v1497
        %v1499 = vrot.slane %v1498, 2
        %v1500 = vadd.f32 %v1498, %v1499
        %v1501 = vrot.slane %v1500, 1
        %v1502 = vadd.f32 %v1500, %v1501
        %v1503 = vrot.slane %v1484, 4
        %v1504 = vadd.f32 %v1484, %v1503
        %v1505 = vrot.slane %v1504, 2
        %v1506 = vadd.f32 %v1504, %v1505
        %v1507 = vrot.slane %v1506, 1
        %v1508 = vadd.f32 %v1506, %v1507
        %v1509 = vrcp.pop %v1490
        %v1510 = vrcp.pop %v1496
        %v1511 = vrcp.pop %v1502
        %v1512 = vrcp.pop %v1508
        %v1513 = vmul.f32 %v1478, %v1509
        %v1514 = vmul.f32 %v1480, %v1510
        %v1515 = vmul.f32 %v1482, %v1511
        %v1516 = vmul.f32 %v1484, %v1512
        %v1517 = vmul.f32 %v1513, %v363
        %v1518 = vmul.f32 %v1514, %v364
        %v1519 = vmul.f32 %v1515, %v365
        %v1520 = vmul.f32 %v1516, %v366
        %v1521 = vrot.slane %v1517, 4
        %v1522 = vadd.f32 %v1517, %v1521
        %v1523 = vrot.slane %v1522, 2
        %v1524 = vadd.f32 %v1522, %v1523
        %v1525 = vrot.slane %v1524, 1
        %v1526 = vadd.f32 %v1524, %v1525
        %v1527 = vrot.slane %v1518, 4
        %v1528 = vadd.f32 %v1518, %v1527
        %v1529 = vrot.slane %v1528, 2
        %v1530 = vadd.f32 %v1528, %v1529
        %v1531 = vrot.slane %v1530, 1
        %v1532 = vadd.f32 %v1530, %v1531
        %v1533 = vrot.slane %v1519, 4
        %v1534 = vadd.f32 %v1519, %v1533
        %v1535 = vrot.slane %v1534, 2
        %v1536 = vadd.f32 %v1534, %v1535
        %v1537 = vrot.slane %v1536, 1
        %v1538 = vadd.f32 %v1536, %v1537
        %v1539 = vrot.slane %v1520, 4
        %v1540 = vadd.f32 %v1520, %v1539
        %v1541 = vrot.slane %v1540, 2
        %v1542 = vadd.f32 %v1540, %v1541
        %v1543 = vrot.slane %v1542, 1
        %v1544 = vadd.f32 %v1542, %v1543
        %v1545 = vmul.f32 %v1513, %v385
        %v1546 = vmul.f32 %v1514, %v386
        %v1547 = vmul.f32 %v1515, %v387
        %v1548 = vmul.f32 %v1516, %v388
        %v1549 = vrot.slane %v1545, 4
        %v1550 = vadd.f32 %v1545, %v1549
        %v1551 = vrot.slane %v1550, 2
        %v1552 = vadd.f32 %v1550, %v1551
        %v1553 = vrot.slane %v1552, 1
        %v1554 = vadd.f32 %v1552, %v1553
        %v1555 = vrot.slane %v1546, 4
        %v1556 = vadd.f32 %v1546, %v1555
        %v1557 = vrot.slane %v1556, 2
        %v1558 = vadd.f32 %v1556, %v1557
        %v1559 = vrot.slane %v1558, 1
        %v1560 = vadd.f32 %v1558, %v1559
        %v1561 = vrot.slane %v1547, 4
        %v1562 = vadd.f32 %v1547, %v1561
        %v1563 = vrot.slane %v1562, 2
        %v1564 = vadd.f32 %v1562, %v1563
        %v1565 = vrot.slane %v1564, 1
        %v1566 = vadd.f32 %v1564, %v1565
        %v1567 = vrot.slane %v1548, 4
        %v1568 = vadd.f32 %v1548, %v1567
        %v1569 = vrot.slane %v1568, 2
        %v1570 = vadd.f32 %v1568, %v1569
        %v1571 = vrot.slane %v1570, 1
        %v1572 = vadd.f32 %v1570, %v1571
        %v1573 = vlaneseq
        %v1574 = vshrl.u32 %v1573, 7
        %v1575 = vsub.s32 7, %v1574
        %v1576 = vrot.slane %v389, %v1575
        %v1577 = vlaneseq
        %v1578 = vshrl.u32 %v1577, 7
        %v1579 = vsub.s32 7, %v1578
        %v1580 = vrot.slane %v390, %v1579
        %v1581 = vlaneseq
        %v1582 = vshrl.u32 %v1581, 7
        %v1583 = vsub.s32 7, %v1582
        %v1584 = vrot.slane %v391, %v1583
        %v1585 = vlaneseq
        %v1586 = vshrl.u32 %v1585, 7
        %v1587 = vsub.s32 7, %v1586
        %v1588 = vrot.slane %v392, %v1587
        %v1589 = vmul.f32 %v1576, %v319
        %v1590 = vmul.f32 %v1580, %v320
        %v1591 = vmul.f32 %v1584, %v321
        %v1592 = vmul.f32 %v1588, %v322
        %v1593 = vlaneseq
        %v1594 = vshrl.u32 %v1593, 7
        %v1595 = vsub.s32 7, %v1594
        %v1596 = vrot.slane %v393, %v1595
        %v1597 = vlaneseq
        %v1598 = vshrl.u32 %v1597, 7
        %v1599 = vsub.s32 7, %v1598
        %v1600 = vrot.slane %v394, %v1599
        %v1601 = vlaneseq
        %v1602 = vshrl.u32 %v1601, 7
        %v1603 = vsub.s32 7, %v1602
        %v1604 = vrot.slane %v395, %v1603
        %v1605 = vlaneseq
        %v1606 = vshrl.u32 %v1605, 7
        %v1607 = vsub.s32 7, %v1606
        %v1608 = vrot.slane %v396, %v1607
        %v1609 = vmul.f32 %v1596, %v341
        %v1610 = vmul.f32 %v1600, %v342
        %v1611 = vmul.f32 %v1604, %v343
        %v1612 = vmul.f32 %v1608, %v344
        %v1613 = vadd.f32 %v1589, %v1609
        %v1614 = vadd.f32 %v1590, %v1610
        %v1615 = vadd.f32 %v1591, %v1611
        %v1616 = vadd.f32 %v1592, %v1612
        %v1617 = vrot.slane %v1613, 4
        %v1618 = vmax.f32 %v1613, %v1617
        %v1619 = vrot.slane %v1618, 2
        %v1620 = vmax.f32 %v1618, %v1619
        %v1621 = vrot.slane %v1620, 1
        %v1622 = vmax.f32 %v1620, %v1621
        %v1623 = vrot.slane %v1614, 4
        %v1624 = vmax.f32 %v1614, %v1623
        %v1625 = vrot.slane %v1624, 2
        %v1626 = vmax.f32 %v1624, %v1625
        %v1627 = vrot.slane %v1626, 1
        %v1628 = vmax.f32 %v1626, %v1627
        %v1629 = vrot.slane %v1615, 4
        %v1630 = vmax.f32 %v1615, %v1629
        %v1631 = vrot.slane %v1630, 2
        %v1632 = vmax.f32 %v1630, %v1631
        %v1633 = vrot.slane %v1632, 1
        %v1634 = vmax.f32 %v1632, %v1633
        %v1635 = vrot.slane %v1616, 4
        %v1636 = vmax.f32 %v1616, %v1635
        %v1637 = vrot.slane %v1636, 2
        %v1638 = vmax.f32 %v1636, %v1637
        %v1639 = vrot.slane %v1638, 1
        %v1640 = vmax.f32 %v1638, %v1639
        %v1641 = vsub.f32 %v1613, %v1622
        %v1642 = vsub.f32 %v1614, %v1628
        %v1643 = vsub.f32 %v1615, %v1634
        %v1644 = vsub.f32 %v1616, %v1640
        %v1645 = vmul.f32 %v1641, 1.442695
        %v1646 = vpow.pop %v1645
        %v1647 = vmul.f32 %v1642, 1.442695
        %v1648 = vpow.pop %v1647
        %v1649 = vmul.f32 %v1643, 1.442695
        %v1650 = vpow.pop %v1649
        %v1651 = vmul.f32 %v1644, 1.442695
        %v1652 = vpow.pop %v1651
        %v1653 = vrot.slane %v1646, 4
        %v1654 = vadd.f32 %v1646, %v1653
        %v1655 = vrot.slane %v1654, 2
        %v1656 = vadd.f32 %v1654, %v1655
        %v1657 = vrot.slane %v1656, 1
        %v1658 = vadd.f32 %v1656, %v1657
        %v1659 = vrot.slane %v1648, 4
        %v1660 = vadd.f32 %v1648, %v1659
        %v1661 = vrot.slane %v1660, 2
        %v1662 = vadd.f32 %v1660, %v1661
        %v1663 = vrot.slane %v1662, 1
        %v1664 = vadd.f32 %v1662, %v1663
        %v1665 = vrot.slane %v1650, 4
        %v1666 = vadd.f32 %v1650, %v1665
        %v1667 = vrot.slane %v1666, 2
        %v1668 = vadd.f32 %v1666, %v1667
        %v1669 = vrot.slane %v1668, 1
        %v1670 = vadd.f32 %v1668, %v1669
        %v1671 = vrot.slane %v1652, 4
        %v1672 = vadd.f32 %v1652, %v1671
        %v1673 = vrot.slane %v1672, 2
        %v1674 = vadd.f32 %v1672, %v1673
        %v1675 = vrot.slane %v1674, 1
        %v1676 = vadd.f32 %v1674, %v1675
        %v1677 = vrcp.pop %v1658
        %v1678 = vrcp.pop %v1664
        %v1679 = vrcp.pop %v1670
        %v1680 = vrcp.pop %v1676
        %v1681 = vmul.f32 %v1646, %v1677
        %v1682 = vmul.f32 %v1648, %v1678
        %v1683 = vmul.f32 %v1650, %v1679
        %v1684 = vmul.f32 %v1652, %v1680
        %v1685 = vmul.f32 %v1681, %v363
        %v1686 = vmul.f32 %v1682, %v364
        %v1687 = vmul.f32 %v1683, %v365
        %v1688 = vmul.f32 %v1684, %v366
        %v1689 = vrot.slane %v1685, 4
        %v1690 = vadd.f32 %v1685, %v1689
        %v1691 = vrot.slane %v1690, 2
        %v1692 = vadd.f32 %v1690, %v1691
        %v1693 = vrot.slane %v1692, 1
        %v1694 = vadd.f32 %v1692, %v1693
        %v1695 = vrot.slane %v1686, 4
        %v1696 = vadd.f32 %v1686, %v1695
        %v1697 = vrot.slane %v1696, 2
        %v1698 = vadd.f32 %v1696, %v1697
        %v1699 = vrot.slane %v1698, 1
        %v1700 = vadd.f32 %v1698, %v1699
        %v1701 = vrot.slane %v1687, 4
        %v1702 = vadd.f32 %v1687, %v1701
        %v1703 = vrot.slane %v1702, 2
        %v1704 = vadd.f32 %v1702, %v1703
        %v1705 = vrot.slane %v1704, 1
        %v1706 = vadd.f32 %v1704, %v1705
        %v1707 = vrot.slane %v1688, 4
        %v1708 = vadd.f32 %v1688, %v1707
        %v1709 = vrot.slane %v1708, 2
        %v1710 = vadd.f32 %v1708, %v1709
        %v1711 = vrot.slane %v1710, 1
        %v1712 = vadd.f32 %v1710, %v1711
        %v1713 = vmul.f32 %v1681, %v385
        %v1714 = vmul.f32 %v1682, %v386
        %v1715 = vmul.f32 %v1683, %v387
        %v1716 = vmul.f32 %v1684, %v388
        %v1717 = vrot.slane %v1713, 4
        %v1718 = vadd.f32 %v1713, %v1717
        %v1719 = vrot.slane %v1718, 2
        %v1720 = vadd.f32 %v1718, %v1719
        %v1721 = vrot.slane %v1720, 1
        %v1722 = vadd.f32 %v1720, %v1721
        %v1723 = vrot.slane %v1714, 4
        %v1724 = vadd.f32 %v1714, %v1723
        %v1725 = vrot.slane %v1724, 2
        %v1726 = vadd.f32 %v1724, %v1725
        %v1727 = vrot.slane %v1726, 1
        %v1728 = vadd.f32 %v1726, %v1727
        %v1729 = vrot.slane %v1715, 4
        %v1730 = vadd.f32 %v1715, %v1729
        %v1731 = vrot.slane %v1730, 2
        %v1732 = vadd.f32 %v1730, %v1731
        %v1733 = vrot.slane %v1732, 1
        %v1734 = vadd.f32 %v1732, %v1733
        %v1735 = vrot.slane %v1716, 4
        %v1736 = vadd.f32 %v1716, %v1735
        %v1737 = vrot.slane %v1736, 2
        %v1738 = vadd.f32 %v1736, %v1737
        %v1739 = vrot.slane %v1738, 1
        %v1740 = vadd.f32 %v1738, %v1739
        %vm1741 = vcmask 1040384
        %v1742 = vsel %vm1741, %v518, %v686
        %v1743 = vsel %vm1741, %v524, %v692
        %v1744 = vsel %vm1741, %v530, %v698
        %v1745 = vsel %vm1741, %v536, %v704
        %vm1746 = vcmask 1041408
        %v1747 = vsel %vm1746, %v1742, %v854
        %v1748 = vsel %vm1746, %v1743, %v860
        %v1749 = vsel %vm1746, %v1744, %v866
        %v1750 = vsel %vm1746, %v1745, %v872
        %vm1751 = vcmask 1042432
        %v1752 = vsel %vm1751, %v1747, %v1022
        %v1753 = vsel %vm1751, %v1748, %v1028
        %v1754 = vsel %vm1751, %v1749, %v1034
        %v1755 = vsel %vm1751, %v1750, %v1040
        %vm1756 = vcmask 1043456
        %v1757 = vsel %vm1756, %v1752, %v1190
        %v1758 = vsel %vm1756, %v1753, %v1196
        %v1759 = vsel %vm1756, %v1754, %v1202
        %v1760 = vsel %vm1756, %v1755, %v1208
        %vm1761 = vcmask 1044480
        %v1762 = vsel %vm1761, %v1757, %v1358
        %v1763 = vsel %vm1761, %v1758, %v1364
        %v1764 = vsel %vm1761, %v1759, %v1370
        %v1765 = vsel %vm1761, %v1760, %v1376
        %vm1766 = vcmask 1045504
        %v1767 = vsel %vm1766, %v1762, %v1526
        %v1768 = vsel %vm1766, %v1763, %v1532
        %v1769 = vsel %vm1766, %v1764, %v1538
        %v1770 = vsel %vm1766, %v1765, %v1544
        %vm1771 = vcmask 1046528
        %v1772 = vsel %vm1771, %v1767, %v1694
        %v1773 = vsel %vm1771, %v1768, %v1700
        %v1774 = vsel %vm1771, %v1769, %v1706
        %v1775 = vsel %vm1771, %v1770, %v1712
        %v1776 = vsel %vm1741, %v546, %v714
        %v1777 = vsel %vm1741, %v552, %v720
        %v1778 = vsel %vm1741, %v558, %v726
        %v1779 = vsel %vm1741, %v564, %v732
        %v1780 = vsel %vm1746, %v1776, %v882
        %v1781 = vsel %vm1746, %v1777, %v888
        %v1782 = vsel %vm1746, %v1778, %v894
        %v1783 = vsel %vm1746, %v1779, %v900
        %v1784 = vsel %vm1751, %v1780, %v1050
        %v1785 = vsel %vm1751, %v1781, %v1056
        %v1786 = vsel %vm1751, %v1782, %v1062
        %v1787 = vsel %vm1751, %v1783, %v1068
        %v1788 = vsel %vm1756, %v1784, %v1218
        %v1789 = vsel %vm1756, %v1785, %v1224
        %v1790 = vsel %vm1756, %v1786, %v1230
        %v1791 = vsel %vm1756, %v1787, %v1236
        %v1792 = vsel %vm1761, %v1788, %v1386
        %v1793 = vsel %vm1761, %v1789, %v1392
        %v1794 = vsel %vm1761, %v1790, %v1398
        %v1795 = vsel %vm1761, %v1791, %v1404
        %v1796 = vsel %vm1766, %v1792, %v1554
        %v1797 = vsel %vm1766, %v1793, %v1560
        %v1798 = vsel %vm1766, %v1794, %v1566
        %v1799 = vsel %vm1766, %v1795, %v1572
        %v1800 = vsel %vm1771, %v1796, %v1722
        %v1801 = vsel %vm1771, %v1797, %v1728
        %v1802 = vsel %vm1771, %v1798, %v1734
        %v1803 = vsel %vm1771, %v1799, %v1740
        %s1804 = sld [smem:[#allocation2 + $0x16]]
        %v1805 = vstv %s1804
        %v1806 = vmul.f32 %v1772, %v1805
        %v1807 = vmul.f32 %v1773, %v1805
        %v1808 = vmul.f32 %v1774, %v1805
        %v1809 = vmul.f32 %v1775, %v1805
        %s1810 = sld [smem:[#allocation2 + $0x17]]
        %v1811 = vstv %s1810
        %v1812 = vmul.f32 %v1800, %v1811
        %v1813 = vmul.f32 %v1801, %v1811
        %v1814 = vmul.f32 %v1802, %v1811
        %v1815 = vmul.f32 %v1803, %v1811
        %v1816 = vadd.f32 %v1806, %v1812
        %v1817 = vadd.f32 %v1807, %v1813
        %v1818 = vadd.f32 %v1808, %v1814
        %v1819 = vadd.f32 %v1809, %v1815
        %s1820 = sld [smem:[#allocation2 + $0x1a]]
        %v1821 = vstv %s1820
        %v1822 = vadd.f32 %v1816, %v1821
        %v1823 = vadd.f32 %v1817, %v1821
        %v1824 = vadd.f32 %v1818, %v1821
        %v1825 = vadd.f32 %v1819, %v1821
        %s1826 = sld [smem:[#allocation2 + $0x18]]
        %v1827 = vstv %s1826
        %v1828 = vmul.f32 %v1772, %v1827
        %v1829 = vmul.f32 %v1773, %v1827
        %v1830 = vmul.f32 %v1774, %v1827
        %v1831 = vmul.f32 %v1775, %v1827
        %s1832 = sld [smem:[#allocation2 + $0x19]]
        %v1833 = vstv %s1832
        %v1834 = vmul.f32 %v1800, %v1833
        %v1835 = vmul.f32 %v1801, %v1833
        %v1836 = vmul.f32 %v1802, %v1833
        %v1837 = vmul.f32 %v1803, %v1833
        %v1838 = vadd.f32 %v1828, %v1834
        %v1839 = vadd.f32 %v1829, %v1835
        %v1840 = vadd.f32 %v1830, %v1836
        %v1841 = vadd.f32 %v1831, %v1837
        %s1842 = sld [smem:[#allocation2 + $0x1b]]
        %v1843 = vstv %s1842
        %v1844 = vadd.f32 %v1838, %v1843
        %v1845 = vadd.f32 %v1839, %v1843
        %v1846 = vadd.f32 %v1840, %v1843
        %v1847 = vadd.f32 %v1841, %v1843
        %v1848 = vadd.f32 %v237, %v1822
        %v1849 = vadd.f32 %v238, %v1823
        %v1850 = vadd.f32 %v239, %v1824
        %v1851 = vadd.f32 %v240, %v1825
        %v1852 = vadd.f32 %v253, %v1844
        %v1853 = vadd.f32 %v254, %v1845
        %v1854 = vadd.f32 %v255, %v1846
        %v1855 = vadd.f32 %v256, %v1847
        %v1856 = vadd.f32 %v1848, %v1852
        %v1857 = vadd.f32 %v1849, %v1853
        %v1858 = vadd.f32 %v1850, %v1854
        %v1859 = vadd.f32 %v1851, %v1855
        %v1860 = vmul.f32 %v1856, 0.5
        %v1861 = vmul.f32 %v1857, 0.5
        %v1862 = vmul.f32 %v1858, 0.5
        %v1863 = vmul.f32 %v1859, 0.5
        %v1864 = vsub.f32 %v1848, %v1860
        %v1865 = vsub.f32 %v1849, %v1861
        %v1866 = vsub.f32 %v1850, %v1862
        %v1867 = vsub.f32 %v1851, %v1863
        %v1868 = vsub.f32 %v1852, %v1860
        %v1869 = vsub.f32 %v1853, %v1861
        %v1870 = vsub.f32 %v1854, %v1862
        %v1871 = vsub.f32 %v1855, %v1863
        %v1872 = vmul.f32 %v1864, %v1864
        %v1873 = vmul.f32 %v1865, %v1865
        %v1874 = vmul.f32 %v1866, %v1866
        %v1875 = vmul.f32 %v1867, %v1867
        %v1876 = vmul.f32 %v1868, %v1868
        %v1877 = vmul.f32 %v1869, %v1869
        %v1878 = vmul.f32 %v1870, %v1870
        %v1879 = vmul.f32 %v1871, %v1871
        %v1880 = vadd.f32 %v1872, %v1876
        %v1881 = vadd.f32 %v1873, %v1877
        %v1882 = vadd.f32 %v1874, %v1878
        %v1883 = vadd.f32 %v1875, %v1879
        %v1884 = vmul.f32 %v1880, 0.5
        %v1885 = vmul.f32 %v1881, 0.5
        %v1886 = vmul.f32 %v1882, 0.5
        %v1887 = vmul.f32 %v1883, 0.5
        %v1888 = vadd.f32 %v1884, 1e-05
        %v1889 = vadd.f32 %v1885, 1e-05
        %v1890 = vadd.f32 %v1886, 1e-05
        %v1891 = vadd.f32 %v1887, 1e-05
        %v1892 = vrsqrt.pop %v1888
        %v1893 = vrsqrt.pop %v1889
        %v1894 = vrsqrt.pop %v1890
        %v1895 = vrsqrt.pop %v1891
        %v1896 = vmul.f32 %v1864, %v1892
        %v1897 = vmul.f32 %v1865, %v1893
        %v1898 = vmul.f32 %v1866, %v1894
        %v1899 = vmul.f32 %v1867, %v1895
        %s1900 = sld [smem:[#allocation2 + $0x1c]]
        %v1901 = vstv %s1900
        %v1902 = vmul.f32 %v1896, %v1901
        %v1903 = vmul.f32 %v1897, %v1901
        %v1904 = vmul.f32 %v1898, %v1901
        %v1905 = vmul.f32 %v1899, %v1901
        %s1906 = sld [smem:[#allocation2 + $0x1e]]
        %v1907 = vstv %s1906
        %v1908 = vadd.f32 %v1902, %v1907
        %v1909 = vadd.f32 %v1903, %v1907
        %v1910 = vadd.f32 %v1904, %v1907
        %v1911 = vadd.f32 %v1905, %v1907
        %v1912 = vmul.f32 %v1868, %v1892
        %v1913 = vmul.f32 %v1869, %v1893
        %v1914 = vmul.f32 %v1870, %v1894
        %v1915 = vmul.f32 %v1871, %v1895
        %s1916 = sld [smem:[#allocation2 + $0x1d]]
        %v1917 = vstv %s1916
        %v1918 = vmul.f32 %v1912, %v1917
        %v1919 = vmul.f32 %v1913, %v1917
        %v1920 = vmul.f32 %v1914, %v1917
        %v1921 = vmul.f32 %v1915, %v1917
        %s1922 = sld [smem:[#allocation2 + $0x1f]]
        %v1923 = vstv %s1922
        %v1924 = vadd.f32 %v1918, %v1923
        %v1925 = vadd.f32 %v1919, %v1923
        %v1926 = vadd.f32 %v1920, %v1923
        %v1927 = vadd.f32 %v1921, %v1923
        %s1928 = sld [smem:[#allocation2 + $0x20]]
        %v1929 = vstv %s1928
        %v1930 = vmul.f32 %v1908, %v1929
        %v1931 = vmul.f32 %v1909, %v1929
        %v1932 = vmul.f32 %v1910, %v1929
        %v1933 = vmul.f32 %v1911, %v1929
        %s1934 = sld [smem:[#allocation2 + $0x21]]
        %v1935 = vstv %s1934
        %v1936 = vmul.f32 %v1924, %v1935
        %v1937 = vmul.f32 %v1925, %v1935
        %v1938 = vmul.f32 %v1926, %v1935
        %v1939 = vmul.f32 %v1927, %v1935
        %v1940 = vadd.f32 %v1930, %v1936
        %v1941 = vadd.f32 %v1931, %v1937
        %v1942 = vadd.f32 %v1932, %v1938
        %v1943 = vadd.f32 %v1933, %v1939
        %s1944 = sld [smem:[#allocation2 + $0x34]]
        %v1945 = vstv %s1944
        %v1946 = vadd.f32 %v1940, %v1945
        %v1947 = vadd.f32 %v1941, %v1945
        %v1948 = vadd.f32 %v1942, %v1945
        %v1949 = vadd.f32 %v1943, %v1945
        %s1950 = sld [smem:[#allocation2 + $0x22]]
        %v1951 = vstv %s1950
        %v1952 = vmul.f32 %v1908, %v1951
        %v1953 = vmul.f32 %v1909, %v1951
        %v1954 = vmul.f32 %v1910, %v1951
        %v1955 = vmul.f32 %v1911, %v1951
        %s1956 = sld [smem:[#allocation2 + $0x23]]
        %v1957 = vstv %s1956
        %v1958 = vmul.f32 %v1924, %v1957
        %v1959 = vmul.f32 %v1925, %v1957
        %v1960 = vmul.f32 %v1926, %v1957
        %v1961 = vmul.f32 %v1927, %v1957
        %v1962 = vadd.f32 %v1952, %v1958
        %v1963 = vadd.f32 %v1953, %v1959
        %v1964 = vadd.f32 %v1954, %v1960
        %v1965 = vadd.f32 %v1955, %v1961
        %s1966 = sld [smem:[#allocation2 + $0x35]]
        %v1967 = vstv %s1966
        %v1968 = vadd.f32 %v1962, %v1967
        %v1969 = vadd.f32 %v1963, %v1967
        %v1970 = vadd.f32 %v1964, %v1967
        %v1971 = vadd.f32 %v1965, %v1967
        %s1972 = sld [smem:[#allocation2 + $0x24]]
        %v1973 = vstv %s1972
        %v1974 = vmul.f32 %v1908, %v1973
        %v1975 = vmul.f32 %v1909, %v1973
        %v1976 = vmul.f32 %v1910, %v1973
        %v1977 = vmul.f32 %v1911, %v1973
        %s1978 = sld [smem:[#allocation2 + $0x25]]
        %v1979 = vstv %s1978
        %v1980 = vmul.f32 %v1924, %v1979
        %v1981 = vmul.f32 %v1925, %v1979
        %v1982 = vmul.f32 %v1926, %v1979
        %v1983 = vmul.f32 %v1927, %v1979
        %v1984 = vadd.f32 %v1974, %v1980
        %v1985 = vadd.f32 %v1975, %v1981
        %v1986 = vadd.f32 %v1976, %v1982
        %v1987 = vadd.f32 %v1977, %v1983
        %s1988 = sld [smem:[#allocation2 + $0x36]]
        %v1989 = vstv %s1988
        %v1990 = vadd.f32 %v1984, %v1989
        %v1991 = vadd.f32 %v1985, %v1989
        %v1992 = vadd.f32 %v1986, %v1989
        %v1993 = vadd.f32 %v1987, %v1989
        %s1994 = sld [smem:[#allocation2 + $0x26]]
        %v1995 = vstv %s1994
        %v1996 = vmul.f32 %v1908, %v1995
        %v1997 = vmul.f32 %v1909, %v1995
        %v1998 = vmul.f32 %v1910, %v1995
        %v1999 = vmul.f32 %v1911, %v1995
        %s2000 = sld [smem:[#allocation2 + $0x27]]
        %v2001 = vstv %s2000
        %v2002 = vmul.f32 %v1924, %v2001
        %v2003 = vmul.f32 %v1925, %v2001
        %v2004 = vmul.f32 %v1926, %v2001
        %v2005 = vmul.f32 %v1927, %v2001
        %v2006 = vadd.f32 %v1996, %v2002
        %v2007 = vadd.f32 %v1997, %v2003
        %v2008 = vadd.f32 %v1998, %v2004
        %v2009 = vadd.f32 %v1999, %v2005
        %s2010 = sld [smem:[#allocation2 + $0x37]]
        %v2011 = vstv %s2010
        %v2012 = vadd.f32 %v2006, %v2011
        %v2013 = vadd.f32 %v2007, %v2011
        %v2014 = vadd.f32 %v2008, %v2011
        %v2015 = vadd.f32 %v2009, %v2011
        %s2016 = sld [smem:[#allocation2 + $0x28]]
        %v2017 = vstv %s2016
        %v2018 = vmul.f32 %v1908, %v2017
        %v2019 = vmul.f32 %v1909, %v2017
        %v2020 = vmul.f32 %v1910, %v2017
        %v2021 = vmul.f32 %v1911, %v2017
        %s2022 = sld [smem:[#allocation2 + $0x29]]
        %v2023 = vstv %s2022
        %v2024 = vmul.f32 %v1924, %v2023
        %v2025 = vmul.f32 %v1925, %v2023
        %v2026 = vmul.f32 %v1926, %v2023
        %v2027 = vmul.f32 %v1927, %v2023
        %v2028 = vadd.f32 %v2018, %v2024
        %v2029 = vadd.f32 %v2019, %v2025
        %v2030 = vadd.f32 %v2020, %v2026
        %v2031 = vadd.f32 %v2021, %v2027
        %s2032 = sld [smem:[#allocation2 + $0x38]]
        %v2033 = vstv %s2032
        %v2034 = vadd.f32 %v2028, %v2033
        %v2035 = vadd.f32 %v2029, %v2033
        %v2036 = vadd.f32 %v2030, %v2033
        %v2037 = vadd.f32 %v2031, %v2033
        %s2038 = sld [smem:[#allocation2 + $0x2a]]
        %v2039 = vstv %s2038
        %v2040 = vmul.f32 %v1908, %v2039
        %v2041 = vmul.f32 %v1909, %v2039
        %v2042 = vmul.f32 %v1910, %v2039
        %v2043 = vmul.f32 %v1911, %v2039
        %s2044 = sld [smem:[#allocation2 + $0x2b]]
        %v2045 = vstv %s2044
        %v2046 = vmul.f32 %v1924, %v2045
        %v2047 = vmul.f32 %v1925, %v2045
        %v2048 = vmul.f32 %v1926, %v2045
        %v2049 = vmul.f32 %v1927, %v2045
        %v2050 = vadd.f32 %v2040, %v2046
        %v2051 = vadd.f32 %v2041, %v2047
        %v2052 = vadd.f32 %v2042, %v2048
        %v2053 = vadd.f32 %v2043, %v2049
        %s2054 = sld [smem:[#allocation2 + $0x39]]
        %v2055 = vstv %s2054
        %v2056 = vadd.f32 %v2050, %v2055
        %v2057 = vadd.f32 %v2051, %v2055
        %v2058 = vadd.f32 %v2052, %v2055
        %v2059 = vadd.f32 %v2053, %v2055
        %s2060 = sld [smem:[#allocation2 + $0x2c]]
        %v2061 = vstv %s2060
        %v2062 = vmul.f32 %v1908, %v2061
        %v2063 = vmul.f32 %v1909, %v2061
        %v2064 = vmul.f32 %v1910, %v2061
        %v2065 = vmul.f32 %v1911, %v2061
        %s2066 = sld [smem:[#allocation2 + $0x2d]]
        %v2067 = vstv %s2066
        %v2068 = vmul.f32 %v1924, %v2067
        %v2069 = vmul.f32 %v1925, %v2067
        %v2070 = vmul.f32 %v1926, %v2067
        %v2071 = vmul.f32 %v1927, %v2067
        %v2072 = vadd.f32 %v2062, %v2068
        %v2073 = vadd.f32 %v2063, %v2069
        %v2074 = vadd.f32 %v2064, %v2070
        %v2075 = vadd.f32 %v2065, %v2071
        %s2076 = sld [smem:[#allocation2 + $0x3a]]
        %v2077 = vstv %s2076
        %v2078 = vadd.f32 %v2072, %v2077
        %v2079 = vadd.f32 %v2073, %v2077
        %v2080 = vadd.f32 %v2074, %v2077
        %v2081 = vadd.f32 %v2075, %v2077
        %s2082 = sld [smem:[#allocation2 + $0x2e]]
        %v2083 = vstv %s2082
        %v2084 = vmul.f32 %v1908, %v2083
        %v2085 = vmul.f32 %v1909, %v2083
        %v2086 = vmul.f32 %v1910, %v2083
        %v2087 = vmul.f32 %v1911, %v2083
        %s2088 = sld [smem:[#allocation2 + $0x2f]]
        %v2089 = vstv %s2088
        %v2090 = vmul.f32 %v1924, %v2089
        %v2091 = vmul.f32 %v1925, %v2089
        %v2092 = vmul.f32 %v1926, %v2089
        %v2093 = vmul.f32 %v1927, %v2089
        %v2094 = vadd.f32 %v2084, %v2090
        %v2095 = vadd.f32 %v2085, %v2091
        %v2096 = vadd.f32 %v2086, %v2092
        %v2097 = vadd.f32 %v2087, %v2093
        %s2098 = sld [smem:[#allocation2 + $0x3b]]
        %v2099 = vstv %s2098
        %v2100 = vadd.f32 %v2094, %v2099
        %v2101 = vadd.f32 %v2095, %v2099
        %v2102 = vadd.f32 %v2096, %v2099
        %v2103 = vadd.f32 %v2097, %v2099
        %s2104 = sld [smem:[#allocation2 + $0x30]]
        %v2105 = vstv %s2104
        %v2106 = vmul.f32 %v1908, %v2105
        %v2107 = vmul.f32 %v1909, %v2105
        %v2108 = vmul.f32 %v1910, %v2105
        %v2109 = vmul.f32 %v1911, %v2105
        %s2110 = sld [smem:[#allocation2 + $0x31]]
        %v2111 = vstv %s2110
        %v2112 = vmul.f32 %v1924, %v2111
        %v2113 = vmul.f32 %v1925, %v2111
        %v2114 = vmul.f32 %v1926, %v2111
        %v2115 = vmul.f32 %v1927, %v2111
        %v2116 = vadd.f32 %v2106, %v2112
        %v2117 = vadd.f32 %v2107, %v2113
        %v2118 = vadd.f32 %v2108, %v2114
        %v2119 = vadd.f32 %v2109, %v2115
        %s2120 = sld [smem:[#allocation2 + $0x3c]]
        %v2121 = vstv %s2120
        %v2122 = vadd.f32 %v2116, %v2121
        %v2123 = vadd.f32 %v2117, %v2121
        %v2124 = vadd.f32 %v2118, %v2121
        %v2125 = vadd.f32 %v2119, %v2121
        %s2126 = sld [smem:[#allocation2 + $0x32]]
        %v2127 = vstv %s2126
        %v2128 = vmul.f32 %v1908, %v2127
        %v2129 = vmul.f32 %v1909, %v2127
        %v2130 = vmul.f32 %v1910, %v2127
        %v2131 = vmul.f32 %v1911, %v2127
        %s2132 = sld [smem:[#allocation2 + $0x33]]
        %v2133 = vstv %s2132
        %v2134 = vmul.f32 %v1924, %v2133
        %v2135 = vmul.f32 %v1925, %v2133
        %v2136 = vmul.f32 %v1926, %v2133
        %v2137 = vmul.f32 %v1927, %v2133
        %v2138 = vadd.f32 %v2128, %v2134
        %v2139 = vadd.f32 %v2129, %v2135
        %v2140 = vadd.f32 %v2130, %v2136
        %v2141 = vadd.f32 %v2131, %v2137
        %s2142 = sld [smem:[#allocation2 + $0x3d]]
        %v2143 = vstv %s2142
        %v2144 = vadd.f32 %v2138, %v2143
        %v2145 = vadd.f32 %v2139, %v2143
        %v2146 = vadd.f32 %v2140, %v2143
        %v2147 = vadd.f32 %v2141, %v2143
        %v2148 = vmax.f32 %v1946, 0.0
        %v2149 = vmax.f32 %v1947, 0.0
        %v2150 = vmax.f32 %v1948, 0.0
        %v2151 = vmax.f32 %v1949, 0.0
        %v2152 = vmax.f32 %v1968, 0.0
        %v2153 = vmax.f32 %v1969, 0.0
        %v2154 = vmax.f32 %v1970, 0.0
        %v2155 = vmax.f32 %v1971, 0.0
        %v2156 = vmax.f32 %v1990, 0.0
        %v2157 = vmax.f32 %v1991, 0.0
        %v2158 = vmax.f32 %v1992, 0.0
        %v2159 = vmax.f32 %v1993, 0.0
        %v2160 = vmax.f32 %v2012, 0.0
        %v2161 = vmax.f32 %v2013, 0.0
        %v2162 = vmax.f32 %v2014, 0.0
        %v2163 = vmax.f32 %v2015, 0.0
        %v2164 = vmax.f32 %v2034, 0.0
        %v2165 = vmax.f32 %v2035, 0.0
        %v2166 = vmax.f32 %v2036, 0.0
        %v2167 = vmax.f32 %v2037, 0.0
        %v2168 = vmax.f32 %v2056, 0.0
        %v2169 = vmax.f32 %v2057, 0.0
        %v2170 = vmax.f32 %v2058, 0.0
        %v2171 = vmax.f32 %v2059, 0.0
        %v2172 = vmax.f32 %v2078, 0.0
        %v2173 = vmax.f32 %v2079, 0.0
        %v2174 = vmax.f32 %v2080, 0.0
        %v2175 = vmax.f32 %v2081, 0.0
        %v2176 = vmax.f32 %v2100, 0.0
        %v2177 = vmax.f32 %v2101, 0.0
        %v2178 = vmax.f32 %v2102, 0.0
        %v2179 = vmax.f32 %v2103, 0.0
        %v2180 = vmax.f32 %v2122, 0.0
        %v2181 = vmax.f32 %v2123, 0.0
        %v2182 = vmax.f32 %v2124, 0.0
        %v2183 = vmax.f32 %v2125, 0.0
        %v2184 = vmax.f32 %v2144, 0.0
        %v2185 = vmax.f32 %v2145, 0.0
        %v2186 = vmax.f32 %v2146, 0.0
        %v2187 = vmax.f32 %v2147, 0.0
        %v2188 = vadd.f32 %v2148, %v2152
        %v2189 = vadd.f32 %v2149, %v2153
        %v2190 = vadd.f32 %v2150, %v2154
        %v2191 = vadd.f32 %v2151, %v2155
        %v2192 = vadd.f32 %v2188, %v2156
        %v2193 = vadd.f32 %v2189, %v2157
        %v2194 = vadd.f32 %v2190, %v2158
        %v2195 = vadd.f32 %v2191, %v2159
        %v2196 = vadd.f32 %v2192, %v2160
        %v2197 = vadd.f32 %v2193, %v2161
        %v2198 = vadd.f32 %v2194, %v2162
        %v2199 = vadd.f32 %v2195, %v2163
        %v2200 = vadd.f32 %v2196, %v2164
        %v2201 = vadd.f32 %v2197, %v2165
        %v2202 = vadd.f32 %v2198, %v2166
        %v2203 = vadd.f32 %v2199, %v2167
        %v2204 = vadd.f32 %v2200, %v2168
        %v2205 = vadd.f32 %v2201, %v2169
        %v2206 = vadd.f32 %v2202, %v2170
        %v2207 = vadd.f32 %v2203, %v2171
        %v2208 = vadd.f32 %v2204, %v2172
        %v2209 = vadd.f32 %v2205, %v2173
        %v2210 = vadd.f32 %v2206, %v2174
        %v2211 = vadd.f32 %v2207, %v2175
        %v2212 = vadd.f32 %v2208, %v2176
        %v2213 = vadd.f32 %v2209, %v2177
        %v2214 = vadd.f32 %v2210, %v2178
        %v2215 = vadd.f32 %v2211, %v2179
        %v2216 = vadd.f32 %v2212, %v2180
        %v2217 = vadd.f32 %v2213, %v2181
        %v2218 = vadd.f32 %v2214, %v2182
        %v2219 = vadd.f32 %v2215, %v2183
        %v2220 = vadd.f32 %v2216, %v2184
        %v2221 = vadd.f32 %v2217, %v2185
        %v2222 = vadd.f32 %v2218, %v2186
        %v2223 = vadd.f32 %v2219, %v2187
        %v2224 = vmul.f32 %v2220, 0.1
        %v2225 = vmul.f32 %v2221, 0.1
        %v2226 = vmul.f32 %v2222, 0.1
        %v2227 = vmul.f32 %v2223, 0.1
        %v2228 = vsub.f32 %v2148, %v2224
        %v2229 = vsub.f32 %v2149, %v2225
        %v2230 = vsub.f32 %v2150, %v2226
        %v2231 = vsub.f32 %v2151, %v2227
        %v2232 = vsub.f32 %v2152, %v2224
        %v2233 = vsub.f32 %v2153, %v2225
        %v2234 = vsub.f32 %v2154, %v2226
        %v2235 = vsub.f32 %v2155, %v2227
        %v2236 = vsub.f32 %v2156, %v2224
        %v2237 = vsub.f32 %v2157, %v2225
        %v2238 = vsub.f32 %v2158, %v2226
        %v2239 = vsub.f32 %v2159, %v2227
        %v2240 = vsub.f32 %v2160, %v2224
        %v2241 = vsub.f32 %v2161, %v2225
        %v2242 = vsub.f32 %v2162, %v2226
        %v2243 = vsub.f32 %v2163, %v2227
        %v2244 = vsub.f32 %v2164, %v2224
        %v2245 = vsub.f32 %v2165, %v2225
        %v2246 = vsub.f32 %v2166, %v2226
        %v2247 = vsub.f32 %v2167, %v2227
        %v2248 = vsub.f32 %v2168, %v2224
        %v2249 = vsub.f32 %v2169, %v2225
        %v2250 = vsub.f32 %v2170, %v2226
        %v2251 = vsub.f32 %v2171, %v2227
        %v2252 = vsub.f32 %v2172, %v2224
        %v2253 = vsub.f32 %v2173, %v2225
        %v2254 = vsub.f32 %v2174, %v2226
        %v2255 = vsub.f32 %v2175, %v2227
        %v2256 = vsub.f32 %v2176, %v2224
        %v2257 = vsub.f32 %v2177, %v2225
        %v2258 = vsub.f32 %v2178, %v2226
        %v2259 = vsub.f32 %v2179, %v2227
        %v2260 = vsub.f32 %v2180, %v2224
        %v2261 = vsub.f32 %v2181, %v2225
        %v2262 = vsub.f32 %v2182, %v2226
        %v2263 = vsub.f32 %v2183, %v2227
        %v2264 = vsub.f32 %v2184, %v2224
        %v2265 = vsub.f32 %v2185, %v2225
        %v2266 = vsub.f32 %v2186, %v2226
        %v2267 = vsub.f32 %v2187, %v2227
        %v2268 = vmul.f32 %v2228, %v2228
        %v2269 = vmul.f32 %v2229, %v2229
        %v2270 = vmul.f32 %v2230, %v2230
        %v2271 = vmul.f32 %v2231, %v2231
        %v2272 = vmul.f32 %v2232, %v2232
        %v2273 = vmul.f32 %v2233, %v2233
        %v2274 = vmul.f32 %v2234, %v2234
        %v2275 = vmul.f32 %v2235, %v2235
        %v2276 = vadd.f32 %v2268, %v2272
        %v2277 = vadd.f32 %v2269, %v2273
        %v2278 = vadd.f32 %v2270, %v2274
        %v2279 = vadd.f32 %v2271, %v2275
        %v2280 = vmul.f32 %v2236, %v2236
        %v2281 = vmul.f32 %v2237, %v2237
        %v2282 = vmul.f32 %v2238, %v2238
        %v2283 = vmul.f32 %v2239, %v2239
        %v2284 = vadd.f32 %v2276, %v2280
        %v2285 = vadd.f32 %v2277, %v2281
        %v2286 = vadd.f32 %v2278, %v2282
        %v2287 = vadd.f32 %v2279, %v2283
        %v2288 = vmul.f32 %v2240, %v2240
        %v2289 = vmul.f32 %v2241, %v2241
        %v2290 = vmul.f32 %v2242, %v2242
        %v2291 = vmul.f32 %v2243, %v2243
        %v2292 = vadd.f32 %v2284, %v2288
        %v2293 = vadd.f32 %v2285, %v2289
        %v2294 = vadd.f32 %v2286, %v2290
        %v2295 = vadd.f32 %v2287, %v2291
        %v2296 = vmul.f32 %v2244, %v2244
        %v2297 = vmul.f32 %v2245, %v2245
        %v2298 = vmul.f32 %v2246, %v2246
        %v2299 = vmul.f32 %v2247, %v2247
        %v2300 = vadd.f32 %v2292, %v2296
        %v2301 = vadd.f32 %v2293, %v2297
        %v2302 = vadd.f32 %v2294, %v2298
        %v2303 = vadd.f32 %v2295, %v2299
        %v2304 = vmul.f32 %v2248, %v2248
        %v2305 = vmul.f32 %v2249, %v2249
        %v2306 = vmul.f32 %v2250, %v2250
        %v2307 = vmul.f32 %v2251, %v2251
        %v2308 = vadd.f32 %v2300, %v2304
        %v2309 = vadd.f32 %v2301, %v2305
        %v2310 = vadd.f32 %v2302, %v2306
        %v2311 = vadd.f32 %v2303, %v2307
        %v2312 = vmul.f32 %v2252, %v2252
        %v2313 = vmul.f32 %v2253, %v2253
        %v2314 = vmul.f32 %v2254, %v2254
        %v2315 = vmul.f32 %v2255, %v2255
        %v2316 = vadd.f32 %v2308, %v2312
        %v2317 = vadd.f32 %v2309, %v2313
        %v2318 = vadd.f32 %v2310, %v2314
        %v2319 = vadd.f32 %v2311, %v2315
        %v2320 = vmul.f32 %v2256, %v2256
        %v2321 = vmul.f32 %v2257, %v2257
        %v2322 = vmul.f32 %v2258, %v2258
        %v2323 = vmul.f32 %v2259, %v2259
        %v2324 = vadd.f32 %v2316, %v2320
        %v2325 = vadd.f32 %v2317, %v2321
        %v2326 = vadd.f32 %v2318, %v2322
        %v2327 = vadd.f32 %v2319, %v2323
        %v2328 = vmul.f32 %v2260, %v2260
        %v2329 = vmul.f32 %v2261, %v2261
        %v2330 = vmul.f32 %v2262, %v2262
        %v2331 = vmul.f32 %v2263, %v2263
        %v2332 = vadd.f32 %v2324, %v2328
        %v2333 = vadd.f32 %v2325, %v2329
        %v2334 = vadd.f32 %v2326, %v2330
        %v2335 = vadd.f32 %v2327, %v2331
        %v2336 = vmul.f32 %v2264, %v2264
        %v2337 = vmul.f32 %v2265, %v2265
        %v2338 = vmul.f32 %v2266, %v2266
        %v2339 = vmul.f32 %v2267, %v2267
        %v2340 = vadd.f32 %v2332, %v2336
        %v2341 = vadd.f32 %v2333, %v2337
        %v2342 = vadd.f32 %v2334, %v2338
        %v2343 = vadd.f32 %v2335, %v2339
        %v2344 = vmul.f32 %v2340, 0.1
        %v2345 = vmul.f32 %v2341, 0.1
        %v2346 = vmul.f32 %v2342, 0.1
        %v2347 = vmul.f32 %v2343, 0.1
        %v2348 = vadd.f32 %v2344, 1e-05
        %v2349 = vadd.f32 %v2345, 1e-05
        %v2350 = vadd.f32 %v2346, 1e-05
        %v2351 = vadd.f32 %v2347, 1e-05
        %v2352 = vrsqrt.pop %v2348
        %v2353 = vrsqrt.pop %v2349
        %v2354 = vrsqrt.pop %v2350
        %v2355 = vrsqrt.pop %v2351
        %v2356 = vmul.f32 %v2228, %v2352
        %v2357 = vmul.f32 %v2229, %v2353
        %v2358 = vmul.f32 %v2230, %v2354
        %v2359 = vmul.f32 %v2231, %v2355
        %s2360 = sld [smem:[#allocation2 + $0x3e]]
        %v2361 = vstv %s2360
        %v2362 = vmul.f32 %v2356, %v2361
        %v2363 = vmul.f32 %v2357, %v2361
        %v2364 = vmul.f32 %v2358, %v2361
        %v2365 = vmul.f32 %v2359, %v2361
        %s2366 = sld [smem:[#allocation2 + $0x48]]
        %v2367 = vstv %s2366
        %v2368 = vadd.f32 %v2362, %v2367
        %v2369 = vadd.f32 %v2363, %v2367
        %v2370 = vadd.f32 %v2364, %v2367
        %v2371 = vadd.f32 %v2365, %v2367
        %v2372 = vmul.f32 %v2232, %v2352
        %v2373 = vmul.f32 %v2233, %v2353
        %v2374 = vmul.f32 %v2234, %v2354
        %v2375 = vmul.f32 %v2235, %v2355
        %s2376 = sld [smem:[#allocation2 + $0x3f]]
        %v2377 = vstv %s2376
        %v2378 = vmul.f32 %v2372, %v2377
        %v2379 = vmul.f32 %v2373, %v2377
        %v2380 = vmul.f32 %v2374, %v2377
        %v2381 = vmul.f32 %v2375, %v2377
        %s2382 = sld [smem:[#allocation2 + $0x49]]
        %v2383 = vstv %s2382
        %v2384 = vadd.f32 %v2378, %v2383
        %v2385 = vadd.f32 %v2379, %v2383
        %v2386 = vadd.f32 %v2380, %v2383
        %v2387 = vadd.f32 %v2381, %v2383
        %v2388 = vmul.f32 %v2236, %v2352
        %v2389 = vmul.f32 %v2237, %v2353
        %v2390 = vmul.f32 %v2238, %v2354
        %v2391 = vmul.f32 %v2239, %v2355
        %s2392 = sld [smem:[#allocation2 + $0x40]]
        %v2393 = vstv %s2392
        %v2394 = vmul.f32 %v2388, %v2393
        %v2395 = vmul.f32 %v2389, %v2393
        %v2396 = vmul.f32 %v2390, %v2393
        %v2397 = vmul.f32 %v2391, %v2393
        %s2398 = sld [smem:[#allocation2 + $0x4a]]
        %v2399 = vstv %s2398
        %v2400 = vadd.f32 %v2394, %v2399
        %v2401 = vadd.f32 %v2395, %v2399
        %v2402 = vadd.f32 %v2396, %v2399
        %v2403 = vadd.f32 %v2397, %v2399
        %v2404 = vmul.f32 %v2240, %v2352
        %v2405 = vmul.f32 %v2241, %v2353
        %v2406 = vmul.f32 %v2242, %v2354
        %v2407 = vmul.f32 %v2243, %v2355
        %s2408 = sld [smem:[#allocation2 + $0x41]]
        %v2409 = vstv %s2408
        %v2410 = vmul.f32 %v2404, %v2409
        %v2411 = vmul.f32 %v2405, %v2409
        %v2412 = vmul.f32 %v2406, %v2409
        %v2413 = vmul.f32 %v2407, %v2409
        %s2414 = sld [smem:[#allocation2 + $0x4b]]
        %v2415 = vstv %s2414
        %v2416 = vadd.f32 %v2410, %v2415
        %v2417 = vadd.f32 %v2411, %v2415
        %v2418 = vadd.f32 %v2412, %v2415
        %v2419 = vadd.f32 %v2413, %v2415
        %v2420 = vmul.f32 %v2244, %v2352
        %v2421 = vmul.f32 %v2245, %v2353
        %v2422 = vmul.f32 %v2246, %v2354
        %v2423 = vmul.f32 %v2247, %v2355
        %s2424 = sld [smem:[#allocation2 + $0x42]]
        %v2425 = vstv %s2424
        %v2426 = vmul.f32 %v2420, %v2425
        %v2427 = vmul.f32 %v2421, %v2425
        %v2428 = vmul.f32 %v2422, %v2425
        %v2429 = vmul.f32 %v2423, %v2425
        %s2430 = sld [smem:[#allocation2 + $0x4c]]
        %v2431 = vstv %s2430
        %v2432 = vadd.f32 %v2426, %v2431
        %v2433 = vadd.f32 %v2427, %v2431
        %v2434 = vadd.f32 %v2428, %v2431
        %v2435 = vadd.f32 %v2429, %v2431
        %v2436 = vmul.f32 %v2248, %v2352
        %v2437 = vmul.f32 %v2249, %v2353
        %v2438 = vmul.f32 %v2250, %v2354
        %v2439 = vmul.f32 %v2251, %v2355
        %s2440 = sld [smem:[#allocation2 + $0x43]]
        %v2441 = vstv %s2440
        %v2442 = vmul.f32 %v2436, %v2441
        %v2443 = vmul.f32 %v2437, %v2441
        %v2444 = vmul.f32 %v2438, %v2441
        %v2445 = vmul.f32 %v2439, %v2441
        %s2446 = sld [smem:[#allocation2 + $0x4d]]
        %v2447 = vstv %s2446
        %v2448 = vadd.f32 %v2442, %v2447
        %v2449 = vadd.f32 %v2443, %v2447
        %v2450 = vadd.f32 %v2444, %v2447
        %v2451 = vadd.f32 %v2445, %v2447
        %v2452 = vmul.f32 %v2252, %v2352
        %v2453 = vmul.f32 %v2253, %v2353
        %v2454 = vmul.f32 %v2254, %v2354
        %v2455 = vmul.f32 %v2255, %v2355
        %s2456 = sld [smem:[#allocation2 + $0x44]]
        %v2457 = vstv %s2456
        %v2458 = vmul.f32 %v2452, %v2457
        %v2459 = vmul.f32 %v2453, %v2457
        %v2460 = vmul.f32 %v2454, %v2457
        %v2461 = vmul.f32 %v2455, %v2457
        %s2462 = sld [smem:[#allocation2 + $0x4e]]
        %v2463 = vstv %s2462
        %v2464 = vadd.f32 %v2458, %v2463
        %v2465 = vadd.f32 %v2459, %v2463
        %v2466 = vadd.f32 %v2460, %v2463
        %v2467 = vadd.f32 %v2461, %v2463
        %v2468 = vmul.f32 %v2256, %v2352
        %v2469 = vmul.f32 %v2257, %v2353
        %v2470 = vmul.f32 %v2258, %v2354
        %v2471 = vmul.f32 %v2259, %v2355
        %s2472 = sld [smem:[#allocation2 + $0x45]]
        %v2473 = vstv %s2472
        %v2474 = vmul.f32 %v2468, %v2473
        %v2475 = vmul.f32 %v2469, %v2473
        %v2476 = vmul.f32 %v2470, %v2473
        %v2477 = vmul.f32 %v2471, %v2473
        %s2478 = sld [smem:[#allocation2 + $0x4f]]
        %v2479 = vstv %s2478
        %v2480 = vadd.f32 %v2474, %v2479
        %v2481 = vadd.f32 %v2475, %v2479
        %v2482 = vadd.f32 %v2476, %v2479
        %v2483 = vadd.f32 %v2477, %v2479
        %v2484 = vmul.f32 %v2260, %v2352
        %v2485 = vmul.f32 %v2261, %v2353
        %v2486 = vmul.f32 %v2262, %v2354
        %v2487 = vmul.f32 %v2263, %v2355
        %s2488 = sld [smem:[#allocation2 + $0x46]]
        %v2489 = vstv %s2488
        %v2490 = vmul.f32 %v2484, %v2489
        %v2491 = vmul.f32 %v2485, %v2489
        %v2492 = vmul.f32 %v2486, %v2489
        %v2493 = vmul.f32 %v2487, %v2489
        %s2494 = sld [smem:[#allocation2 + $0x50]]
        %v2495 = vstv %s2494
        %v2496 = vadd.f32 %v2490, %v2495
        %v2497 = vadd.f32 %v2491, %v2495
        %v2498 = vadd.f32 %v2492, %v2495
        %v2499 = vadd.f32 %v2493, %v2495
        %v2500 = vmul.f32 %v2264, %v2352
        %v2501 = vmul.f32 %v2265, %v2353
        %v2502 = vmul.f32 %v2266, %v2354
        %v2503 = vmul.f32 %v2267, %v2355
        %s2504 = sld [smem:[#allocation2 + $0x47]]
        %v2505 = vstv %s2504
        %v2506 = vmul.f32 %v2500, %v2505
        %v2507 = vmul.f32 %v2501, %v2505
        %v2508 = vmul.f32 %v2502, %v2505
        %v2509 = vmul.f32 %v2503, %v2505
        %s2510 = sld [smem:[#allocation2 + $0x51]]
        %v2511 = vstv %s2510
        %v2512 = vadd.f32 %v2506, %v2511
        %v2513 = vadd.f32 %v2507, %v2511
        %v2514 = vadd.f32 %v2508, %v2511
        %v2515 = vadd.f32 %v2509, %v2511
        %s2516 = sld [smem:[#allocation2 + $0x52]]
        %v2517 = vstv %s2516
        %v2518 = vmul.f32 %v2368, %v2517
        %v2519 = vmul.f32 %v2369, %v2517
        %v2520 = vmul.f32 %v2370, %v2517
        %v2521 = vmul.f32 %v2371, %v2517
        %s2522 = sld [smem:[#allocation2 + $0x53]]
        %v2523 = vstv %s2522
        %v2524 = vmul.f32 %v2384, %v2523
        %v2525 = vmul.f32 %v2385, %v2523
        %v2526 = vmul.f32 %v2386, %v2523
        %v2527 = vmul.f32 %v2387, %v2523
        %v2528 = vadd.f32 %v2518, %v2524
        %v2529 = vadd.f32 %v2519, %v2525
        %v2530 = vadd.f32 %v2520, %v2526
        %v2531 = vadd.f32 %v2521, %v2527
        %s2532 = sld [smem:[#allocation2 + $0x54]]
        %v2533 = vstv %s2532
        %v2534 = vmul.f32 %v2400, %v2533
        %v2535 = vmul.f32 %v2401, %v2533
        %v2536 = vmul.f32 %v2402, %v2533
        %v2537 = vmul.f32 %v2403, %v2533
        %v2538 = vadd.f32 %v2528, %v2534
        %v2539 = vadd.f32 %v2529, %v2535
        %v2540 = vadd.f32 %v2530, %v2536
        %v2541 = vadd.f32 %v2531, %v2537
        %s2542 = sld [smem:[#allocation2 + $0x55]]
        %v2543 = vstv %s2542
        %v2544 = vmul.f32 %v2416, %v2543
        %v2545 = vmul.f32 %v2417, %v2543
        %v2546 = vmul.f32 %v2418, %v2543
        %v2547 = vmul.f32 %v2419, %v2543
        %v2548 = vadd.f32 %v2538, %v2544
        %v2549 = vadd.f32 %v2539, %v2545
        %v2550 = vadd.f32 %v2540, %v2546
        %v2551 = vadd.f32 %v2541, %v2547
        %s2552 = sld [smem:[#allocation2 + $0x56]]
        %v2553 = vstv %s2552
        %v2554 = vmul.f32 %v2432, %v2553
        %v2555 = vmul.f32 %v2433, %v2553
        %v2556 = vmul.f32 %v2434, %v2553
        %v2557 = vmul.f32 %v2435, %v2553
        %v2558 = vadd.f32 %v2548, %v2554
        %v2559 = vadd.f32 %v2549, %v2555
        %v2560 = vadd.f32 %v2550, %v2556
        %v2561 = vadd.f32 %v2551, %v2557
        %s2562 = sld [smem:[#allocation2 + $0x57]]
        %v2563 = vstv %s2562
        %v2564 = vmul.f32 %v2448, %v2563
        %v2565 = vmul.f32 %v2449, %v2563
        %v2566 = vmul.f32 %v2450, %v2563
        %v2567 = vmul.f32 %v2451, %v2563
        %v2568 = vadd.f32 %v2558, %v2564
        %v2569 = vadd.f32 %v2559, %v2565
        %v2570 = vadd.f32 %v2560, %v2566
        %v2571 = vadd.f32 %v2561, %v2567
        %s2572 = sld [smem:[#allocation2 + $0x58]]
        %v2573 = vstv %s2572
        %v2574 = vmul.f32 %v2464, %v2573
        %v2575 = vmul.f32 %v2465, %v2573
        %v2576 = vmul.f32 %v2466, %v2573
        %v2577 = vmul.f32 %v2467, %v2573
        %v2578 = vadd.f32 %v2568, %v2574
        %v2579 = vadd.f32 %v2569, %v2575
        %v2580 = vadd.f32 %v2570, %v2576
        %v2581 = vadd.f32 %v2571, %v2577
        %s2582 = sld [smem:[#allocation2 + $0x59]]
        %v2583 = vstv %s2582
        %v2584 = vmul.f32 %v2480, %v2583
        %v2585 = vmul.f32 %v2481, %v2583
        %v2586 = vmul.f32 %v2482, %v2583
        %v2587 = vmul.f32 %v2483, %v2583
        %v2588 = vadd.f32 %v2578, %v2584
        %v2589 = vadd.f32 %v2579, %v2585
        %v2590 = vadd.f32 %v2580, %v2586
        %v2591 = vadd.f32 %v2581, %v2587
        %s2592 = sld [smem:[#allocation2 + $0x5a]]
        %v2593 = vstv %s2592
        %v2594 = vmul.f32 %v2496, %v2593
        %v2595 = vmul.f32 %v2497, %v2593
        %v2596 = vmul.f32 %v2498, %v2593
        %v2597 = vmul.f32 %v2499, %v2593
        %v2598 = vadd.f32 %v2588, %v2594
        %v2599 = vadd.f32 %v2589, %v2595
        %v2600 = vadd.f32 %v2590, %v2596
        %v2601 = vadd.f32 %v2591, %v2597
        %s2602 = sld [smem:[#allocation2 + $0x5b]]
        %v2603 = vstv %s2602
        %v2604 = vmul.f32 %v2512, %v2603
        %v2605 = vmul.f32 %v2513, %v2603
        %v2606 = vmul.f32 %v2514, %v2603
        %v2607 = vmul.f32 %v2515, %v2603
        %v2608 = vadd.f32 %v2598, %v2604
        %v2609 = vadd.f32 %v2599, %v2605
        %v2610 = vadd.f32 %v2600, %v2606
        %v2611 = vadd.f32 %v2601, %v2607
        %s2612 = sld [smem:[#allocation2 + $0x66]]
        %v2613 = vstv %s2612
        %v2614 = vadd.f32 %v2608, %v2613
        %v2615 = vadd.f32 %v2609, %v2613
        %v2616 = vadd.f32 %v2610, %v2613
        %v2617 = vadd.f32 %v2611, %v2613
        %s2618 = sld [smem:[#allocation2 + $0x5c]]
        %v2619 = vstv %s2618
        %v2620 = vmul.f32 %v2368, %v2619
        %v2621 = vmul.f32 %v2369, %v2619
        %v2622 = vmul.f32 %v2370, %v2619
        %v2623 = vmul.f32 %v2371, %v2619
        %s2624 = sld [smem:[#allocation2 + $0x5d]]
        %v2625 = vstv %s2624
        %v2626 = vmul.f32 %v2384, %v2625
        %v2627 = vmul.f32 %v2385, %v2625
        %v2628 = vmul.f32 %v2386, %v2625
        %v2629 = vmul.f32 %v2387, %v2625
        %v2630 = vadd.f32 %v2620, %v2626
        %v2631 = vadd.f32 %v2621, %v2627
        %v2632 = vadd.f32 %v2622, %v2628
        %v2633 = vadd.f32 %v2623, %v2629
        %s2634 = sld [smem:[#allocation2 + $0x5e]]
        %v2635 = vstv %s2634
        %v2636 = vmul.f32 %v2400, %v2635
        %v2637 = vmul.f32 %v2401, %v2635
        %v2638 = vmul.f32 %v2402, %v2635
        %v2639 = vmul.f32 %v2403, %v2635
        %v2640 = vadd.f32 %v2630, %v2636
        %v2641 = vadd.f32 %v2631, %v2637
        %v2642 = vadd.f32 %v2632, %v2638
        %v2643 = vadd.f32 %v2633, %v2639
        %s2644 = sld [smem:[#allocation2 + $0x5f]]
        %v2645 = vstv %s2644
        %v2646 = vmul.f32 %v2416, %v2645
        %v2647 = vmul.f32 %v2417, %v2645
        %v2648 = vmul.f32 %v2418, %v2645
        %v2649 = vmul.f32 %v2419, %v2645
        %v2650 = vadd.f32 %v2640, %v2646
        %v2651 = vadd.f32 %v2641, %v2647
        %v2652 = vadd.f32 %v2642, %v2648
        %v2653 = vadd.f32 %v2643, %v2649
        %s2654 = sld [smem:[#allocation2 + $0x60]]
        %v2655 = vstv %s2654
        %v2656 = vmul.f32 %v2432, %v2655
        %v2657 = vmul.f32 %v2433, %v2655
        %v2658 = vmul.f32 %v2434, %v2655
        %v2659 = vmul.f32 %v2435, %v2655
        %v2660 = vadd.f32 %v2650, %v2656
        %v2661 = vadd.f32 %v2651, %v2657
        %v2662 = vadd.f32 %v2652, %v2658
        %v2663 = vadd.f32 %v2653, %v2659
        %s2664 = sld [smem:[#allocation2 + $0x61]]
        %v2665 = vstv %s2664
        %v2666 = vmul.f32 %v2448, %v2665
        %v2667 = vmul.f32 %v2449, %v2665
        %v2668 = vmul.f32 %v2450, %v2665
        %v2669 = vmul.f32 %v2451, %v2665
        %v2670 = vadd.f32 %v2660, %v2666
        %v2671 = vadd.f32 %v2661, %v2667
        %v2672 = vadd.f32 %v2662, %v2668
        %v2673 = vadd.f32 %v2663, %v2669
        %s2674 = sld [smem:[#allocation2 + $0x62]]
        %v2675 = vstv %s2674
        %v2676 = vmul.f32 %v2464, %v2675
        %v2677 = vmul.f32 %v2465, %v2675
        %v2678 = vmul.f32 %v2466, %v2675
        %v2679 = vmul.f32 %v2467, %v2675
        %v2680 = vadd.f32 %v2670, %v2676
        %v2681 = vadd.f32 %v2671, %v2677
        %v2682 = vadd.f32 %v2672, %v2678
        %v2683 = vadd.f32 %v2673, %v2679
        %s2684 = sld [smem:[#allocation2 + $0x63]]
        %v2685 = vstv %s2684
        %v2686 = vmul.f32 %v2480, %v2685
        %v2687 = vmul.f32 %v2481, %v2685
        %v2688 = vmul.f32 %v2482, %v2685
        %v2689 = vmul.f32 %v2483, %v2685
        %v2690 = vadd.f32 %v2680, %v2686
        %v2691 = vadd.f32 %v2681, %v2687
        %v2692 = vadd.f32 %v2682, %v2688
        %v2693 = vadd.f32 %v2683, %v2689
        %s2694 = sld [smem:[#allocation2 + $0x64]]
        %v2695 = vstv %s2694
        %v2696 = vmul.f32 %v2496, %v2695
        %v2697 = vmul.f32 %v2497, %v2695
        %v2698 = vmul.f32 %v2498, %v2695
        %v2699 = vmul.f32 %v2499, %v2695
        %v2700 = vadd.f32 %v2690, %v2696
        %v2701 = vadd.f32 %v2691, %v2697
        %v2702 = vadd.f32 %v2692, %v2698
        %v2703 = vadd.f32 %v2693, %v2699
        %s2704 = sld [smem:[#allocation2 + $0x65]]
        %v2705 = vstv %s2704
        %v2706 = vmul.f32 %v2512, %v2705
        %v2707 = vmul.f32 %v2513, %v2705
        %v2708 = vmul.f32 %v2514, %v2705
        %v2709 = vmul.f32 %v2515, %v2705
        %v2710 = vadd.f32 %v2700, %v2706
        %v2711 = vadd.f32 %v2701, %v2707
        %v2712 = vadd.f32 %v2702, %v2708
        %v2713 = vadd.f32 %v2703, %v2709
        %s2714 = sld [smem:[#allocation2 + $0x67]]
        %v2715 = vstv %s2714
        %v2716 = vadd.f32 %v2710, %v2715
        %v2717 = vadd.f32 %v2711, %v2715
        %v2718 = vadd.f32 %v2712, %v2715
        %v2719 = vadd.f32 %v2713, %v2715
        %v2720 = vmax.f32 %v2614, 0.0
        %v2721 = vmax.f32 %v2615, 0.0
        %v2722 = vmax.f32 %v2616, 0.0
        %v2723 = vmax.f32 %v2617, 0.0
        %v2724 = vmax.f32 %v2716, 0.0
        %v2725 = vmax.f32 %v2717, 0.0
        %v2726 = vmax.f32 %v2718, 0.0
        %v2727 = vmax.f32 %v2719, 0.0
        %v2728 = vadd.f32 %v1908, %v2720
        %v2729 = vadd.f32 %v1909, %v2721
        %v2730 = vadd.f32 %v1910, %v2722
        %v2731 = vadd.f32 %v1911, %v2723
        %2732 = vst [vmem:[%s173] sm:$0xff] %v2728
        %2733 = vst [vmem:[%s173 + $0x8] sm:$0xff] %v2729
        %2734 = vst [vmem:[%s173 + $0x10] sm:$0xff] %v2730
        %2735 = vst [vmem:[%s173 + $0x18] sm:$0xff] %v2731
        %v2736 = vadd.f32 %v1924, %v2724
        %v2737 = vadd.f32 %v1925, %v2725
        %v2738 = vadd.f32 %v1926, %v2726
        %v2739 = vadd.f32 %v1927, %v2727
        %s2740 = scalar_lea.vmem %s173, 32 [#allocation7]
        %2741 = vst [vmem:[%s2740] sm:$0xff] %v2736
        %2742 = vst [vmem:[%s2740 + $0x8] sm:$0xff] %v2737
        %2743 = vst [vmem:[%s2740 + $0x10] sm:$0xff] %v2738
        %2744 = vst [vmem:[%s2740 + $0x18] sm:$0xff] %v2739
        %s2745 = sand.u32 %s75, 1
        %s2746 = scalar_lea.sflag [#allocation4], %s2745
        %s2747 = sand.u32 %s75, 1
        %s2748 = smul.addr %s2747, 64
        %s2749 = scalar_lea.vmem [#allocation7], %s2748
        // Predicated region
        $region37: #{tpu_custom_call.1} parent=27 // pred_check
          %p2750 = pneg %p85
        $region38: #{tpu_custom_call.1} parent=27 // pred_check_branch
          %2752 = sbr.rel (%p2750) target = $region40
        $region39: #{tpu_custom_call.1} parent=27 // pred_region
          %s2753 = smul.u32 4, %s20
          %s2755 = ssub.s32 1024, 1024
          %2756 = vsyncadd %s2746, %s2755
          %s2757 = smul.addr %s2753, 128
          %s2758 = scalar_lea.hbm %s2, %s2757
          %s2759 = sshll.u32 %s2749, 4
          %s2760 = int_to_ptr.vmem [resolvable:$true] %s2759
          %2765 = dma.vmem_to_hbm [thread:$0]  %s2760, 1024, %s2758, %s2746, 512, 1024, 32
        $region40: #{tpu_custom_call.1} parent=27 // pred_fallthru
          _
      $region28: #{tpu_custom_call.1} parent=5 // pred_fallthru
        _
      %p2766 = scmp.le.s32.totalorder 2, %s15
      // Predicated region
      $region41: #{tpu_custom_call.1} parent=5 // pred_check
        %p2767 = pneg %p2766
      $region42: #{tpu_custom_call.1} parent=5 // pred_check_branch
        %2769 = sbr.rel (%p2767) target = $region44
      $region43: #{tpu_custom_call.1} parent=5 // pred_region
        %s2770 = ssub.s32 %s15, 2
        // Predicated region
        $region45: #{tpu_custom_call.1} parent=43 // pred_check
          %p2771 = pneg %p91
        $region46: #{tpu_custom_call.1} parent=43 // pred_check_branch
          %2773 = sbr.rel (%p2771) target = $region48
        $region47: #{tpu_custom_call.1} parent=43 // pred_region
          %s2774 = sand.u32 %s76, 1
          %s2775 = scalar_lea.sflag [#allocation4], %s2774
          %s2776 = sand.u32 %s76, 1
          %s2777 = smul.addr %s2776, 64
          %s2778 = scalar_lea.vmem [#allocation7], %s2777
          %2779 = dma.done %s2775, 1024
        $region48: #{tpu_custom_call.1} parent=43 // pred_fallthru
          _
      $region44: #{tpu_custom_call.1} parent=5 // pred_fallthru
        _
    $region6: #{tpu_custom_call.1} parent=1 // loop_footer
      %s19 = sadd.s32 1, %s15
    $region7: #{tpu_custom_call.1} parent=1 // loop_footer_branch
      %14 = sbr.rel target = $region3
    $region8: #{tpu_custom_call.1} parent=1 // loop_exit
      _
    %2780 = vsyncpa [#allocation3], 1
    %s2781 = scalar_lea.sflag [#allocation3], 1
    %2782 = vsyncpa %s2781, 1
    %2783 = vsyncpa [#allocation4], 1
    %s2784 = scalar_lea.sflag [#allocation4], 1
    %2785 = vsyncpa %s2784, 1
    %2786 = vsyncpa [#allocation5], 1
    %s2787 = scalar_lea.sflag [#allocation5], 1
    %2788 = vsyncpa %s2787, 1

</llo_original>
